<compile_context>
chip_gen: v7x
topology: tpu7x:2x2x1
jax: 0.10.0
libtpu: 0.0.40
codegen_flags: <defaults>
</compile_context>

<pallas_src>
import math

import jax
import jax.numpy as jnp
from jax import lax
from jax.experimental import pallas as pl
from jax.experimental.pallas import tpu as pltpu


def _softplus(x):
    # matches torch.nn.functional.softplus (beta=1, threshold=20)
    return jnp.where(x > 20.0, x, jnp.log1p(jnp.exp(jnp.minimum(x, 20.0))))


def _stochastic_lstm_kernel(h0_ref, c0_ref, eps0_ref, eps_ref,
                            wif_ref, w_h_ref, b1_ref,
                            w2m_ref, w2v_ref, b2m_ref, b2v_ref,
                            out_ref,
                            o_sc, gh_sc, c_sc):
    """One grid step processes a chunk of timesteps.

    h0, c0 : [B, H]            initial states (consumed only on chunk 0)
    eps0   : [B, D]            noise for the initial stochastic_forward
    eps    : [TC, B, D]        per-chunk noise block (streamed over T)
    wif    : [D, 4H]   bf16    input->gates weight
    w_h    : [H, 4H+200] bf16  fused [Whf | W1]
    b1     : [1, 200]
    w2m/v  : [200, D]  bf16    mean / var halves of the second linear
    b2m/v  : [1, D]
    out    : [TC, B, D]        per-chunk output block (time-major)
    scratch: o [B,D], h@Whf [B,4H], c [B,H] -- carried across chunks
    """
    B, H = h0_ref.shape
    D = wif_ref.shape[0]
    G = 4 * H
    TC = out_ref.shape[0]

    f32 = jnp.float32
    bf16 = jnp.bfloat16

    wif = wif_ref[...]          # [D, 4H]
    w_h = w_h_ref[...]          # [H, 4H+200]
    w2m = w2m_ref[...]          # [200, D]
    w2v = w2v_ref[...]          # [200, D]

    # Hoisted bias broadcasts (emitted once per chunk, not per timestep).
    b1b = jnp.broadcast_to(b1_ref[...], (B, b1_ref.shape[1]))   # [B, 200]
    b2mb = jnp.broadcast_to(b2m_ref[...], (B, D))               # [B, D]
    b2vb = jnp.broadcast_to(b2v_ref[...], (B, D))               # [B, D]

    def h_to_y(h):
        # Single fused MXU matmul: gives both the next step's Whf gate
        # contribution (lanes [:4H]) and the h2z first layer (lanes [4H:]).
        return jnp.dot(h.astype(bf16), w_h, preferred_element_type=f32)

    def stoch_tail(z1_pre, eps):
        z1 = _softplus(z1_pre + b1b)                                   # [B, 200]
        z1b = z1.astype(bf16)
        mean = _softplus(jnp.dot(z1b, w2m, preferred_element_type=f32) + b2mb)
        var = _softplus(jnp.dot(z1b, w2v, preferred_element_type=f32) + b2vb)
        return _softplus(mean + jnp.sqrt(var) * eps)                   # [B, D]

    # Chunk 0: initialize carried state (o, h@Whf, c) from h0 / c0 / eps0.
    @pl.when(pl.program_id(0) == 0)
    def _init():
        y0 = h_to_y(h0_ref[...])
        gh_sc[...] = y0[:, :G]
        c_sc[...] = c0_ref[...]
        o_sc[...] = stoch_tail(y0[:, G:], eps0_ref[...])

    def step(i, carry):
        o, gh, c = carry
        gates = jnp.dot(o.astype(bf16), wif, preferred_element_type=f32) + gh
        sig = jax.nn.sigmoid(gates)      # one pass over the full [B, 4H] vreg
        th = jnp.tanh(gates)             # one pass over the full [B, 4H] vreg
        ingate = sig[:, 0 * H:1 * H]
        forgetgate = sig[:, 1 * H:2 * H]
        cellgate = th[:, 2 * H:3 * H]
        outgate = sig[:, 3 * H:4 * H]
        c_new = forgetgate * c + ingate * cellgate
        h_new = outgate * jnp.tanh(c_new)
        y = h_to_y(h_new)
        o_new = stoch_tail(y[:, G:], eps_ref[i])
        out_ref[i] = o_new
        return (o_new, y[:, :G], c_new)

    o, gh, c = lax.fori_loop(0, TC, step,
                             (o_sc[...], gh_sc[...], c_sc[...]),
                             unroll=True)
    o_sc[...] = o
    gh_sc[...] = gh
    c_sc[...] = c


def stochastic_lstm_forward(params, h0, c0, eps0, eps, *, chunk=None):
    """Wrapper: calls the Pallas kernel and returns [B, T, D]."""
    B, H = h0.shape
    T, _, D = eps.shape
    if chunk is None:
        chunk = T if T <= 8 else 8
    assert T % chunk == 0, "seq_len must be a multiple of the time chunk"
    n_chunks = T // chunk

    bf16 = jnp.bfloat16
    # Fuse Whf (hidden->gates) and W1 (hidden->200) into one matmul operand;
    # pre-split W2/b2 into mean/var halves (avoids sub-lane slicing in-kernel).
    wif = params["Wif"].astype(bf16)                                   # [D, 4H]
    w_h = jnp.concatenate([params["Whf"], params["W1"]], axis=1).astype(bf16)
    b1 = params["b1"]                                                  # [1, 200]
    w2m = params["W2"][:, :D].astype(bf16)                             # [200, D]
    w2v = params["W2"][:, D:].astype(bf16)                             # [200, D]
    b2m = params["b2"][:, :D]                                          # [1, D]
    b2v = params["b2"][:, D:]                                          # [1, D]

    const2 = lambda t: (0, 0)

    grid_spec = pltpu.PrefetchScalarGridSpec(
        num_scalar_prefetch=0,
        grid=(n_chunks,),
        in_specs=[
            pl.BlockSpec((B, H), const2),                       # h0
            pl.BlockSpec((B, H), const2),                       # c0
            pl.BlockSpec((B, D), const2),                       # eps0
            pl.BlockSpec((chunk, B, D), lambda t: (t, 0, 0)),   # eps (streamed)
            pl.BlockSpec((D, 4 * H), const2),                   # Wif
            pl.BlockSpec((H, 4 * H + 200), const2),             # [Whf | W1]
            pl.BlockSpec((1, 200), const2),                     # b1
            pl.BlockSpec((200, D), const2),                     # W2 mean half
            pl.BlockSpec((200, D), const2),                     # W2 var half
            pl.BlockSpec((1, D), const2),                       # b2 mean half
            pl.BlockSpec((1, D), const2),                       # b2 var half
        ],
        out_specs=pl.BlockSpec((chunk, B, D), lambda t: (t, 0, 0)),
        scratch_shapes=[
            pltpu.VMEM((B, D), jnp.float32),        # o carry
            pltpu.VMEM((B, 4 * H), jnp.float32),    # h @ Whf carry
            pltpu.VMEM((B, H), jnp.float32),        # c carry
        ],
    )

    fn = pl.pallas_call(
        _stochastic_lstm_kernel,
        out_shape=jax.ShapeDtypeStruct((T, B, D), jnp.float32),
        grid_spec=grid_spec,
        compiler_params=pltpu.CompilerParams(
            dimension_semantics=("arbitrary",)),    # serial recurrence over time
    )
    out_tbd = fn(h0, c0, eps0, eps, wif, w_h, b1, w2m, w2v, b2m, b2v)
    # TODO(synk): a lane-dense [B, T*D] output layout would remove this tiny
    # transpose too, but requires dynamic lane-offset stores; kept time-major
    # stores (proven-safe dynamic leading-axis index) and transpose here.
    return jnp.transpose(out_tbd, (1, 0, 2))


def init_params(key, dsize, hsize):
    k = jax.random.split(key, 6)
    bound1 = 1.0 / math.sqrt(hsize)
    bound2 = 1.0 / math.sqrt(200)
    return {
        # torch: FloatTensor(dsize, 4*hsize).uniform_(0, 1)
        "Wif": jax.random.uniform(k[0], (dsize, 4 * hsize), jnp.float32, 0.0, 1.0),
        "Whf": jax.random.uniform(k[1], (hsize, 4 * hsize), jnp.float32, 0.0, 1.0),
        # torch.nn.Linear default init, weights stored transposed [in, out]
        "W1": jax.random.uniform(k[2], (hsize, 200), jnp.float32, -bound1, bound1),
        "b1": jax.random.uniform(k[3], (1, 200), jnp.float32, -bound1, bound1),
        "W2": jax.random.uniform(k[4], (200, 2 * dsize), jnp.float32, -bound2, bound2),
        "b2": jax.random.uniform(k[5], (1, 2 * dsize), jnp.float32, -bound2, bound2),
    }


if __name__ == "__main__":
    dsize, hsize = 8, 32
    batch_size, seq_len = 4, 8

    root = jax.random.PRNGKey(0)
    k_params, k_h, k_c, k_eps0, k_eps = jax.random.split(root, 5)

    params = init_params(k_params, dsize, hsize)

    # torch: h, c ~ U(0, 1); noise ~ N(0, 1) drawn per stochastic_forward call
    h0 = jax.random.uniform(k_h, (batch_size, hsize), jnp.float32, 0.0, 1.0)
    c0 = jax.random.uniform(k_c, (batch_size, hsize), jnp.float32, 0.0, 1.0)
    eps0 = jax.random.normal(k_eps0, (batch_size, dsize), jnp.float32)
    eps = jax.random.normal(k_eps, (seq_len, batch_size, dsize), jnp.float32)

    out = stochastic_lstm_forward(params, h0, c0, eps0, eps)
    out = jax.block_until_ready(out)

    assert out.shape == (batch_size, seq_len, dsize), out.shape
    assert bool(jnp.all(jnp.isfinite(out)))
    assert bool(jnp.all(out > 0.0))  # softplus output is strictly positive
    print("KERNEL_OK")
</pallas_src>

<mosaic_0001>
module attributes {stable_mosaic.version = 11 : i64} {
  func.func @_stochastic_lstm_kernel(%arg0: i32, %arg1: memref<4x32xf32, #tpu.memory_space<vmem>>, %arg2: memref<4x32xf32, #tpu.memory_space<vmem>>, %arg3: memref<4x8xf32, #tpu.memory_space<vmem>>, %arg4: memref<8x4x8xf32, #tpu.memory_space<vmem>>, %arg5: memref<8x128xbf16, #tpu.memory_space<vmem>>, %arg6: memref<32x328xbf16, #tpu.memory_space<vmem>>, %arg7: memref<1x200xf32, #tpu.memory_space<vmem>>, %arg8: memref<200x8xbf16, #tpu.memory_space<vmem>>, %arg9: memref<200x8xbf16, #tpu.memory_space<vmem>>, %arg10: memref<1x8xf32, #tpu.memory_space<vmem>>, %arg11: memref<1x8xf32, #tpu.memory_space<vmem>>, %arg12: memref<8x4x8xf32, #tpu.memory_space<vmem>>, %arg13: memref<4x8xf32, #tpu.memory_space<vmem>>, %arg14: memref<4x128xf32, #tpu.memory_space<vmem>>, %arg15: memref<4x32xf32, #tpu.memory_space<vmem>>) attributes {dimension_semantics = [#tpu.dimension_semantics<arbitrary>], iteration_bounds = array<i64: 1>, scalar_prefetch = 0 : i64, scratch_operands = 3 : i64, tpu.core_type = #tpu.core_type<tc>, window_params = [{pipeline_mode = #tpu.pipeline_mode<synchronous>, transform_indices = @transform_0, window_bounds = array<i64: 4, 32>}, {pipeline_mode = #tpu.pipeline_mode<synchronous>, transform_indices = @transform_1, window_bounds = array<i64: 4, 32>}, {pipeline_mode = #tpu.pipeline_mode<synchronous>, transform_indices = @transform_2, window_bounds = array<i64: 4, 8>}, {transform_indices = @transform_3, window_bounds = array<i64: 8, 4, 8>}, {pipeline_mode = #tpu.pipeline_mode<synchronous>, transform_indices = @transform_4, window_bounds = array<i64: 8, 128>}, {pipeline_mode = #tpu.pipeline_mode<synchronous>, transform_indices = @transform_5, window_bounds = array<i64: 32, 328>}, {pipeline_mode = #tpu.pipeline_mode<synchronous>, transform_indices = @transform_6, window_bounds = array<i64: 1, 200>}, {pipeline_mode = #tpu.pipeline_mode<synchronous>, transform_indices = @transform_7, window_bounds = array<i64: 200, 8>}, {pipeline_mode = #tpu.pipeline_mode<synchronous>, transform_indices = @transform_8, window_bounds = array<i64: 200, 8>}, {pipeline_mode = #tpu.pipeline_mode<synchronous>, transform_indices = @transform_9, window_bounds = array<i64: 1, 8>}, {pipeline_mode = #tpu.pipeline_mode<synchronous>, transform_indices = @transform_10, window_bounds = array<i64: 1, 8>}, {transform_indices = @transform_11, window_bounds = array<i64: 8, 4, 8>}]} {
    %c0 = arith.constant 0 : index
    %c0_0 = arith.constant 0 : index
    %0 = vector.load %arg5[%c0, %c0_0] : memref<8x128xbf16, #tpu.memory_space<vmem>>, vector<8x128xbf16>
    %c0_1 = arith.constant 0 : index
    %c0_2 = arith.constant 0 : index
    %1 = vector.load %arg6[%c0_1, %c0_2] : memref<32x328xbf16, #tpu.memory_space<vmem>>, vector<32x328xbf16>
    %c0_3 = arith.constant 0 : index
    %c0_4 = arith.constant 0 : index
    %2 = vector.load %arg8[%c0_3, %c0_4] : memref<200x8xbf16, #tpu.memory_space<vmem>>, vector<200x8xbf16>
    %c0_5 = arith.constant 0 : index
    %c0_6 = arith.constant 0 : index
    %3 = vector.load %arg9[%c0_5, %c0_6] : memref<200x8xbf16, #tpu.memory_space<vmem>>, vector<200x8xbf16>
    %c0_7 = arith.constant 0 : index
    %c0_8 = arith.constant 0 : index
    %4 = vector.load %arg7[%c0_7, %c0_8] : memref<1x200xf32, #tpu.memory_space<vmem>>, vector<1x200xf32>
    %5 = vector.shape_cast %4 : vector<1x200xf32> to vector<1x200xf32>
    %6 = vector.broadcast %5 : vector<1x200xf32> to vector<4x200xf32>
    %c0_9 = arith.constant 0 : index
    %c0_10 = arith.constant 0 : index
    %7 = vector.load %arg10[%c0_9, %c0_10] : memref<1x8xf32, #tpu.memory_space<vmem>>, vector<1x8xf32>
    %8 = vector.shape_cast %7 : vector<1x8xf32> to vector<1x8xf32>
    %9 = vector.broadcast %8 : vector<1x8xf32> to vector<4x8xf32>
    %c0_11 = arith.constant 0 : index
    %c0_12 = arith.constant 0 : index
    %10 = vector.load %arg11[%c0_11, %c0_12] : memref<1x8xf32, #tpu.memory_space<vmem>>, vector<1x8xf32>
    %11 = vector.shape_cast %10 : vector<1x8xf32> to vector<1x8xf32>
    %12 = vector.broadcast %11 : vector<1x8xf32> to vector<4x8xf32>
    %c0_i32 = arith.constant 0 : i32
    %13 = arith.cmpi eq, %arg0, %c0_i32 : i32
    %14 = arith.extui %13 : i1 to i32
    %c0_i32_13 = arith.constant 0 : i32
    %15 = arith.cmpi ne, %14, %c0_i32_13 : i32
    scf.if %15 {
      %c0_162 = arith.constant 0 : index
      %c0_163 = arith.constant 0 : index
      %550 = vector.load %arg1[%c0_162, %c0_163] : memref<4x32xf32, #tpu.memory_space<vmem>>, vector<4x32xf32>
      %551 = arith.truncf %550 : vector<4x32xf32> to vector<4x32xbf16>
      %cst_164 = arith.constant dense<0.000000e+00> : vector<4x328xf32>
      %552 = tpu.matmul %551, %1, %cst_164 {dimension_numbers = #tpu.dot_dimension_numbers<[1], [0], [0], [1], [0, 0, 1, 1], [], []>} : vector<4x32xbf16>, vector<32x328xbf16>, vector<4x328xf32> -> vector<4x328xf32>
      %553 = vector.extract_strided_slice %552 {offsets = [0, 0], sizes = [4, 128], strides = [1, 1]} : vector<4x328xf32> to vector<4x128xf32>
      %c0_165 = arith.constant 0 : index
      %c0_166 = arith.constant 0 : index
      %554 = vector.load %arg14[%c0_165, %c0_166] : memref<4x128xf32, #tpu.memory_space<vmem>>, vector<4x128xf32>
      tpu.vector_store %arg14[%c0_165, %c0_166], %553 {strides = array<i32>} : memref<4x128xf32, #tpu.memory_space<vmem>>, vector<4x128xf32>,
      %c0_167 = arith.constant 0 : index
      %c0_168 = arith.constant 0 : index
      %555 = vector.load %arg2[%c0_167, %c0_168] : memref<4x32xf32, #tpu.memory_space<vmem>>, vector<4x32xf32>
      %c0_169 = arith.constant 0 : index
      %c0_170 = arith.constant 0 : index
      %556 = vector.load %arg15[%c0_169, %c0_170] : memref<4x32xf32, #tpu.memory_space<vmem>>, vector<4x32xf32>
      tpu.vector_store %arg15[%c0_169, %c0_170], %555 {strides = array<i32>} : memref<4x32xf32, #tpu.memory_space<vmem>>, vector<4x32xf32>,
      %557 = vector.extract_strided_slice %552 {offsets = [0, 128], sizes = [4, 200], strides = [1, 1]} : vector<4x328xf32> to vector<4x200xf32>
      %c0_171 = arith.constant 0 : index
      %c0_172 = arith.constant 0 : index
      %558 = vector.load %arg3[%c0_171, %c0_172] : memref<4x8xf32, #tpu.memory_space<vmem>>, vector<4x8xf32>
      %559 = arith.addf %557, %6 : vector<4x200xf32>
      %cst_173 = arith.constant 2.000000e+01 : f32
      %560 = vector.broadcast %cst_173 : f32 to vector<4x200xf32>
      %561 = arith.cmpf ogt, %559, %560 : vector<4x200xf32>
      %cst_174 = arith.constant 2.000000e+01 : f32
      %562 = vector.broadcast %cst_174 : f32 to vector<4x200xf32>
      %563 = arith.minimumf %559, %562 : vector<4x200xf32>
      %564 = math.exp %563 : vector<4x200xf32>
      %565 = math.log1p %564 : vector<4x200xf32>
      %566 = arith.select %561, %559, %565 : vector<4x200xi1>, vector<4x200xf32>
      %567 = arith.truncf %566 : vector<4x200xf32> to vector<4x200xbf16>
      %cst_175 = arith.constant dense<0.000000e+00> : vector<4x8xf32>
      %568 = tpu.matmul %567, %2, %cst_175 {dimension_numbers = #tpu.dot_dimension_numbers<[1], [0], [0], [1], [0, 0, 1, 1], [], []>} : vector<4x200xbf16>, vector<200x8xbf16>, vector<4x8xf32> -> vector<4x8xf32>
      %569 = arith.addf %568, %9 : vector<4x8xf32>
      %cst_176 = arith.constant 2.000000e+01 : f32
      %570 = vector.broadcast %cst_176 : f32 to vector<4x8xf32>
      %571 = arith.cmpf ogt, %569, %570 : vector<4x8xf32>
      %cst_177 = arith.constant 2.000000e+01 : f32
      %572 = vector.broadcast %cst_177 : f32 to vector<4x8xf32>
      %573 = arith.minimumf %569, %572 : vector<4x8xf32>
      %574 = math.exp %573 : vector<4x8xf32>
      %575 = math.log1p %574 : vector<4x8xf32>
      %576 = arith.select %571, %569, %575 : vector<4x8xi1>, vector<4x8xf32>
      %cst_178 = arith.constant dense<0.000000e+00> : vector<4x8xf32>
      %577 = tpu.matmul %567, %3, %cst_178 {dimension_numbers = #tpu.dot_dimension_numbers<[1], [0], [0], [1], [0, 0, 1, 1], [], []>} : vector<4x200xbf16>, vector<200x8xbf16>, vector<4x8xf32> -> vector<4x8xf32>
      %578 = arith.addf %577, %12 : vector<4x8xf32>
      %cst_179 = arith.constant 2.000000e+01 : f32
      %579 = vector.broadcast %cst_179 : f32 to vector<4x8xf32>
      %580 = arith.cmpf ogt, %578, %579 : vector<4x8xf32>
      %cst_180 = arith.constant 2.000000e+01 : f32
      %581 = vector.broadcast %cst_180 : f32 to vector<4x8xf32>
      %582 = arith.minimumf %578, %581 : vector<4x8xf32>
      %583 = math.exp %582 : vector<4x8xf32>
      %584 = math.log1p %583 : vector<4x8xf32>
      %585 = arith.select %580, %578, %584 : vector<4x8xi1>, vector<4x8xf32>
      %586 = math.sqrt %585 : vector<4x8xf32>
      %587 = arith.mulf %586, %558 : vector<4x8xf32>
      %588 = arith.addf %576, %587 : vector<4x8xf32>
      %cst_181 = arith.constant 2.000000e+01 : f32
      %589 = vector.broadcast %cst_181 : f32 to vector<4x8xf32>
      %590 = arith.cmpf ogt, %588, %589 : vector<4x8xf32>
      %cst_182 = arith.constant 2.000000e+01 : f32
      %591 = vector.broadcast %cst_182 : f32 to vector<4x8xf32>
      %592 = arith.minimumf %588, %591 : vector<4x8xf32>
      %593 = math.exp %592 : vector<4x8xf32>
      %594 = math.log1p %593 : vector<4x8xf32>
      %595 = arith.select %590, %588, %594 : vector<4x8xi1>, vector<4x8xf32>
      %c0_183 = arith.constant 0 : index
      %c0_184 = arith.constant 0 : index
      %596 = vector.load %arg13[%c0_183, %c0_184] : memref<4x8xf32, #tpu.memory_space<vmem>>, vector<4x8xf32>
      tpu.vector_store %arg13[%c0_183, %c0_184], %595 {strides = array<i32>} : memref<4x8xf32, #tpu.memory_space<vmem>>, vector<4x8xf32>,
    } else {
    }
    %c0_14 = arith.constant 0 : index
    %c0_15 = arith.constant 0 : index
    %16 = vector.load %arg13[%c0_14, %c0_15] : memref<4x8xf32, #tpu.memory_space<vmem>>, vector<4x8xf32>
    %c0_16 = arith.constant 0 : index
    %c0_17 = arith.constant 0 : index
    %17 = vector.load %arg14[%c0_16, %c0_17] : memref<4x128xf32, #tpu.memory_space<vmem>>, vector<4x128xf32>
    %c0_18 = arith.constant 0 : index
    %c0_19 = arith.constant 0 : index
    %18 = vector.load %arg15[%c0_18, %c0_19] : memref<4x32xf32, #tpu.memory_space<vmem>>, vector<4x32xf32>
    %c0_i32_20 = arith.constant 0 : i32
    %19 = arith.truncf %16 : vector<4x8xf32> to vector<4x8xbf16>
    %cst = arith.constant dense<0.000000e+00> : vector<4x128xf32>
    %20 = tpu.matmul %19, %0, %cst {dimension_numbers = #tpu.dot_dimension_numbers<[1], [0], [0], [1], [0, 0, 1, 1], [], []>} : vector<4x8xbf16>, vector<8x128xbf16>, vector<4x128xf32> -> vector<4x128xf32>
    %21 = arith.addf %20, %17 : vector<4x128xf32>
    %22 = arith.negf %21 : vector<4x128xf32>
    %23 = math.exp %22 : vector<4x128xf32>
    %cst_21 = arith.constant 1.000000e+00 : f32
    %24 = vector.broadcast %cst_21 : f32 to vector<4x128xf32>
    %25 = arith.addf %24, %23 : vector<4x128xf32>
    %26 = arith.divf %24, %25 : vector<4x128xf32>
    %27 = math.tanh %21 : vector<4x128xf32>
    %28 = vector.extract_strided_slice %26 {offsets = [0, 0], sizes = [4, 32], strides = [1, 1]} : vector<4x128xf32> to vector<4x32xf32>
    %29 = vector.extract_strided_slice %26 {offsets = [0, 32], sizes = [4, 32], strides = [1, 1]} : vector<4x128xf32> to vector<4x32xf32>
    %30 = vector.extract_strided_slice %27 {offsets = [0, 64], sizes = [4, 32], strides = [1, 1]} : vector<4x128xf32> to vector<4x32xf32>
    %31 = vector.extract_strided_slice %26 {offsets = [0, 96], sizes = [4, 32], strides = [1, 1]} : vector<4x128xf32> to vector<4x32xf32>
    %32 = arith.mulf %29, %18 : vector<4x32xf32>
    %33 = arith.mulf %28, %30 : vector<4x32xf32>
    %34 = arith.addf %32, %33 : vector<4x32xf32>
    %35 = math.tanh %34 : vector<4x32xf32>
    %36 = arith.mulf %31, %35 : vector<4x32xf32>
    %37 = arith.truncf %36 : vector<4x32xf32> to vector<4x32xbf16>
    %cst_22 = arith.constant dense<0.000000e+00> : vector<4x328xf32>
    %38 = tpu.matmul %37, %1, %cst_22 {dimension_numbers = #tpu.dot_dimension_numbers<[1], [0], [0], [1], [0, 0, 1, 1], [], []>} : vector<4x32xbf16>, vector<32x328xbf16>, vector<4x328xf32> -> vector<4x328xf32>
    %39 = vector.extract_strided_slice %38 {offsets = [0, 128], sizes = [4, 200], strides = [1, 1]} : vector<4x328xf32> to vector<4x200xf32>
    %40 = arith.index_cast %c0_i32_20 : i32 to index
    %c0_23 = arith.constant 0 : index
    %c0_24 = arith.constant 0 : index
    %41 = vector.load %arg4[%40, %c0_23, %c0_24] : memref<8x4x8xf32, #tpu.memory_space<vmem>>, vector<1x4x8xf32>
    %42 = vector.shape_cast %41 : vector<1x4x8xf32> to vector<4x8xf32>
    %43 = arith.addf %39, %6 : vector<4x200xf32>
    %cst_25 = arith.constant 2.000000e+01 : f32
    %44 = vector.broadcast %cst_25 : f32 to vector<4x200xf32>
    %45 = arith.cmpf ogt, %43, %44 : vector<4x200xf32>
    %cst_26 = arith.constant 2.000000e+01 : f32
    %46 = vector.broadcast %cst_26 : f32 to vector<4x200xf32>
    %47 = arith.minimumf %43, %46 : vector<4x200xf32>
    %48 = math.exp %47 : vector<4x200xf32>
    %49 = math.log1p %48 : vector<4x200xf32>
    %50 = arith.select %45, %43, %49 : vector<4x200xi1>, vector<4x200xf32>
    %51 = arith.truncf %50 : vector<4x200xf32> to vector<4x200xbf16>
    %cst_27 = arith.constant dense<0.000000e+00> : vector<4x8xf32>
    %52 = tpu.matmul %51, %2, %cst_27 {dimension_numbers = #tpu.dot_dimension_numbers<[1], [0], [0], [1], [0, 0, 1, 1], [], []>} : vector<4x200xbf16>, vector<200x8xbf16>, vector<4x8xf32> -> vector<4x8xf32>
    %53 = arith.addf %52, %9 : vector<4x8xf32>
    %cst_28 = arith.constant 2.000000e+01 : f32
    %54 = vector.broadcast %cst_28 : f32 to vector<4x8xf32>
    %55 = arith.cmpf ogt, %53, %54 : vector<4x8xf32>
    %cst_29 = arith.constant 2.000000e+01 : f32
    %56 = vector.broadcast %cst_29 : f32 to vector<4x8xf32>
    %57 = arith.minimumf %53, %56 : vector<4x8xf32>
    %58 = math.exp %57 : vector<4x8xf32>
    %59 = math.log1p %58 : vector<4x8xf32>
    %60 = arith.select %55, %53, %59 : vector<4x8xi1>, vector<4x8xf32>
    %cst_30 = arith.constant dense<0.000000e+00> : vector<4x8xf32>
    %61 = tpu.matmul %51, %3, %cst_30 {dimension_numbers = #tpu.dot_dimension_numbers<[1], [0], [0], [1], [0, 0, 1, 1], [], []>} : vector<4x200xbf16>, vector<200x8xbf16>, vector<4x8xf32> -> vector<4x8xf32>
    %62 = arith.addf %61, %12 : vector<4x8xf32>
    %cst_31 = arith.constant 2.000000e+01 : f32
    %63 = vector.broadcast %cst_31 : f32 to vector<4x8xf32>
    %64 = arith.cmpf ogt, %62, %63 : vector<4x8xf32>
    %cst_32 = arith.constant 2.000000e+01 : f32
    %65 = vector.broadcast %cst_32 : f32 to vector<4x8xf32>
    %66 = arith.minimumf %62, %65 : vector<4x8xf32>
    %67 = math.exp %66 : vector<4x8xf32>
    %68 = math.log1p %67 : vector<4x8xf32>
    %69 = arith.select %64, %62, %68 : vector<4x8xi1>, vector<4x8xf32>
    %70 = math.sqrt %69 : vector<4x8xf32>
    %71 = arith.mulf %70, %42 : vector<4x8xf32>
    %72 = arith.addf %60, %71 : vector<4x8xf32>
    %cst_33 = arith.constant 2.000000e+01 : f32
    %73 = vector.broadcast %cst_33 : f32 to vector<4x8xf32>
    %74 = arith.cmpf ogt, %72, %73 : vector<4x8xf32>
    %cst_34 = arith.constant 2.000000e+01 : f32
    %75 = vector.broadcast %cst_34 : f32 to vector<4x8xf32>
    %76 = arith.minimumf %72, %75 : vector<4x8xf32>
    %77 = math.exp %76 : vector<4x8xf32>
    %78 = math.log1p %77 : vector<4x8xf32>
    %79 = arith.select %74, %72, %78 : vector<4x8xi1>, vector<4x8xf32>
    %80 = arith.index_cast %c0_i32_20 : i32 to index
    %c0_35 = arith.constant 0 : index
    %c0_36 = arith.constant 0 : index
    %81 = vector.load %arg12[%80, %c0_35, %c0_36] : memref<8x4x8xf32, #tpu.memory_space<vmem>>, vector<1x4x8xf32>
    %82 = vector.shape_cast %81 : vector<1x4x8xf32> to vector<4x8xf32>
    %83 = vector.shape_cast %79 : vector<4x8xf32> to vector<1x4x8xf32>
    tpu.vector_store %arg12[%80, %c0_35, %c0_36], %83 {strides = array<i32>} : memref<8x4x8xf32, #tpu.memory_space<vmem>>, vector<1x4x8xf32>,
    %84 = vector.extract_strided_slice %38 {offsets = [0, 0], sizes = [4, 128], strides = [1, 1]} : vector<4x328xf32> to vector<4x128xf32>
    %c1_i32 = arith.constant 1 : i32
    %85 = arith.truncf %79 : vector<4x8xf32> to vector<4x8xbf16>
    %cst_37 = arith.constant dense<0.000000e+00> : vector<4x128xf32>
    %86 = tpu.matmul %85, %0, %cst_37 {dimension_numbers = #tpu.dot_dimension_numbers<[1], [0], [0], [1], [0, 0, 1, 1], [], []>} : vector<4x8xbf16>, vector<8x128xbf16>, vector<4x128xf32> -> vector<4x128xf32>
    %87 = arith.addf %86, %84 : vector<4x128xf32>
    %88 = arith.negf %87 : vector<4x128xf32>
    %89 = math.exp %88 : vector<4x128xf32>
    %cst_38 = arith.constant 1.000000e+00 : f32
    %90 = vector.broadcast %cst_38 : f32 to vector<4x128xf32>
    %91 = arith.addf %90, %89 : vector<4x128xf32>
    %92 = arith.divf %90, %91 : vector<4x128xf32>
    %93 = math.tanh %87 : vector<4x128xf32>
    %94 = vector.extract_strided_slice %92 {offsets = [0, 0], sizes = [4, 32], strides = [1, 1]} : vector<4x128xf32> to vector<4x32xf32>
    %95 = vector.extract_strided_slice %92 {offsets = [0, 32], sizes = [4, 32], strides = [1, 1]} : vector<4x128xf32> to vector<4x32xf32>
    %96 = vector.extract_strided_slice %93 {offsets = [0, 64], sizes = [4, 32], strides = [1, 1]} : vector<4x128xf32> to vector<4x32xf32>
    %97 = vector.extract_strided_slice %92 {offsets = [0, 96], sizes = [4, 32], strides = [1, 1]} : vector<4x128xf32> to vector<4x32xf32>
    %98 = arith.mulf %95, %34 : vector<4x32xf32>
    %99 = arith.mulf %94, %96 : vector<4x32xf32>
    %100 = arith.addf %98, %99 : vector<4x32xf32>
    %101 = math.tanh %100 : vector<4x32xf32>
    %102 = arith.mulf %97, %101 : vector<4x32xf32>
    %103 = arith.truncf %102 : vector<4x32xf32> to vector<4x32xbf16>
    %cst_39 = arith.constant dense<0.000000e+00> : vector<4x328xf32>
    %104 = tpu.matmul %103, %1, %cst_39 {dimension_numbers = #tpu.dot_dimension_numbers<[1], [0], [0], [1], [0, 0, 1, 1], [], []>} : vector<4x32xbf16>, vector<32x328xbf16>, vector<4x328xf32> -> vector<4x328xf32>
    %105 = vector.extract_strided_slice %104 {offsets = [0, 128], sizes = [4, 200], strides = [1, 1]} : vector<4x328xf32> to vector<4x200xf32>
    %106 = arith.index_cast %c1_i32 : i32 to index
    %c0_40 = arith.constant 0 : index
    %c0_41 = arith.constant 0 : index
    %107 = vector.load %arg4[%106, %c0_40, %c0_41] : memref<8x4x8xf32, #tpu.memory_space<vmem>>, vector<1x4x8xf32>
    %108 = vector.shape_cast %107 : vector<1x4x8xf32> to vector<4x8xf32>
    %109 = arith.addf %105, %6 : vector<4x200xf32>
    %cst_42 = arith.constant 2.000000e+01 : f32
    %110 = vector.broadcast %cst_42 : f32 to vector<4x200xf32>
    %111 = arith.cmpf ogt, %109, %110 : vector<4x200xf32>
    %cst_43 = arith.constant 2.000000e+01 : f32
    %112 = vector.broadcast %cst_43 : f32 to vector<4x200xf32>
    %113 = arith.minimumf %109, %112 : vector<4x200xf32>
    %114 = math.exp %113 : vector<4x200xf32>
    %115 = math.log1p %114 : vector<4x200xf32>
    %116 = arith.select %111, %109, %115 : vector<4x200xi1>, vector<4x200xf32>
    %117 = arith.truncf %116 : vector<4x200xf32> to vector<4x200xbf16>
    %cst_44 = arith.constant dense<0.000000e+00> : vector<4x8xf32>
    %118 = tpu.matmul %117, %2, %cst_44 {dimension_numbers = #tpu.dot_dimension_numbers<[1], [0], [0], [1], [0, 0, 1, 1], [], []>} : vector<4x200xbf16>, vector<200x8xbf16>, vector<4x8xf32> -> vector<4x8xf32>
    %119 = arith.addf %118, %9 : vector<4x8xf32>
    %cst_45 = arith.constant 2.000000e+01 : f32
    %120 = vector.broadcast %cst_45 : f32 to vector<4x8xf32>
    %121 = arith.cmpf ogt, %119, %120 : vector<4x8xf32>
    %cst_46 = arith.constant 2.000000e+01 : f32
    %122 = vector.broadcast %cst_46 : f32 to vector<4x8xf32>
    %123 = arith.minimumf %119, %122 : vector<4x8xf32>
    %124 = math.exp %123 : vector<4x8xf32>
    %125 = math.log1p %124 : vector<4x8xf32>
    %126 = arith.select %121, %119, %125 : vector<4x8xi1>, vector<4x8xf32>
    %cst_47 = arith.constant dense<0.000000e+00> : vector<4x8xf32>
    %127 = tpu.matmul %117, %3, %cst_47 {dimension_numbers = #tpu.dot_dimension_numbers<[1], [0], [0], [1], [0, 0, 1, 1], [], []>} : vector<4x200xbf16>, vector<200x8xbf16>, vector<4x8xf32> -> vector<4x8xf32>
    %128 = arith.addf %127, %12 : vector<4x8xf32>
    %cst_48 = arith.constant 2.000000e+01 : f32
    %129 = vector.broadcast %cst_48 : f32 to vector<4x8xf32>
    %130 = arith.cmpf ogt, %128, %129 : vector<4x8xf32>
    %cst_49 = arith.constant 2.000000e+01 : f32
    %131 = vector.broadcast %cst_49 : f32 to vector<4x8xf32>
    %132 = arith.minimumf %128, %131 : vector<4x8xf32>
    %133 = math.exp %132 : vector<4x8xf32>
    %134 = math.log1p %133 : vector<4x8xf32>
    %135 = arith.select %130, %128, %134 : vector<4x8xi1>, vector<4x8xf32>
    %136 = math.sqrt %135 : vector<4x8xf32>
    %137 = arith.mulf %136, %108 : vector<4x8xf32>
    %138 = arith.addf %126, %137 : vector<4x8xf32>
    %cst_50 = arith.constant 2.000000e+01 : f32
    %139 = vector.broadcast %cst_50 : f32 to vector<4x8xf32>
    %140 = arith.cmpf ogt, %138, %139 : vector<4x8xf32>
    %cst_51 = arith.constant 2.000000e+01 : f32
    %141 = vector.broadcast %cst_51 : f32 to vector<4x8xf32>
    %142 = arith.minimumf %138, %141 : vector<4x8xf32>
    %143 = math.exp %142 : vector<4x8xf32>
    %144 = math.log1p %143 : vector<4x8xf32>
    %145 = arith.select %140, %138, %144 : vector<4x8xi1>, vector<4x8xf32>
    %146 = arith.index_cast %c1_i32 : i32 to index
    %c0_52 = arith.constant 0 : index
    %c0_53 = arith.constant 0 : index
    %147 = vector.load %arg12[%146, %c0_52, %c0_53] : memref<8x4x8xf32, #tpu.memory_space<vmem>>, vector<1x4x8xf32>
    %148 = vector.shape_cast %147 : vector<1x4x8xf32> to vector<4x8xf32>
    %149 = vector.shape_cast %145 : vector<4x8xf32> to vector<1x4x8xf32>
    tpu.vector_store %arg12[%146, %c0_52, %c0_53], %149 {strides = array<i32>} : memref<8x4x8xf32, #tpu.memory_space<vmem>>, vector<1x4x8xf32>,
    %150 = vector.extract_strided_slice %104 {offsets = [0, 0], sizes = [4, 128], strides = [1, 1]} : vector<4x328xf32> to vector<4x128xf32>
    %c2_i32 = arith.constant 2 : i32
    %151 = arith.truncf %145 : vector<4x8xf32> to vector<4x8xbf16>
    %cst_54 = arith.constant dense<0.000000e+00> : vector<4x128xf32>
    %152 = tpu.matmul %151, %0, %cst_54 {dimension_numbers = #tpu.dot_dimension_numbers<[1], [0], [0], [1], [0, 0, 1, 1], [], []>} : vector<4x8xbf16>, vector<8x128xbf16>, vector<4x128xf32> -> vector<4x128xf32>
    %153 = arith.addf %152, %150 : vector<4x128xf32>
    %154 = arith.negf %153 : vector<4x128xf32>
    %155 = math.exp %154 : vector<4x128xf32>
    %cst_55 = arith.constant 1.000000e+00 : f32
    %156 = vector.broadcast %cst_55 : f32 to vector<4x128xf32>
    %157 = arith.addf %156, %155 : vector<4x128xf32>
    %158 = arith.divf %156, %157 : vector<4x128xf32>
    %159 = math.tanh %153 : vector<4x128xf32>
    %160 = vector.extract_strided_slice %158 {offsets = [0, 0], sizes = [4, 32], strides = [1, 1]} : vector<4x128xf32> to vector<4x32xf32>
    %161 = vector.extract_strided_slice %158 {offsets = [0, 32], sizes = [4, 32], strides = [1, 1]} : vector<4x128xf32> to vector<4x32xf32>
    %162 = vector.extract_strided_slice %159 {offsets = [0, 64], sizes = [4, 32], strides = [1, 1]} : vector<4x128xf32> to vector<4x32xf32>
    %163 = vector.extract_strided_slice %158 {offsets = [0, 96], sizes = [4, 32], strides = [1, 1]} : vector<4x128xf32> to vector<4x32xf32>
    %164 = arith.mulf %161, %100 : vector<4x32xf32>
    %165 = arith.mulf %160, %162 : vector<4x32xf32>
    %166 = arith.addf %164, %165 : vector<4x32xf32>
    %167 = math.tanh %166 : vector<4x32xf32>
    %168 = arith.mulf %163, %167 : vector<4x32xf32>
    %169 = arith.truncf %168 : vector<4x32xf32> to vector<4x32xbf16>
    %cst_56 = arith.constant dense<0.000000e+00> : vector<4x328xf32>
    %170 = tpu.matmul %169, %1, %cst_56 {dimension_numbers = #tpu.dot_dimension_numbers<[1], [0], [0], [1], [0, 0, 1, 1], [], []>} : vector<4x32xbf16>, vector<32x328xbf16>, vector<4x328xf32> -> vector<4x328xf32>
    %171 = vector.extract_strided_slice %170 {offsets = [0, 128], sizes = [4, 200], strides = [1, 1]} : vector<4x328xf32> to vector<4x200xf32>
    %172 = arith.index_cast %c2_i32 : i32 to index
    %c0_57 = arith.constant 0 : index
    %c0_58 = arith.constant 0 : index
    %173 = vector.load %arg4[%172, %c0_57, %c0_58] : memref<8x4x8xf32, #tpu.memory_space<vmem>>, vector<1x4x8xf32>
    %174 = vector.shape_cast %173 : vector<1x4x8xf32> to vector<4x8xf32>
    %175 = arith.addf %171, %6 : vector<4x200xf32>
    %cst_59 = arith.constant 2.000000e+01 : f32
    %176 = vector.broadcast %cst_59 : f32 to vector<4x200xf32>
    %177 = arith.cmpf ogt, %175, %176 : vector<4x200xf32>
    %cst_60 = arith.constant 2.000000e+01 : f32
    %178 = vector.broadcast %cst_60 : f32 to vector<4x200xf32>
    %179 = arith.minimumf %175, %178 : vector<4x200xf32>
    %180 = math.exp %179 : vector<4x200xf32>
    %181 = math.log1p %180 : vector<4x200xf32>
    %182 = arith.select %177, %175, %181 : vector<4x200xi1>, vector<4x200xf32>
    %183 = arith.truncf %182 : vector<4x200xf32> to vector<4x200xbf16>
    %cst_61 = arith.constant dense<0.000000e+00> : vector<4x8xf32>
    %184 = tpu.matmul %183, %2, %cst_61 {dimension_numbers = #tpu.dot_dimension_numbers<[1], [0], [0], [1], [0, 0, 1, 1], [], []>} : vector<4x200xbf16>, vector<200x8xbf16>, vector<4x8xf32> -> vector<4x8xf32>
    %185 = arith.addf %184, %9 : vector<4x8xf32>
    %cst_62 = arith.constant 2.000000e+01 : f32
    %186 = vector.broadcast %cst_62 : f32 to vector<4x8xf32>
    %187 = arith.cmpf ogt, %185, %186 : vector<4x8xf32>
    %cst_63 = arith.constant 2.000000e+01 : f32
    %188 = vector.broadcast %cst_63 : f32 to vector<4x8xf32>
    %189 = arith.minimumf %185, %188 : vector<4x8xf32>
    %190 = math.exp %189 : vector<4x8xf32>
    %191 = math.log1p %190 : vector<4x8xf32>
    %192 = arith.select %187, %185, %191 : vector<4x8xi1>, vector<4x8xf32>
    %cst_64 = arith.constant dense<0.000000e+00> : vector<4x8xf32>
    %193 = tpu.matmul %183, %3, %cst_64 {dimension_numbers = #tpu.dot_dimension_numbers<[1], [0], [0], [1], [0, 0, 1, 1], [], []>} : vector<4x200xbf16>, vector<200x8xbf16>, vector<4x8xf32> -> vector<4x8xf32>
    %194 = arith.addf %193, %12 : vector<4x8xf32>
    %cst_65 = arith.constant 2.000000e+01 : f32
    %195 = vector.broadcast %cst_65 : f32 to vector<4x8xf32>
    %196 = arith.cmpf ogt, %194, %195 : vector<4x8xf32>
    %cst_66 = arith.constant 2.000000e+01 : f32
    %197 = vector.broadcast %cst_66 : f32 to vector<4x8xf32>
    %198 = arith.minimumf %194, %197 : vector<4x8xf32>
    %199 = math.exp %198 : vector<4x8xf32>
    %200 = math.log1p %199 : vector<4x8xf32>
    %201 = arith.select %196, %194, %200 : vector<4x8xi1>, vector<4x8xf32>
    %202 = math.sqrt %201 : vector<4x8xf32>
    %203 = arith.mulf %202, %174 : vector<4x8xf32>
    %204 = arith.addf %192, %203 : vector<4x8xf32>
    %cst_67 = arith.constant 2.000000e+01 : f32
    %205 = vector.broadcast %cst_67 : f32 to vector<4x8xf32>
    %206 = arith.cmpf ogt, %204, %205 : vector<4x8xf32>
    %cst_68 = arith.constant 2.000000e+01 : f32
    %207 = vector.broadcast %cst_68 : f32 to vector<4x8xf32>
    %208 = arith.minimumf %204, %207 : vector<4x8xf32>
    %209 = math.exp %208 : vector<4x8xf32>
    %210 = math.log1p %209 : vector<4x8xf32>
    %211 = arith.select %206, %204, %210 : vector<4x8xi1>, vector<4x8xf32>
    %212 = arith.index_cast %c2_i32 : i32 to index
    %c0_69 = arith.constant 0 : index
    %c0_70 = arith.constant 0 : index
    %213 = vector.load %arg12[%212, %c0_69, %c0_70] : memref<8x4x8xf32, #tpu.memory_space<vmem>>, vector<1x4x8xf32>
    %214 = vector.shape_cast %213 : vector<1x4x8xf32> to vector<4x8xf32>
    %215 = vector.shape_cast %211 : vector<4x8xf32> to vector<1x4x8xf32>
    tpu.vector_store %arg12[%212, %c0_69, %c0_70], %215 {strides = array<i32>} : memref<8x4x8xf32, #tpu.memory_space<vmem>>, vector<1x4x8xf32>,
    %216 = vector.extract_strided_slice %170 {offsets = [0, 0], sizes = [4, 128], strides = [1, 1]} : vector<4x328xf32> to vector<4x128xf32>
    %c3_i32 = arith.constant 3 : i32
    %217 = arith.truncf %211 : vector<4x8xf32> to vector<4x8xbf16>
    %cst_71 = arith.constant dense<0.000000e+00> : vector<4x128xf32>
    %218 = tpu.matmul %217, %0, %cst_71 {dimension_numbers = #tpu.dot_dimension_numbers<[1], [0], [0], [1], [0, 0, 1, 1], [], []>} : vector<4x8xbf16>, vector<8x128xbf16>, vector<4x128xf32> -> vector<4x128xf32>
    %219 = arith.addf %218, %216 : vector<4x128xf32>
    %220 = arith.negf %219 : vector<4x128xf32>
    %221 = math.exp %220 : vector<4x128xf32>
    %cst_72 = arith.constant 1.000000e+00 : f32
    %222 = vector.broadcast %cst_72 : f32 to vector<4x128xf32>
    %223 = arith.addf %222, %221 : vector<4x128xf32>
    %224 = arith.divf %222, %223 : vector<4x128xf32>
    %225 = math.tanh %219 : vector<4x128xf32>
    %226 = vector.extract_strided_slice %224 {offsets = [0, 0], sizes = [4, 32], strides = [1, 1]} : vector<4x128xf32> to vector<4x32xf32>
    %227 = vector.extract_strided_slice %224 {offsets = [0, 32], sizes = [4, 32], strides = [1, 1]} : vector<4x128xf32> to vector<4x32xf32>
    %228 = vector.extract_strided_slice %225 {offsets = [0, 64], sizes = [4, 32], strides = [1, 1]} : vector<4x128xf32> to vector<4x32xf32>
    %229 = vector.extract_strided_slice %224 {offsets = [0, 96], sizes = [4, 32], strides = [1, 1]} : vector<4x128xf32> to vector<4x32xf32>
    %230 = arith.mulf %227, %166 : vector<4x32xf32>
    %231 = arith.mulf %226, %228 : vector<4x32xf32>
    %232 = arith.addf %230, %231 : vector<4x32xf32>
    %233 = math.tanh %232 : vector<4x32xf32>
    %234 = arith.mulf %229, %233 : vector<4x32xf32>
    %235 = arith.truncf %234 : vector<4x32xf32> to vector<4x32xbf16>
    %cst_73 = arith.constant dense<0.000000e+00> : vector<4x328xf32>
    %236 = tpu.matmul %235, %1, %cst_73 {dimension_numbers = #tpu.dot_dimension_numbers<[1], [0], [0], [1], [0, 0, 1, 1], [], []>} : vector<4x32xbf16>, vector<32x328xbf16>, vector<4x328xf32> -> vector<4x328xf32>
    %237 = vector.extract_strided_slice %236 {offsets = [0, 128], sizes = [4, 200], strides = [1, 1]} : vector<4x328xf32> to vector<4x200xf32>
    %238 = arith.index_cast %c3_i32 : i32 to index
    %c0_74 = arith.constant 0 : index
    %c0_75 = arith.constant 0 : index
    %239 = vector.load %arg4[%238, %c0_74, %c0_75] : memref<8x4x8xf32, #tpu.memory_space<vmem>>, vector<1x4x8xf32>
    %240 = vector.shape_cast %239 : vector<1x4x8xf32> to vector<4x8xf32>
    %241 = arith.addf %237, %6 : vector<4x200xf32>
    %cst_76 = arith.constant 2.000000e+01 : f32
    %242 = vector.broadcast %cst_76 : f32 to vector<4x200xf32>
    %243 = arith.cmpf ogt, %241, %242 : vector<4x200xf32>
    %cst_77 = arith.constant 2.000000e+01 : f32
    %244 = vector.broadcast %cst_77 : f32 to vector<4x200xf32>
    %245 = arith.minimumf %241, %244 : vector<4x200xf32>
    %246 = math.exp %245 : vector<4x200xf32>
    %247 = math.log1p %246 : vector<4x200xf32>
    %248 = arith.select %243, %241, %247 : vector<4x200xi1>, vector<4x200xf32>
    %249 = arith.truncf %248 : vector<4x200xf32> to vector<4x200xbf16>
    %cst_78 = arith.constant dense<0.000000e+00> : vector<4x8xf32>
    %250 = tpu.matmul %249, %2, %cst_78 {dimension_numbers = #tpu.dot_dimension_numbers<[1], [0], [0], [1], [0, 0, 1, 1], [], []>} : vector<4x200xbf16>, vector<200x8xbf16>, vector<4x8xf32> -> vector<4x8xf32>
    %251 = arith.addf %250, %9 : vector<4x8xf32>
    %cst_79 = arith.constant 2.000000e+01 : f32
    %252 = vector.broadcast %cst_79 : f32 to vector<4x8xf32>
    %253 = arith.cmpf ogt, %251, %252 : vector<4x8xf32>
    %cst_80 = arith.constant 2.000000e+01 : f32
    %254 = vector.broadcast %cst_80 : f32 to vector<4x8xf32>
    %255 = arith.minimumf %251, %254 : vector<4x8xf32>
    %256 = math.exp %255 : vector<4x8xf32>
    %257 = math.log1p %256 : vector<4x8xf32>
    %258 = arith.select %253, %251, %257 : vector<4x8xi1>, vector<4x8xf32>
    %cst_81 = arith.constant dense<0.000000e+00> : vector<4x8xf32>
    %259 = tpu.matmul %249, %3, %cst_81 {dimension_numbers = #tpu.dot_dimension_numbers<[1], [0], [0], [1], [0, 0, 1, 1], [], []>} : vector<4x200xbf16>, vector<200x8xbf16>, vector<4x8xf32> -> vector<4x8xf32>
    %260 = arith.addf %259, %12 : vector<4x8xf32>
    %cst_82 = arith.constant 2.000000e+01 : f32
    %261 = vector.broadcast %cst_82 : f32 to vector<4x8xf32>
    %262 = arith.cmpf ogt, %260, %261 : vector<4x8xf32>
    %cst_83 = arith.constant 2.000000e+01 : f32
    %263 = vector.broadcast %cst_83 : f32 to vector<4x8xf32>
    %264 = arith.minimumf %260, %263 : vector<4x8xf32>
    %265 = math.exp %264 : vector<4x8xf32>
    %266 = math.log1p %265 : vector<4x8xf32>
    %267 = arith.select %262, %260, %266 : vector<4x8xi1>, vector<4x8xf32>
    %268 = math.sqrt %267 : vector<4x8xf32>
    %269 = arith.mulf %268, %240 : vector<4x8xf32>
    %270 = arith.addf %258, %269 : vector<4x8xf32>
    %cst_84 = arith.constant 2.000000e+01 : f32
    %271 = vector.broadcast %cst_84 : f32 to vector<4x8xf32>
    %272 = arith.cmpf ogt, %270, %271 : vector<4x8xf32>
    %cst_85 = arith.constant 2.000000e+01 : f32
    %273 = vector.broadcast %cst_85 : f32 to vector<4x8xf32>
    %274 = arith.minimumf %270, %273 : vector<4x8xf32>
    %275 = math.exp %274 : vector<4x8xf32>
    %276 = math.log1p %275 : vector<4x8xf32>
    %277 = arith.select %272, %270, %276 : vector<4x8xi1>, vector<4x8xf32>
    %278 = arith.index_cast %c3_i32 : i32 to index
    %c0_86 = arith.constant 0 : index
    %c0_87 = arith.constant 0 : index
    %279 = vector.load %arg12[%278, %c0_86, %c0_87] : memref<8x4x8xf32, #tpu.memory_space<vmem>>, vector<1x4x8xf32>
    %280 = vector.shape_cast %279 : vector<1x4x8xf32> to vector<4x8xf32>
    %281 = vector.shape_cast %277 : vector<4x8xf32> to vector<1x4x8xf32>
    tpu.vector_store %arg12[%278, %c0_86, %c0_87], %281 {strides = array<i32>} : memref<8x4x8xf32, #tpu.memory_space<vmem>>, vector<1x4x8xf32>,
    %282 = vector.extract_strided_slice %236 {offsets = [0, 0], sizes = [4, 128], strides = [1, 1]} : vector<4x328xf32> to vector<4x128xf32>
    %c4_i32 = arith.constant 4 : i32
    %283 = arith.truncf %277 : vector<4x8xf32> to vector<4x8xbf16>
    %cst_88 = arith.constant dense<0.000000e+00> : vector<4x128xf32>
    %284 = tpu.matmul %283, %0, %cst_88 {dimension_numbers = #tpu.dot_dimension_numbers<[1], [0], [0], [1], [0, 0, 1, 1], [], []>} : vector<4x8xbf16>, vector<8x128xbf16>, vector<4x128xf32> -> vector<4x128xf32>
    %285 = arith.addf %284, %282 : vector<4x128xf32>
    %286 = arith.negf %285 : vector<4x128xf32>
    %287 = math.exp %286 : vector<4x128xf32>
    %cst_89 = arith.constant 1.000000e+00 : f32
    %288 = vector.broadcast %cst_89 : f32 to vector<4x128xf32>
    %289 = arith.addf %288, %287 : vector<4x128xf32>
    %290 = arith.divf %288, %289 : vector<4x128xf32>
    %291 = math.tanh %285 : vector<4x128xf32>
    %292 = vector.extract_strided_slice %290 {offsets = [0, 0], sizes = [4, 32], strides = [1, 1]} : vector<4x128xf32> to vector<4x32xf32>
    %293 = vector.extract_strided_slice %290 {offsets = [0, 32], sizes = [4, 32], strides = [1, 1]} : vector<4x128xf32> to vector<4x32xf32>
    %294 = vector.extract_strided_slice %291 {offsets = [0, 64], sizes = [4, 32], strides = [1, 1]} : vector<4x128xf32> to vector<4x32xf32>
    %295 = vector.extract_strided_slice %290 {offsets = [0, 96], sizes = [4, 32], strides = [1, 1]} : vector<4x128xf32> to vector<4x32xf32>
    %296 = arith.mulf %293, %232 : vector<4x32xf32>
    %297 = arith.mulf %292, %294 : vector<4x32xf32>
    %298 = arith.addf %296, %297 : vector<4x32xf32>
    %299 = math.tanh %298 : vector<4x32xf32>
    %300 = arith.mulf %295, %299 : vector<4x32xf32>
    %301 = arith.truncf %300 : vector<4x32xf32> to vector<4x32xbf16>
    %cst_90 = arith.constant dense<0.000000e+00> : vector<4x328xf32>
    %302 = tpu.matmul %301, %1, %cst_90 {dimension_numbers = #tpu.dot_dimension_numbers<[1], [0], [0], [1], [0, 0, 1, 1], [], []>} : vector<4x32xbf16>, vector<32x328xbf16>, vector<4x328xf32> -> vector<4x328xf32>
    %303 = vector.extract_strided_slice %302 {offsets = [0, 128], sizes = [4, 200], strides = [1, 1]} : vector<4x328xf32> to vector<4x200xf32>
    %304 = arith.index_cast %c4_i32 : i32 to index
    %c0_91 = arith.constant 0 : index
    %c0_92 = arith.constant 0 : index
    %305 = vector.load %arg4[%304, %c0_91, %c0_92] : memref<8x4x8xf32, #tpu.memory_space<vmem>>, vector<1x4x8xf32>
    %306 = vector.shape_cast %305 : vector<1x4x8xf32> to vector<4x8xf32>
    %307 = arith.addf %303, %6 : vector<4x200xf32>
    %cst_93 = arith.constant 2.000000e+01 : f32
    %308 = vector.broadcast %cst_93 : f32 to vector<4x200xf32>
    %309 = arith.cmpf ogt, %307, %308 : vector<4x200xf32>
    %cst_94 = arith.constant 2.000000e+01 : f32
    %310 = vector.broadcast %cst_94 : f32 to vector<4x200xf32>
    %311 = arith.minimumf %307, %310 : vector<4x200xf32>
    %312 = math.exp %311 : vector<4x200xf32>
    %313 = math.log1p %312 : vector<4x200xf32>
    %314 = arith.select %309, %307, %313 : vector<4x200xi1>, vector<4x200xf32>
    %315 = arith.truncf %314 : vector<4x200xf32> to vector<4x200xbf16>
    %cst_95 = arith.constant dense<0.000000e+00> : vector<4x8xf32>
    %316 = tpu.matmul %315, %2, %cst_95 {dimension_numbers = #tpu.dot_dimension_numbers<[1], [0], [0], [1], [0, 0, 1, 1], [], []>} : vector<4x200xbf16>, vector<200x8xbf16>, vector<4x8xf32> -> vector<4x8xf32>
    %317 = arith.addf %316, %9 : vector<4x8xf32>
    %cst_96 = arith.constant 2.000000e+01 : f32
    %318 = vector.broadcast %cst_96 : f32 to vector<4x8xf32>
    %319 = arith.cmpf ogt, %317, %318 : vector<4x8xf32>
    %cst_97 = arith.constant 2.000000e+01 : f32
    %320 = vector.broadcast %cst_97 : f32 to vector<4x8xf32>
    %321 = arith.minimumf %317, %320 : vector<4x8xf32>
    %322 = math.exp %321 : vector<4x8xf32>
    %323 = math.log1p %322 : vector<4x8xf32>
    %324 = arith.select %319, %317, %323 : vector<4x8xi1>, vector<4x8xf32>
    %cst_98 = arith.constant dense<0.000000e+00> : vector<4x8xf32>
    %325 = tpu.matmul %315, %3, %cst_98 {dimension_numbers = #tpu.dot_dimension_numbers<[1], [0], [0], [1], [0, 0, 1, 1], [], []>} : vector<4x200xbf16>, vector<200x8xbf16>, vector<4x8xf32> -> vector<4x8xf32>
    %326 = arith.addf %325, %12 : vector<4x8xf32>
    %cst_99 = arith.constant 2.000000e+01 : f32
    %327 = vector.broadcast %cst_99 : f32 to vector<4x8xf32>
    %328 = arith.cmpf ogt, %326, %327 : vector<4x8xf32>
    %cst_100 = arith.constant 2.000000e+01 : f32
    %329 = vector.broadcast %cst_100 : f32 to vector<4x8xf32>
    %330 = arith.minimumf %326, %329 : vector<4x8xf32>
    %331 = math.exp %330 : vector<4x8xf32>
    %332 = math.log1p %331 : vector<4x8xf32>
    %333 = arith.select %328, %326, %332 : vector<4x8xi1>, vector<4x8xf32>
    %334 = math.sqrt %333 : vector<4x8xf32>
    %335 = arith.mulf %334, %306 : vector<4x8xf32>
    %336 = arith.addf %324, %335 : vector<4x8xf32>
    %cst_101 = arith.constant 2.000000e+01 : f32
    %337 = vector.broadcast %cst_101 : f32 to vector<4x8xf32>
    %338 = arith.cmpf ogt, %336, %337 : vector<4x8xf32>
    %cst_102 = arith.constant 2.000000e+01 : f32
    %339 = vector.broadcast %cst_102 : f32 to vector<4x8xf32>
    %340 = arith.minimumf %336, %339 : vector<4x8xf32>
    %341 = math.exp %340 : vector<4x8xf32>
    %342 = math.log1p %341 : vector<4x8xf32>
    %343 = arith.select %338, %336, %342 : vector<4x8xi1>, vector<4x8xf32>
    %344 = arith.index_cast %c4_i32 : i32 to index
    %c0_103 = arith.constant 0 : index
    %c0_104 = arith.constant 0 : index
    %345 = vector.load %arg12[%344, %c0_103, %c0_104] : memref<8x4x8xf32, #tpu.memory_space<vmem>>, vector<1x4x8xf32>
    %346 = vector.shape_cast %345 : vector<1x4x8xf32> to vector<4x8xf32>
    %347 = vector.shape_cast %343 : vector<4x8xf32> to vector<1x4x8xf32>
    tpu.vector_store %arg12[%344, %c0_103, %c0_104], %347 {strides = array<i32>} : memref<8x4x8xf32, #tpu.memory_space<vmem>>, vector<1x4x8xf32>,
    %348 = vector.extract_strided_slice %302 {offsets = [0, 0], sizes = [4, 128], strides = [1, 1]} : vector<4x328xf32> to vector<4x128xf32>
    %c5_i32 = arith.constant 5 : i32
    %349 = arith.truncf %343 : vector<4x8xf32> to vector<4x8xbf16>
    %cst_105 = arith.constant dense<0.000000e+00> : vector<4x128xf32>
    %350 = tpu.matmul %349, %0, %cst_105 {dimension_numbers = #tpu.dot_dimension_numbers<[1], [0], [0], [1], [0, 0, 1, 1], [], []>} : vector<4x8xbf16>, vector<8x128xbf16>, vector<4x128xf32> -> vector<4x128xf32>
    %351 = arith.addf %350, %348 : vector<4x128xf32>
    %352 = arith.negf %351 : vector<4x128xf32>
    %353 = math.exp %352 : vector<4x128xf32>
    %cst_106 = arith.constant 1.000000e+00 : f32
    %354 = vector.broadcast %cst_106 : f32 to vector<4x128xf32>
    %355 = arith.addf %354, %353 : vector<4x128xf32>
    %356 = arith.divf %354, %355 : vector<4x128xf32>
    %357 = math.tanh %351 : vector<4x128xf32>
    %358 = vector.extract_strided_slice %356 {offsets = [0, 0], sizes = [4, 32], strides = [1, 1]} : vector<4x128xf32> to vector<4x32xf32>
    %359 = vector.extract_strided_slice %356 {offsets = [0, 32], sizes = [4, 32], strides = [1, 1]} : vector<4x128xf32> to vector<4x32xf32>
    %360 = vector.extract_strided_slice %357 {offsets = [0, 64], sizes = [4, 32], strides = [1, 1]} : vector<4x128xf32> to vector<4x32xf32>
    %361 = vector.extract_strided_slice %356 {offsets = [0, 96], sizes = [4, 32], strides = [1, 1]} : vector<4x128xf32> to vector<4x32xf32>
    %362 = arith.mulf %359, %298 : vector<4x32xf32>
    %363 = arith.mulf %358, %360 : vector<4x32xf32>
    %364 = arith.addf %362, %363 : vector<4x32xf32>
    %365 = math.tanh %364 : vector<4x32xf32>
    %366 = arith.mulf %361, %365 : vector<4x32xf32>
    %367 = arith.truncf %366 : vector<4x32xf32> to vector<4x32xbf16>
    %cst_107 = arith.constant dense<0.000000e+00> : vector<4x328xf32>
    %368 = tpu.matmul %367, %1, %cst_107 {dimension_numbers = #tpu.dot_dimension_numbers<[1], [0], [0], [1], [0, 0, 1, 1], [], []>} : vector<4x32xbf16>, vector<32x328xbf16>, vector<4x328xf32> -> vector<4x328xf32>
    %369 = vector.extract_strided_slice %368 {offsets = [0, 128], sizes = [4, 200], strides = [1, 1]} : vector<4x328xf32> to vector<4x200xf32>
    %370 = arith.index_cast %c5_i32 : i32 to index
    %c0_108 = arith.constant 0 : index
    %c0_109 = arith.constant 0 : index
    %371 = vector.load %arg4[%370, %c0_108, %c0_109] : memref<8x4x8xf32, #tpu.memory_space<vmem>>, vector<1x4x8xf32>
    %372 = vector.shape_cast %371 : vector<1x4x8xf32> to vector<4x8xf32>
    %373 = arith.addf %369, %6 : vector<4x200xf32>
    %cst_110 = arith.constant 2.000000e+01 : f32
    %374 = vector.broadcast %cst_110 : f32 to vector<4x200xf32>
    %375 = arith.cmpf ogt, %373, %374 : vector<4x200xf32>
    %cst_111 = arith.constant 2.000000e+01 : f32
    %376 = vector.broadcast %cst_111 : f32 to vector<4x200xf32>
    %377 = arith.minimumf %373, %376 : vector<4x200xf32>
    %378 = math.exp %377 : vector<4x200xf32>
    %379 = math.log1p %378 : vector<4x200xf32>
    %380 = arith.select %375, %373, %379 : vector<4x200xi1>, vector<4x200xf32>
    %381 = arith.truncf %380 : vector<4x200xf32> to vector<4x200xbf16>
    %cst_112 = arith.constant dense<0.000000e+00> : vector<4x8xf32>
    %382 = tpu.matmul %381, %2, %cst_112 {dimension_numbers = #tpu.dot_dimension_numbers<[1], [0], [0], [1], [0, 0, 1, 1], [], []>} : vector<4x200xbf16>, vector<200x8xbf16>, vector<4x8xf32> -> vector<4x8xf32>
    %383 = arith.addf %382, %9 : vector<4x8xf32>
    %cst_113 = arith.constant 2.000000e+01 : f32
    %384 = vector.broadcast %cst_113 : f32 to vector<4x8xf32>
    %385 = arith.cmpf ogt, %383, %384 : vector<4x8xf32>
    %cst_114 = arith.constant 2.000000e+01 : f32
    %386 = vector.broadcast %cst_114 : f32 to vector<4x8xf32>
    %387 = arith.minimumf %383, %386 : vector<4x8xf32>
    %388 = math.exp %387 : vector<4x8xf32>
    %389 = math.log1p %388 : vector<4x8xf32>
    %390 = arith.select %385, %383, %389 : vector<4x8xi1>, vector<4x8xf32>
    %cst_115 = arith.constant dense<0.000000e+00> : vector<4x8xf32>
    %391 = tpu.matmul %381, %3, %cst_115 {dimension_numbers = #tpu.dot_dimension_numbers<[1], [0], [0], [1], [0, 0, 1, 1], [], []>} : vector<4x200xbf16>, vector<200x8xbf16>, vector<4x8xf32> -> vector<4x8xf32>
    %392 = arith.addf %391, %12 : vector<4x8xf32>
    %cst_116 = arith.constant 2.000000e+01 : f32
    %393 = vector.broadcast %cst_116 : f32 to vector<4x8xf32>
    %394 = arith.cmpf ogt, %392, %393 : vector<4x8xf32>
    %cst_117 = arith.constant 2.000000e+01 : f32
    %395 = vector.broadcast %cst_117 : f32 to vector<4x8xf32>
    %396 = arith.minimumf %392, %395 : vector<4x8xf32>
    %397 = math.exp %396 : vector<4x8xf32>
    %398 = math.log1p %397 : vector<4x8xf32>
    %399 = arith.select %394, %392, %398 : vector<4x8xi1>, vector<4x8xf32>
    %400 = math.sqrt %399 : vector<4x8xf32>
    %401 = arith.mulf %400, %372 : vector<4x8xf32>
    %402 = arith.addf %390, %401 : vector<4x8xf32>
    %cst_118 = arith.constant 2.000000e+01 : f32
    %403 = vector.broadcast %cst_118 : f32 to vector<4x8xf32>
    %404 = arith.cmpf ogt, %402, %403 : vector<4x8xf32>
    %cst_119 = arith.constant 2.000000e+01 : f32
    %405 = vector.broadcast %cst_119 : f32 to vector<4x8xf32>
    %406 = arith.minimumf %402, %405 : vector<4x8xf32>
    %407 = math.exp %406 : vector<4x8xf32>
    %408 = math.log1p %407 : vector<4x8xf32>
    %409 = arith.select %404, %402, %408 : vector<4x8xi1>, vector<4x8xf32>
    %410 = arith.index_cast %c5_i32 : i32 to index
    %c0_120 = arith.constant 0 : index
    %c0_121 = arith.constant 0 : index
    %411 = vector.load %arg12[%410, %c0_120, %c0_121] : memref<8x4x8xf32, #tpu.memory_space<vmem>>, vector<1x4x8xf32>
    %412 = vector.shape_cast %411 : vector<1x4x8xf32> to vector<4x8xf32>
    %413 = vector.shape_cast %409 : vector<4x8xf32> to vector<1x4x8xf32>
    tpu.vector_store %arg12[%410, %c0_120, %c0_121], %413 {strides = array<i32>} : memref<8x4x8xf32, #tpu.memory_space<vmem>>, vector<1x4x8xf32>,
    %414 = vector.extract_strided_slice %368 {offsets = [0, 0], sizes = [4, 128], strides = [1, 1]} : vector<4x328xf32> to vector<4x128xf32>
    %c6_i32 = arith.constant 6 : i32
    %415 = arith.truncf %409 : vector<4x8xf32> to vector<4x8xbf16>
    %cst_122 = arith.constant dense<0.000000e+00> : vector<4x128xf32>
    %416 = tpu.matmul %415, %0, %cst_122 {dimension_numbers = #tpu.dot_dimension_numbers<[1], [0], [0], [1], [0, 0, 1, 1], [], []>} : vector<4x8xbf16>, vector<8x128xbf16>, vector<4x128xf32> -> vector<4x128xf32>
    %417 = arith.addf %416, %414 : vector<4x128xf32>
    %418 = arith.negf %417 : vector<4x128xf32>
    %419 = math.exp %418 : vector<4x128xf32>
    %cst_123 = arith.constant 1.000000e+00 : f32
    %420 = vector.broadcast %cst_123 : f32 to vector<4x128xf32>
    %421 = arith.addf %420, %419 : vector<4x128xf32>
    %422 = arith.divf %420, %421 : vector<4x128xf32>
    %423 = math.tanh %417 : vector<4x128xf32>
    %424 = vector.extract_strided_slice %422 {offsets = [0, 0], sizes = [4, 32], strides = [1, 1]} : vector<4x128xf32> to vector<4x32xf32>
    %425 = vector.extract_strided_slice %422 {offsets = [0, 32], sizes = [4, 32], strides = [1, 1]} : vector<4x128xf32> to vector<4x32xf32>
    %426 = vector.extract_strided_slice %423 {offsets = [0, 64], sizes = [4, 32], strides = [1, 1]} : vector<4x128xf32> to vector<4x32xf32>
    %427 = vector.extract_strided_slice %422 {offsets = [0, 96], sizes = [4, 32], strides = [1, 1]} : vector<4x128xf32> to vector<4x32xf32>
    %428 = arith.mulf %425, %364 : vector<4x32xf32>
    %429 = arith.mulf %424, %426 : vector<4x32xf32>
    %430 = arith.addf %428, %429 : vector<4x32xf32>
    %431 = math.tanh %430 : vector<4x32xf32>
    %432 = arith.mulf %427, %431 : vector<4x32xf32>
    %433 = arith.truncf %432 : vector<4x32xf32> to vector<4x32xbf16>
    %cst_124 = arith.constant dense<0.000000e+00> : vector<4x328xf32>
    %434 = tpu.matmul %433, %1, %cst_124 {dimension_numbers = #tpu.dot_dimension_numbers<[1], [0], [0], [1], [0, 0, 1, 1], [], []>} : vector<4x32xbf16>, vector<32x328xbf16>, vector<4x328xf32> -> vector<4x328xf32>
    %435 = vector.extract_strided_slice %434 {offsets = [0, 128], sizes = [4, 200], strides = [1, 1]} : vector<4x328xf32> to vector<4x200xf32>
    %436 = arith.index_cast %c6_i32 : i32 to index
    %c0_125 = arith.constant 0 : index
    %c0_126 = arith.constant 0 : index
    %437 = vector.load %arg4[%436, %c0_125, %c0_126] : memref<8x4x8xf32, #tpu.memory_space<vmem>>, vector<1x4x8xf32>
    %438 = vector.shape_cast %437 : vector<1x4x8xf32> to vector<4x8xf32>
    %439 = arith.addf %435, %6 : vector<4x200xf32>
    %cst_127 = arith.constant 2.000000e+01 : f32
    %440 = vector.broadcast %cst_127 : f32 to vector<4x200xf32>
    %441 = arith.cmpf ogt, %439, %440 : vector<4x200xf32>
    %cst_128 = arith.constant 2.000000e+01 : f32
    %442 = vector.broadcast %cst_128 : f32 to vector<4x200xf32>
    %443 = arith.minimumf %439, %442 : vector<4x200xf32>
    %444 = math.exp %443 : vector<4x200xf32>
    %445 = math.log1p %444 : vector<4x200xf32>
    %446 = arith.select %441, %439, %445 : vector<4x200xi1>, vector<4x200xf32>
    %447 = arith.truncf %446 : vector<4x200xf32> to vector<4x200xbf16>
    %cst_129 = arith.constant dense<0.000000e+00> : vector<4x8xf32>
    %448 = tpu.matmul %447, %2, %cst_129 {dimension_numbers = #tpu.dot_dimension_numbers<[1], [0], [0], [1], [0, 0, 1, 1], [], []>} : vector<4x200xbf16>, vector<200x8xbf16>, vector<4x8xf32> -> vector<4x8xf32>
    %449 = arith.addf %448, %9 : vector<4x8xf32>
    %cst_130 = arith.constant 2.000000e+01 : f32
    %450 = vector.broadcast %cst_130 : f32 to vector<4x8xf32>
    %451 = arith.cmpf ogt, %449, %450 : vector<4x8xf32>
    %cst_131 = arith.constant 2.000000e+01 : f32
    %452 = vector.broadcast %cst_131 : f32 to vector<4x8xf32>
    %453 = arith.minimumf %449, %452 : vector<4x8xf32>
    %454 = math.exp %453 : vector<4x8xf32>
    %455 = math.log1p %454 : vector<4x8xf32>
    %456 = arith.select %451, %449, %455 : vector<4x8xi1>, vector<4x8xf32>
    %cst_132 = arith.constant dense<0.000000e+00> : vector<4x8xf32>
    %457 = tpu.matmul %447, %3, %cst_132 {dimension_numbers = #tpu.dot_dimension_numbers<[1], [0], [0], [1], [0, 0, 1, 1], [], []>} : vector<4x200xbf16>, vector<200x8xbf16>, vector<4x8xf32> -> vector<4x8xf32>
    %458 = arith.addf %457, %12 : vector<4x8xf32>
    %cst_133 = arith.constant 2.000000e+01 : f32
    %459 = vector.broadcast %cst_133 : f32 to vector<4x8xf32>
    %460 = arith.cmpf ogt, %458, %459 : vector<4x8xf32>
    %cst_134 = arith.constant 2.000000e+01 : f32
    %461 = vector.broadcast %cst_134 : f32 to vector<4x8xf32>
    %462 = arith.minimumf %458, %461 : vector<4x8xf32>
    %463 = math.exp %462 : vector<4x8xf32>
    %464 = math.log1p %463 : vector<4x8xf32>
    %465 = arith.select %460, %458, %464 : vector<4x8xi1>, vector<4x8xf32>
    %466 = math.sqrt %465 : vector<4x8xf32>
    %467 = arith.mulf %466, %438 : vector<4x8xf32>
    %468 = arith.addf %456, %467 : vector<4x8xf32>
    %cst_135 = arith.constant 2.000000e+01 : f32
    %469 = vector.broadcast %cst_135 : f32 to vector<4x8xf32>
    %470 = arith.cmpf ogt, %468, %469 : vector<4x8xf32>
    %cst_136 = arith.constant 2.000000e+01 : f32
    %471 = vector.broadcast %cst_136 : f32 to vector<4x8xf32>
    %472 = arith.minimumf %468, %471 : vector<4x8xf32>
    %473 = math.exp %472 : vector<4x8xf32>
    %474 = math.log1p %473 : vector<4x8xf32>
    %475 = arith.select %470, %468, %474 : vector<4x8xi1>, vector<4x8xf32>
    %476 = arith.index_cast %c6_i32 : i32 to index
    %c0_137 = arith.constant 0 : index
    %c0_138 = arith.constant 0 : index
    %477 = vector.load %arg12[%476, %c0_137, %c0_138] : memref<8x4x8xf32, #tpu.memory_space<vmem>>, vector<1x4x8xf32>
    %478 = vector.shape_cast %477 : vector<1x4x8xf32> to vector<4x8xf32>
    %479 = vector.shape_cast %475 : vector<4x8xf32> to vector<1x4x8xf32>
    tpu.vector_store %arg12[%476, %c0_137, %c0_138], %479 {strides = array<i32>} : memref<8x4x8xf32, #tpu.memory_space<vmem>>, vector<1x4x8xf32>,
    %480 = vector.extract_strided_slice %434 {offsets = [0, 0], sizes = [4, 128], strides = [1, 1]} : vector<4x328xf32> to vector<4x128xf32>
    %c7_i32 = arith.constant 7 : i32
    %481 = arith.truncf %475 : vector<4x8xf32> to vector<4x8xbf16>
    %cst_139 = arith.constant dense<0.000000e+00> : vector<4x128xf32>
    %482 = tpu.matmul %481, %0, %cst_139 {dimension_numbers = #tpu.dot_dimension_numbers<[1], [0], [0], [1], [0, 0, 1, 1], [], []>} : vector<4x8xbf16>, vector<8x128xbf16>, vector<4x128xf32> -> vector<4x128xf32>
    %483 = arith.addf %482, %480 : vector<4x128xf32>
    %484 = arith.negf %483 : vector<4x128xf32>
    %485 = math.exp %484 : vector<4x128xf32>
    %cst_140 = arith.constant 1.000000e+00 : f32
    %486 = vector.broadcast %cst_140 : f32 to vector<4x128xf32>
    %487 = arith.addf %486, %485 : vector<4x128xf32>
    %488 = arith.divf %486, %487 : vector<4x128xf32>
    %489 = math.tanh %483 : vector<4x128xf32>
    %490 = vector.extract_strided_slice %488 {offsets = [0, 0], sizes = [4, 32], strides = [1, 1]} : vector<4x128xf32> to vector<4x32xf32>
    %491 = vector.extract_strided_slice %488 {offsets = [0, 32], sizes = [4, 32], strides = [1, 1]} : vector<4x128xf32> to vector<4x32xf32>
    %492 = vector.extract_strided_slice %489 {offsets = [0, 64], sizes = [4, 32], strides = [1, 1]} : vector<4x128xf32> to vector<4x32xf32>
    %493 = vector.extract_strided_slice %488 {offsets = [0, 96], sizes = [4, 32], strides = [1, 1]} : vector<4x128xf32> to vector<4x32xf32>
    %494 = arith.mulf %491, %430 : vector<4x32xf32>
    %495 = arith.mulf %490, %492 : vector<4x32xf32>
    %496 = arith.addf %494, %495 : vector<4x32xf32>
    %497 = math.tanh %496 : vector<4x32xf32>
    %498 = arith.mulf %493, %497 : vector<4x32xf32>
    %499 = arith.truncf %498 : vector<4x32xf32> to vector<4x32xbf16>
    %cst_141 = arith.constant dense<0.000000e+00> : vector<4x328xf32>
    %500 = tpu.matmul %499, %1, %cst_141 {dimension_numbers = #tpu.dot_dimension_numbers<[1], [0], [0], [1], [0, 0, 1, 1], [], []>} : vector<4x32xbf16>, vector<32x328xbf16>, vector<4x328xf32> -> vector<4x328xf32>
    %501 = vector.extract_strided_slice %500 {offsets = [0, 128], sizes = [4, 200], strides = [1, 1]} : vector<4x328xf32> to vector<4x200xf32>
    %502 = arith.index_cast %c7_i32 : i32 to index
    %c0_142 = arith.constant 0 : index
    %c0_143 = arith.constant 0 : index
    %503 = vector.load %arg4[%502, %c0_142, %c0_143] : memref<8x4x8xf32, #tpu.memory_space<vmem>>, vector<1x4x8xf32>
    %504 = vector.shape_cast %503 : vector<1x4x8xf32> to vector<4x8xf32>
    %505 = arith.addf %501, %6 : vector<4x200xf32>
    %cst_144 = arith.constant 2.000000e+01 : f32
    %506 = vector.broadcast %cst_144 : f32 to vector<4x200xf32>
    %507 = arith.cmpf ogt, %505, %506 : vector<4x200xf32>
    %cst_145 = arith.constant 2.000000e+01 : f32
    %508 = vector.broadcast %cst_145 : f32 to vector<4x200xf32>
    %509 = arith.minimumf %505, %508 : vector<4x200xf32>
    %510 = math.exp %509 : vector<4x200xf32>
    %511 = math.log1p %510 : vector<4x200xf32>
    %512 = arith.select %507, %505, %511 : vector<4x200xi1>, vector<4x200xf32>
    %513 = arith.truncf %512 : vector<4x200xf32> to vector<4x200xbf16>
    %cst_146 = arith.constant dense<0.000000e+00> : vector<4x8xf32>
    %514 = tpu.matmul %513, %2, %cst_146 {dimension_numbers = #tpu.dot_dimension_numbers<[1], [0], [0], [1], [0, 0, 1, 1], [], []>} : vector<4x200xbf16>, vector<200x8xbf16>, vector<4x8xf32> -> vector<4x8xf32>
    %515 = arith.addf %514, %9 : vector<4x8xf32>
    %cst_147 = arith.constant 2.000000e+01 : f32
    %516 = vector.broadcast %cst_147 : f32 to vector<4x8xf32>
    %517 = arith.cmpf ogt, %515, %516 : vector<4x8xf32>
    %cst_148 = arith.constant 2.000000e+01 : f32
    %518 = vector.broadcast %cst_148 : f32 to vector<4x8xf32>
    %519 = arith.minimumf %515, %518 : vector<4x8xf32>
    %520 = math.exp %519 : vector<4x8xf32>
    %521 = math.log1p %520 : vector<4x8xf32>
    %522 = arith.select %517, %515, %521 : vector<4x8xi1>, vector<4x8xf32>
    %cst_149 = arith.constant dense<0.000000e+00> : vector<4x8xf32>
    %523 = tpu.matmul %513, %3, %cst_149 {dimension_numbers = #tpu.dot_dimension_numbers<[1], [0], [0], [1], [0, 0, 1, 1], [], []>} : vector<4x200xbf16>, vector<200x8xbf16>, vector<4x8xf32> -> vector<4x8xf32>
    %524 = arith.addf %523, %12 : vector<4x8xf32>
    %cst_150 = arith.constant 2.000000e+01 : f32
    %525 = vector.broadcast %cst_150 : f32 to vector<4x8xf32>
    %526 = arith.cmpf ogt, %524, %525 : vector<4x8xf32>
    %cst_151 = arith.constant 2.000000e+01 : f32
    %527 = vector.broadcast %cst_151 : f32 to vector<4x8xf32>
    %528 = arith.minimumf %524, %527 : vector<4x8xf32>
    %529 = math.exp %528 : vector<4x8xf32>
    %530 = math.log1p %529 : vector<4x8xf32>
    %531 = arith.select %526, %524, %530 : vector<4x8xi1>, vector<4x8xf32>
    %532 = math.sqrt %531 : vector<4x8xf32>
    %533 = arith.mulf %532, %504 : vector<4x8xf32>
    %534 = arith.addf %522, %533 : vector<4x8xf32>
    %cst_152 = arith.constant 2.000000e+01 : f32
    %535 = vector.broadcast %cst_152 : f32 to vector<4x8xf32>
    %536 = arith.cmpf ogt, %534, %535 : vector<4x8xf32>
    %cst_153 = arith.constant 2.000000e+01 : f32
    %537 = vector.broadcast %cst_153 : f32 to vector<4x8xf32>
    %538 = arith.minimumf %534, %537 : vector<4x8xf32>
    %539 = math.exp %538 : vector<4x8xf32>
    %540 = math.log1p %539 : vector<4x8xf32>
    %541 = arith.select %536, %534, %540 : vector<4x8xi1>, vector<4x8xf32>
    %542 = arith.index_cast %c7_i32 : i32 to index
    %c0_154 = arith.constant 0 : index
    %c0_155 = arith.constant 0 : index
    %543 = vector.load %arg12[%542, %c0_154, %c0_155] : memref<8x4x8xf32, #tpu.memory_space<vmem>>, vector<1x4x8xf32>
    %544 = vector.shape_cast %543 : vector<1x4x8xf32> to vector<4x8xf32>
    %545 = vector.shape_cast %541 : vector<4x8xf32> to vector<1x4x8xf32>
    tpu.vector_store %arg12[%542, %c0_154, %c0_155], %545 {strides = array<i32>} : memref<8x4x8xf32, #tpu.memory_space<vmem>>, vector<1x4x8xf32>,
    %546 = vector.extract_strided_slice %500 {offsets = [0, 0], sizes = [4, 128], strides = [1, 1]} : vector<4x328xf32> to vector<4x128xf32>
    %c8_i32 = arith.constant 8 : i32
    %c0_156 = arith.constant 0 : index
    %c0_157 = arith.constant 0 : index
    %547 = vector.load %arg13[%c0_156, %c0_157] : memref<4x8xf32, #tpu.memory_space<vmem>>, vector<4x8xf32>
    tpu.vector_store %arg13[%c0_156, %c0_157], %541 {strides = array<i32>} : memref<4x8xf32, #tpu.memory_space<vmem>>, vector<4x8xf32>,
    %c0_158 = arith.constant 0 : index
    %c0_159 = arith.constant 0 : index
    %548 = vector.load %arg14[%c0_158, %c0_159] : memref<4x128xf32, #tpu.memory_space<vmem>>, vector<4x128xf32>
    tpu.vector_store %arg14[%c0_158, %c0_159], %546 {strides = array<i32>} : memref<4x128xf32, #tpu.memory_space<vmem>>, vector<4x128xf32>,
    %c0_160 = arith.constant 0 : index
    %c0_161 = arith.constant 0 : index
    %549 = vector.load %arg15[%c0_160, %c0_161] : memref<4x32xf32, #tpu.memory_space<vmem>>, vector<4x32xf32>
    tpu.vector_store %arg15[%c0_160, %c0_161], %496 {strides = array<i32>} : memref<4x32xf32, #tpu.memory_space<vmem>>, vector<4x32xf32>,
    return
  }
  func.func @transform_0(%arg0: i32) -> (i32, i32) {
    %c0_i32 = arith.constant 0 : i32
    %c0_i32_0 = arith.constant 0 : i32
    %c0_i32_1 = arith.constant 0 : i32
    return %c0_i32, %c0_i32_0 : i32, i32
  }
  func.func @transform_1(%arg0: i32) -> (i32, i32) {
    %c0_i32 = arith.constant 0 : i32
    %c0_i32_0 = arith.constant 0 : i32
    %c0_i32_1 = arith.constant 0 : i32
    return %c0_i32, %c0_i32_0 : i32, i32
  }
  func.func @transform_2(%arg0: i32) -> (i32, i32) {
    %c0_i32 = arith.constant 0 : i32
    %c0_i32_0 = arith.constant 0 : i32
    %c0_i32_1 = arith.constant 0 : i32
    return %c0_i32, %c0_i32_0 : i32, i32
  }
  func.func @transform_3(%arg0: i32) -> (i32, i32, i32) {
    %c0_i32 = arith.constant 0 : i32
    %c0_i32_0 = arith.constant 0 : i32
    %c0_i32_1 = arith.constant 0 : i32
    return %arg0, %c0_i32, %c0_i32_0 : i32, i32, i32
  }
  func.func @transform_4(%arg0: i32) -> (i32, i32) {
    %c0_i32 = arith.constant 0 : i32
    %c0_i32_0 = arith.constant 0 : i32
    %c0_i32_1 = arith.constant 0 : i32
    return %c0_i32, %c0_i32_0 : i32, i32
  }
  func.func @transform_5(%arg0: i32) -> (i32, i32) {
    %c0_i32 = arith.constant 0 : i32
    %c0_i32_0 = arith.constant 0 : i32
    %c0_i32_1 = arith.constant 0 : i32
    return %c0_i32, %c0_i32_0 : i32, i32
  }
  func.func @transform_6(%arg0: i32) -> (i32, i32) {
    %c0_i32 = arith.constant 0 : i32
    %c0_i32_0 = arith.constant 0 : i32
    %c0_i32_1 = arith.constant 0 : i32
    return %c0_i32, %c0_i32_0 : i32, i32
  }
  func.func @transform_7(%arg0: i32) -> (i32, i32) {
    %c0_i32 = arith.constant 0 : i32
    %c0_i32_0 = arith.constant 0 : i32
    %c0_i32_1 = arith.constant 0 : i32
    return %c0_i32, %c0_i32_0 : i32, i32
  }
  func.func @transform_8(%arg0: i32) -> (i32, i32) {
    %c0_i32 = arith.constant 0 : i32
    %c0_i32_0 = arith.constant 0 : i32
    %c0_i32_1 = arith.constant 0 : i32
    return %c0_i32, %c0_i32_0 : i32, i32
  }
  func.func @transform_9(%arg0: i32) -> (i32, i32) {
    %c0_i32 = arith.constant 0 : i32
    %c0_i32_0 = arith.constant 0 : i32
    %c0_i32_1 = arith.constant 0 : i32
    return %c0_i32, %c0_i32_0 : i32, i32
  }
  func.func @transform_10(%arg0: i32) -> (i32, i32) {
    %c0_i32 = arith.constant 0 : i32
    %c0_i32_0 = arith.constant 0 : i32
    %c0_i32_1 = arith.constant 0 : i32
    return %c0_i32, %c0_i32_0 : i32, i32
  }
  func.func @transform_11(%arg0: i32) -> (i32, i32, i32) {
    %c0_i32 = arith.constant 0 : i32
    %c0_i32_0 = arith.constant 0 : i32
    %c0_i32_1 = arith.constant 0 : i32
    return %arg0, %c0_i32, %c0_i32_0 : i32, i32, i32
  }
}

</mosaic_0001>

<llo_original>
// kernel: tpu_custom_call.1
$region0: #{tpu_custom_call.1}
  #allocation0 [shape = 'u32[]', space=smem, size = 0x4, offset = 0x4, fixed_abs, tag = 'smem constant byte address 0x4 - core index']
  #allocation1 [shape = 'u32[144,128]{1,0:T(1,128)}', space=vmem, size = 0x12000, scoped, tag = 'internal scratch']
  #allocation2 [shape = 'f32[4,8]{1,0:T(4,128)}', space=vmem, size = 0x800, scoped, tag = 'scratch operand']
  #allocation3 [shape = 'f32[4,128]{1,0:T(4,128)}', space=vmem, size = 0x800, scoped, tag = 'scratch operand']
  #allocation4 [shape = 'f32[4,32]{1,0:T(4,128)}', space=vmem, size = 0x800, scoped, tag = 'scratch operand']
  %s0 = inlined_call_operand.vmem [shape: f32[4,32], index: 0, kind: input, shape index: {}]
  %s1 = inlined_call_operand.vmem [shape: f32[4,32], index: 1, kind: input, shape index: {}]
  %s2 = inlined_call_operand.vmem [shape: f32[4,8], index: 2, kind: input, shape index: {}]
  %s3 = inlined_call_operand.vmem [shape: f32[8,4,8], index: 3, kind: input, shape index: {}]
  %s4 = inlined_call_operand.vmem [shape: bf16[8,128], index: 4, kind: input, shape index: {}]
  %s5 = inlined_call_operand.vmem [shape: bf16[32,328], index: 5, kind: input, shape index: {}]
  %s6 = inlined_call_operand.vmem [shape: f32[1,200], index: 6, kind: input, shape index: {}]
  %s7 = inlined_call_operand.vmem [shape: bf16[200,8], index: 7, kind: input, shape index: {}]
  %s8 = inlined_call_operand.vmem [shape: bf16[200,8], index: 8, kind: input, shape index: {}]
  %s9 = inlined_call_operand.vmem [shape: f32[1,8], index: 9, kind: input, shape index: {}]
  %s10 = inlined_call_operand.vmem [shape: f32[1,8], index: 10, kind: input, shape index: {}]
  %s11 = inlined_call_operand.hbm [shape: f32[8,4,8], index: 11, kind: output, shape index: {}]
  %s12 = sld [smem:[#allocation0]]
  $region58: #{tpu_custom_call.1} parent=0
    _
  %s14 = ssub.s32 1, %s12
  %s15 = scalar_select 0, %s14, %s12
  $region1: #{tpu_custom_call.1} parent=0
    #allocation5 [shape = 'u8[16384]{0}', space=vmem, size = 0x4000, scoped, tag = 'output window, operand 0, single buffered']
    #allocation6 [shape = 's32[1]{0}', space=sflag, size = 0x4, scoped, tag = 'scoped memory for tpu_custom_call.1']
    %16 = vsyncpa [#allocation6], 0
    // Predicated region
    $region2: #{tpu_custom_call.1} parent=1 // pred_check
      _
    $region3: #{tpu_custom_call.1} parent=1 // pred_check_branch
      %18 = sbr.rel (0) target = $region5
    $region4: #{tpu_custom_call.1} parent=1 // pred_region
      _
    $region5: #{tpu_custom_call.1} parent=1 // pred_fallthru
      _
    // Predicated region
    $region6: #{tpu_custom_call.1} parent=1 // pred_check
      _
    $region7: #{tpu_custom_call.1} parent=1 // pred_check_branch
      %20 = sbr.rel (0) target = $region9
    $region8: #{tpu_custom_call.1} parent=1 // pred_region
      _
    $region9: #{tpu_custom_call.1} parent=1 // pred_fallthru
      _
    // Predicated region
    $region10: #{tpu_custom_call.1} parent=1 // pred_check
      _
    $region11: #{tpu_custom_call.1} parent=1 // pred_check_branch
      %22 = sbr.rel (0) target = $region13
    $region12: #{tpu_custom_call.1} parent=1 // pred_region
      _
    $region13: #{tpu_custom_call.1} parent=1 // pred_fallthru
      _
    // Predicated region
    $region14: #{tpu_custom_call.1} parent=1 // pred_check
      _
    $region15: #{tpu_custom_call.1} parent=1 // pred_check_branch
      %24 = sbr.rel (0) target = $region17
    $region16: #{tpu_custom_call.1} parent=1 // pred_region
      _
    $region17: #{tpu_custom_call.1} parent=1 // pred_fallthru
      _
    // Predicated region
    $region18: #{tpu_custom_call.1} parent=1 // pred_check
      _
    $region19: #{tpu_custom_call.1} parent=1 // pred_check_branch
      %26 = sbr.rel (0) target = $region21
    $region20: #{tpu_custom_call.1} parent=1 // pred_region
      _
    $region21: #{tpu_custom_call.1} parent=1 // pred_fallthru
      _
    // Predicated region
    $region22: #{tpu_custom_call.1} parent=1 // pred_check
      _
    $region23: #{tpu_custom_call.1} parent=1 // pred_check_branch
      %28 = sbr.rel (0) target = $region25
    $region24: #{tpu_custom_call.1} parent=1 // pred_region
      _
    $region25: #{tpu_custom_call.1} parent=1 // pred_fallthru
      _
    // Predicated region
    $region26: #{tpu_custom_call.1} parent=1 // pred_check
      _
    $region27: #{tpu_custom_call.1} parent=1 // pred_check_branch
      %30 = sbr.rel (0) target = $region29
    $region28: #{tpu_custom_call.1} parent=1 // pred_region
      _
    $region29: #{tpu_custom_call.1} parent=1 // pred_fallthru
      _
    // Predicated region
    $region30: #{tpu_custom_call.1} parent=1 // pred_check
      _
    $region31: #{tpu_custom_call.1} parent=1 // pred_check_branch
      %32 = sbr.rel (0) target = $region33
    $region32: #{tpu_custom_call.1} parent=1 // pred_region
      _
    $region33: #{tpu_custom_call.1} parent=1 // pred_fallthru
      _
    // Predicated region
    $region34: #{tpu_custom_call.1} parent=1 // pred_check
      _
    $region35: #{tpu_custom_call.1} parent=1 // pred_check_branch
      %34 = sbr.rel (0) target = $region37
    $region36: #{tpu_custom_call.1} parent=1 // pred_region
      _
    $region37: #{tpu_custom_call.1} parent=1 // pred_fallthru
      _
    // Predicated region
    $region38: #{tpu_custom_call.1} parent=1 // pred_check
      _
    $region39: #{tpu_custom_call.1} parent=1 // pred_check_branch
      %36 = sbr.rel (0) target = $region41
    $region40: #{tpu_custom_call.1} parent=1 // pred_region
      _
    $region41: #{tpu_custom_call.1} parent=1 // pred_fallthru
      _
    // Predicated region
    $region42: #{tpu_custom_call.1} parent=1 // pred_check
      _
    $region43: #{tpu_custom_call.1} parent=1 // pred_check_branch
      %38 = sbr.rel (0) target = $region45
    $region44: #{tpu_custom_call.1} parent=1 // pred_region
      _
    $region45: #{tpu_custom_call.1} parent=1 // pred_fallthru
      _
    %v40 = vld [vmem:[%s4] sm:$0xf]
    %v41 = vld [vmem:[%s5] sm:$0xff]
    %v42 = vld [vmem:[%s5 + $0x8] sm:$0xf]
    %v43 = vld [vmem:[%s5 + $0xc] sm:$0xff]
    %v44 = vld [vmem:[%s5 + $0x14] sm:$0xf]
    %v45 = vld [vmem:[%s5 + $0x18] sm:$0xff]
    %v46 = vld [vmem:[%s5 + $0x20] sm:$0xf]
    %v47 = vld [vmem:[%s5 + $0x24] sm:$0xff]
    %v48 = vld [vmem:[%s5 + $0x2c] sm:$0xf]
    %v49 = vld [vmem:[%s7] sm:$0xf]
    %v50 = vld [vmem:[%s7 + $0x4] sm:$0xf]
    %v51 = vld [vmem:[%s7 + $0x8] sm:$0xf]
    %v52 = vld [vmem:[%s7 + $0xc] sm:$0xf]
    %v53 = vld [vmem:[%s7 + $0x10] sm:$0xf]
    %v54 = vld [vmem:[%s7 + $0x14] sm:$0xf]
    %v55 = vld [vmem:[%s7 + $0x18] sm:$0xf]
    %v56 = vld [vmem:[%s7 + $0x1c] sm:$0xf]
    %v57 = vld [vmem:[%s7 + $0x20] sm:$0xf]
    %v58 = vld [vmem:[%s7 + $0x24] sm:$0xf]
    %v59 = vld [vmem:[%s7 + $0x28] sm:$0xf]
    %v60 = vld [vmem:[%s7 + $0x2c] sm:$0xf]
    %v61 = vld [vmem:[%s7 + $0x30] sm:$0xf]
    %v62 = vld [vmem:[%s7 + $0x34] sm:$0xf]
    %v63 = vld [vmem:[%s7 + $0x38] sm:$0xf]
    %v64 = vld [vmem:[%s7 + $0x3c] sm:$0xf]
    %v65 = vld [vmem:[%s7 + $0x40] sm:$0xf]
    %v66 = vld [vmem:[%s7 + $0x44] sm:$0xf]
    %v67 = vld [vmem:[%s7 + $0x48] sm:$0xf]
    %v68 = vld [vmem:[%s7 + $0x4c] sm:$0xf]
    %v69 = vld [vmem:[%s7 + $0x50] sm:$0xf]
    %v70 = vld [vmem:[%s7 + $0x54] sm:$0xf]
    %v71 = vld [vmem:[%s7 + $0x58] sm:$0xf]
    %v72 = vld [vmem:[%s7 + $0x5c] sm:$0xf]
    %v73 = vld [vmem:[%s7 + $0x60] sm:$0xf]
    %v74 = vld [vmem:[%s8] sm:$0xf]
    %v75 = vld [vmem:[%s8 + $0x4] sm:$0xf]
    %v76 = vld [vmem:[%s8 + $0x8] sm:$0xf]
    %v77 = vld [vmem:[%s8 + $0xc] sm:$0xf]
    %v78 = vld [vmem:[%s8 + $0x10] sm:$0xf]
    %v79 = vld [vmem:[%s8 + $0x14] sm:$0xf]
    %v80 = vld [vmem:[%s8 + $0x18] sm:$0xf]
    %v81 = vld [vmem:[%s8 + $0x1c] sm:$0xf]
    %v82 = vld [vmem:[%s8 + $0x20] sm:$0xf]
    %v83 = vld [vmem:[%s8 + $0x24] sm:$0xf]
    %v84 = vld [vmem:[%s8 + $0x28] sm:$0xf]
    %v85 = vld [vmem:[%s8 + $0x2c] sm:$0xf]
    %v86 = vld [vmem:[%s8 + $0x30] sm:$0xf]
    %v87 = vld [vmem:[%s8 + $0x34] sm:$0xf]
    %v88 = vld [vmem:[%s8 + $0x38] sm:$0xf]
    %v89 = vld [vmem:[%s8 + $0x3c] sm:$0xf]
    %v90 = vld [vmem:[%s8 + $0x40] sm:$0xf]
    %v91 = vld [vmem:[%s8 + $0x44] sm:$0xf]
    %v92 = vld [vmem:[%s8 + $0x48] sm:$0xf]
    %v93 = vld [vmem:[%s8 + $0x4c] sm:$0xf]
    %v94 = vld [vmem:[%s8 + $0x50] sm:$0xf]
    %v95 = vld [vmem:[%s8 + $0x54] sm:$0xf]
    %v96 = vld [vmem:[%s8 + $0x58] sm:$0xf]
    %v97 = vld [vmem:[%s8 + $0x5c] sm:$0xf]
    %v98 = vld [vmem:[%s8 + $0x60] sm:$0xf]
    %v99 = vld [vmem:[%s6] sm:$0x3]
    %v101 = vlaneseq
    %v102 = vshrl.u32 %v101, 7
    %v103 = vsub.s32 0, %v102
    %v104 = vrot.slane %v99, %v103
    %v105 = vlaneseq
    %v106 = vshrl.u32 %v105, 7
    %v107 = vsub.s32 1, %v106
    %v108 = vrot.slane %v99, %v107
    %v111 = vld [vmem:[%s9] sm:$0x1]
    %v113 = vlaneseq
    %v114 = vshrl.u32 %v113, 7
    %v115 = vsub.s32 0, %v114
    %v116 = vrot.slane %v111, %v115
    %v118 = vld [vmem:[%s10] sm:$0x1]
    %v120 = vlaneseq
    %v121 = vshrl.u32 %v120, 7
    %v122 = vsub.s32 0, %v121
    %v123 = vrot.slane %v118, %v122
    %p125 = scmp.eq.s32.totalorder 0, 0
    // Predicated region
    $region46: #{tpu_custom_call.1} parent=1 // pred_check
      %p126 = pneg %p125
    $region47: #{tpu_custom_call.1} parent=1 // pred_check_branch
      %128 = sbr.rel (%p126) target = $region49
    $region48: #{tpu_custom_call.1} parent=1 // pred_region
      %v129 = vld [vmem:[%s0] sm:$0xf]
      %v130 = vpack.c.bf16 %v129, %v129
      %v139 = vunpack.c.l.b16 %v41
      %v140 = vunpack.c.h.b16 %v41
      %v141 = vunpack.c.l.b16 %v42
      %v142 = vunpack.c.l.b16 %v43
      %v143 = vunpack.c.h.b16 %v43
      %v144 = vunpack.c.l.b16 %v44
      %v145 = vunpack.c.l.b16 %v45
      %v146 = vunpack.c.h.b16 %v45
      %v147 = vunpack.c.l.b16 %v46
      %v148 = vunpack.c.l.b16 %v47
      %v149 = vunpack.c.h.b16 %v47
      %v150 = vunpack.c.l.b16 %v48
      %v151 = vpack.c.b16 %v142, %v139
      %v152 = vpack.c.b16 %v143, %v140
      %v153 = vpack.c.b16 %v144, %v141
      %v154 = vpack.c.b16 %v148, %v145
      %v155 = vpack.c.b16 %v149, %v146
      %v156 = vpack.c.b16 %v150, %v147
      %vm163 = vcmask 261120
      %v165 = vsel %vm163, %v130, 0
      %167 = vmatprep.subr.bf16.mxu0 %v152
      %168 = vmatpush1.bf16.msra.mxu0 %v151
      %169 = vmatprep.subr.bf16.mxu0 %v155
      %170 = vmatpush1.bf16.msra.mxu0 %v154
      %171 = vmatprep.subr.bf16.mxu0 0
      %172 = vmatpush1.bf16.msra.mxu0 0
      %173 = vmatprep.subr.bf16.mxu0 0
      %174 = vmatpush1.bf16.msra.mxu0 0
      %175 = vmatprep.subr.bf16.mxu0 0
      %176 = vmatpush1.bf16.msra.mxu0 0
      %177 = vmatprep.subr.bf16.mxu0 0
      %178 = vmatpush1.bf16.msra.mxu0 0
      %179 = vmatprep.subr.bf16.mxu0 0
      %180 = vmatpush1.bf16.msra.mxu0 0
      %181 = vmatprep.subr.bf16.mxu0 0
      %182 = vmatpush1.bf16.msra.mxu0 0
      %183 = vmatprep.subr.bf16.mxu0 0
      %184 = vmatpush1.bf16.msra.mxu0 0
      %185 = vmatprep.subr.bf16.mxu0 0
      %186 = vmatpush1.bf16.msra.mxu0 0
      %187 = vmatprep.subr.bf16.mxu0 0
      %188 = vmatpush1.bf16.msra.mxu0 0
      %189 = vmatprep.subr.bf16.mxu0 0
      %190 = vmatpush1.bf16.msra.mxu0 0
      %191 = vmatprep.subr.bf16.mxu0 0
      %192 = vmatpush1.bf16.msra.mxu0 0
      %193 = vmatprep.subr.bf16.mxu0 0
      %194 = vmatpush1.bf16.msra.mxu0 0
      %195 = vmatprep.subr.bf16.mxu0 0
      %196 = vmatpush1.bf16.msra.mxu0 0
      %197 = vmatprep.subr.bf16.mxu0 0
      %198 = vmatpush1.bf16.msra.mxu0 0
      %199 = vmatprep.mubr.bf16.mxu0 0
      %200 = vmatmul.mubr.bf16.gmra.mrb[0].mxu0 %v165
      %v201 = vpop.f32.mrb[0].mxu0
      %v202 = vadd.f32 0.0, %v201
      %v203 = vpop.f32.mrb[0].mxu0
      %v204 = vadd.f32 0.0, %v203
      %v205 = vpop.f32.mrb[0].mxu0
      %v206 = vpop.f32.mrb[0].mxu0
      %207 = vdwg.mxu0
      %208 = vmatprep.subr.bf16.mxu0 0
      %209 = vmatpush1.bf16.msra.mxu0 %v153
      %210 = vmatprep.subr.bf16.mxu0 0
      %211 = vmatpush1.bf16.msra.mxu0 %v156
      %212 = vmatprep.subr.bf16.mxu0 0
      %213 = vmatpush1.bf16.msra.mxu0 0
      %214 = vmatprep.subr.bf16.mxu0 0
      %215 = vmatpush1.bf16.msra.mxu0 0
      %216 = vmatprep.subr.bf16.mxu0 0
      %217 = vmatpush1.bf16.msra.mxu0 0
      %218 = vmatprep.subr.bf16.mxu0 0
      %219 = vmatpush1.bf16.msra.mxu0 0
      %220 = vmatprep.subr.bf16.mxu0 0
      %221 = vmatpush1.bf16.msra.mxu0 0
      %222 = vmatprep.subr.bf16.mxu0 0
      %223 = vmatpush1.bf16.msra.mxu0 0
      %224 = vmatprep.subr.bf16.mxu0 0
      %225 = vmatpush1.bf16.msra.mxu0 0
      %226 = vmatprep.subr.bf16.mxu0 0
      %227 = vmatpush1.bf16.msra.mxu0 0
      %228 = vmatprep.subr.bf16.mxu0 0
      %229 = vmatpush1.bf16.msra.mxu0 0
      %230 = vmatprep.subr.bf16.mxu0 0
      %231 = vmatpush1.bf16.msra.mxu0 0
      %232 = vmatprep.subr.bf16.mxu0 0
      %233 = vmatpush1.bf16.msra.mxu0 0
      %234 = vmatprep.subr.bf16.mxu0 0
      %235 = vmatpush1.bf16.msra.mxu0 0
      %236 = vmatprep.subr.bf16.mxu0 0
      %237 = vmatpush1.bf16.msra.mxu0 0
      %238 = vmatprep.subr.bf16.mxu0 0
      %239 = vmatpush1.bf16.msra.mxu0 0
      %240 = vmatprep.mubr.bf16.mxu0 0
      %241 = vmatmul.mubr.bf16.gmra.mrb[0].mxu0 %v165
      %v242 = vpop.f32.mrb[0].mxu0
      %v243 = vadd.f32 0.0, %v242
      %v244 = vpop.f32.mrb[0].mxu0
      %v245 = vpop.f32.mrb[0].mxu0
      %v246 = vpop.f32.mrb[0].mxu0
      %247 = vdwg.mxu0
      %248 = vst [vmem:[#allocation3] sm:$0xf] %v202
      %v249 = vld [vmem:[%s1] sm:$0xf]
      %vm250 = vcmask 257024
      %251 = vst.msk [vmem:[#allocation4] sm:$0xf] %vm250, %v249
      %v252 = vld [vmem:[%s2] sm:$0xf]
      %v253 = vadd.f32 %v204, %v104
      %v254 = vadd.f32 %v243, %v108
      %vm255 = vcmp.gt.f32.partialorder %v253, 20.0
      %vm256 = vcmp.gt.f32.partialorder %v254, 20.0
      %v257 = vmin.f32 %v253, 20.0
      %v258 = vmin.f32 %v254, 20.0
      %v259 = vmul.f32 %v257, 1.442695
      %v260 = vpow.pop %v259
      %v261 = vmul.f32 %v258, 1.442695
      %v262 = vpow.pop %v261
      %v263 = vadd.f32 %v260, 1.0
      %v264 = vlog2.pop %v263
      %v265 = vmul.f32 %v264, 0.6931472
      %v266 = vmul.f32 -0.5, %v260
      %v267 = vadd.f32 %v266, 1.0
      %v268 = vmul.f32 %v267, %v260
      %v269 = vand.u32 2147483647, %v260
      %vm270 = vcmp.lt.f32.partialorder %v269, 0.0004427343
      %v271 = vsel %vm270, %v268, %v265
      %v272 = vadd.f32 %v262, 1.0
      %v273 = vlog2.pop %v272
      %v274 = vmul.f32 %v273, 0.6931472
      %v275 = vmul.f32 -0.5, %v262
      %v276 = vadd.f32 %v275, 1.0
      %v277 = vmul.f32 %v276, %v262
      %v278 = vand.u32 2147483647, %v262
      %vm279 = vcmp.lt.f32.partialorder %v278, 0.0004427343
      %v280 = vsel %vm279, %v277, %v274
      %v281 = vsel %vm255, %v253, %v271
      %v282 = vsel %vm256, %v254, %v280
      %v283 = vpack.c.bf16 %v281, %v281
      %v284 = vpack.c.bf16 %v282, %v282
      %v310 = vunpack.c.l.b16 %v49
      %v311 = vunpack.c.l.b16 %v50
      %v312 = vunpack.c.l.b16 %v51
      %v313 = vunpack.c.l.b16 %v52
      %v314 = vunpack.c.l.b16 %v53
      %v315 = vunpack.c.l.b16 %v54
      %v316 = vunpack.c.l.b16 %v55
      %v317 = vunpack.c.l.b16 %v56
      %v318 = vunpack.c.l.b16 %v57
      %v319 = vunpack.c.l.b16 %v58
      %v320 = vunpack.c.l.b16 %v59
      %v321 = vunpack.c.l.b16 %v60
      %v322 = vunpack.c.l.b16 %v61
      %v323 = vunpack.c.l.b16 %v62
      %v324 = vunpack.c.l.b16 %v63
      %v325 = vunpack.c.l.b16 %v64
      %v326 = vunpack.c.l.b16 %v65
      %v327 = vunpack.c.l.b16 %v66
      %v328 = vunpack.c.l.b16 %v67
      %v329 = vunpack.c.l.b16 %v68
      %v330 = vunpack.c.l.b16 %v69
      %v331 = vunpack.c.l.b16 %v70
      %v332 = vunpack.c.l.b16 %v71
      %v333 = vunpack.c.l.b16 %v72
      %v334 = vunpack.c.l.b16 %v73
      %v335 = vpack.c.b16 %v311, %v310
      %v336 = vpack.c.b16 %v313, %v312
      %v337 = vpack.c.b16 %v315, %v314
      %v338 = vpack.c.b16 %v317, %v316
      %v339 = vpack.c.b16 %v319, %v318
      %v340 = vpack.c.b16 %v321, %v320
      %v341 = vpack.c.b16 %v323, %v322
      %v342 = vpack.c.b16 %v325, %v324
      %v343 = vpack.c.b16 %v327, %v326
      %v344 = vpack.c.b16 %v329, %v328
      %v345 = vpack.c.b16 %v331, %v330
      %v346 = vpack.c.b16 %v333, %v332
      %v347 = vpack.c.b16 %v334, %v334
      %vm360 = vcmask 588800
      %v362 = vsel %vm360, %v284, 0
      %vm364 = vcmask 1043456
      %v366 = vsel %vm364, %v347, 0
      %368 = vmatprep.subr.bf16.mxu0 0
      %369 = vmatpush1.bf16.msra.mxu0 %v335
      %370 = vmatprep.subr.bf16.mxu0 0
      %371 = vmatpush1.bf16.msra.mxu0 %v336
      %372 = vmatprep.subr.bf16.mxu0 0
      %373 = vmatpush1.bf16.msra.mxu0 %v337
      %374 = vmatprep.subr.bf16.mxu0 0
      %375 = vmatpush1.bf16.msra.mxu0 %v338
      %376 = vmatprep.subr.bf16.mxu0 0
      %377 = vmatpush1.bf16.msra.mxu0 %v339
      %378 = vmatprep.subr.bf16.mxu0 0
      %379 = vmatpush1.bf16.msra.mxu0 %v340
      %380 = vmatprep.subr.bf16.mxu0 0
      %381 = vmatpush1.bf16.msra.mxu0 %v341
      %382 = vmatprep.subr.bf16.mxu0 0
      %383 = vmatpush1.bf16.msra.mxu0 %v342
      %384 = vmatprep.subr.bf16.mxu0 0
      %385 = vmatpush1.bf16.msra.mxu0 %v343
      %386 = vmatprep.subr.bf16.mxu0 0
      %387 = vmatpush1.bf16.msra.mxu0 %v344
      %388 = vmatprep.subr.bf16.mxu0 0
      %389 = vmatpush1.bf16.msra.mxu0 %v345
      %390 = vmatprep.subr.bf16.mxu0 0
      %391 = vmatpush1.bf16.msra.mxu0 %v346
      %392 = vmatprep.subr.bf16.mxu0 0
      %393 = vmatpush1.bf16.msra.mxu0 %v366
      %394 = vmatprep.subr.bf16.mxu0 0
      %395 = vmatpush1.bf16.msra.mxu0 0
      %396 = vmatprep.subr.bf16.mxu0 0
      %397 = vmatpush1.bf16.msra.mxu0 0
      %398 = vmatprep.subr.bf16.mxu0 0
      %399 = vmatpush1.bf16.msra.mxu0 0
      %400 = vmatprep.mubr.bf16.mxu0 %v362
      %401 = vmatmul.mubr.bf16.gmra.mrb[0].mxu0 %v283
      %v402 = vpop.f32.mrb[0].mxu0
      %v403 = vadd.f32 %v116, %v402
      %v404 = vpop.f32.mrb[0].mxu0
      %v405 = vpop.f32.mrb[0].mxu0
      %v406 = vpop.f32.mrb[0].mxu0
      %407 = vdwg.mxu0
      %vm408 = vcmp.gt.f32.partialorder %v403, 20.0
      %v409 = vmin.f32 %v403, 20.0
      %v410 = vmul.f32 %v409, 1.442695
      %v411 = vpow.pop %v410
      %v412 = vadd.f32 %v411, 1.0
      %v413 = vlog2.pop %v412
      %v414 = vmul.f32 %v413, 0.6931472
      %v415 = vmul.f32 -0.5, %v411
      %v416 = vadd.f32 %v415, 1.0
      %v417 = vmul.f32 %v416, %v411
      %v418 = vand.u32 2147483647, %v411
      %vm419 = vcmp.lt.f32.partialorder %v418, 0.0004427343
      %v420 = vsel %vm419, %v417, %v414
      %v421 = vsel %vm408, %v403, %v420
      %v447 = vunpack.c.l.b16 %v74
      %v448 = vunpack.c.l.b16 %v75
      %v449 = vunpack.c.l.b16 %v76
      %v450 = vunpack.c.l.b16 %v77
      %v451 = vunpack.c.l.b16 %v78
      %v452 = vunpack.c.l.b16 %v79
      %v453 = vunpack.c.l.b16 %v80
      %v454 = vunpack.c.l.b16 %v81
      %v455 = vunpack.c.l.b16 %v82
      %v456 = vunpack.c.l.b16 %v83
      %v457 = vunpack.c.l.b16 %v84
      %v458 = vunpack.c.l.b16 %v85
      %v459 = vunpack.c.l.b16 %v86
      %v460 = vunpack.c.l.b16 %v87
      %v461 = vunpack.c.l.b16 %v88
      %v462 = vunpack.c.l.b16 %v89
      %v463 = vunpack.c.l.b16 %v90
      %v464 = vunpack.c.l.b16 %v91
      %v465 = vunpack.c.l.b16 %v92
      %v466 = vunpack.c.l.b16 %v93
      %v467 = vunpack.c.l.b16 %v94
      %v468 = vunpack.c.l.b16 %v95
      %v469 = vunpack.c.l.b16 %v96
      %v470 = vunpack.c.l.b16 %v97
      %v471 = vunpack.c.l.b16 %v98
      %v472 = vpack.c.b16 %v448, %v447
      %v473 = vpack.c.b16 %v450, %v449
      %v474 = vpack.c.b16 %v452, %v451
      %v475 = vpack.c.b16 %v454, %v453
      %v476 = vpack.c.b16 %v456, %v455
      %v477 = vpack.c.b16 %v458, %v457
      %v478 = vpack.c.b16 %v460, %v459
      %v479 = vpack.c.b16 %v462, %v461
      %v480 = vpack.c.b16 %v464, %v463
      %v481 = vpack.c.b16 %v466, %v465
      %v482 = vpack.c.b16 %v468, %v467
      %v483 = vpack.c.b16 %v470, %v469
      %v484 = vpack.c.b16 %v471, %v471
      %v498 = vsel %vm364, %v484, 0
      %500 = vmatprep.subr.bf16.mxu0 0
      %501 = vmatpush1.bf16.msra.mxu0 %v472
      %502 = vmatprep.subr.bf16.mxu0 0
      %503 = vmatpush1.bf16.msra.mxu0 %v473
      %504 = vmatprep.subr.bf16.mxu0 0
      %505 = vmatpush1.bf16.msra.mxu0 %v474
      %506 = vmatprep.subr.bf16.mxu0 0
      %507 = vmatpush1.bf16.msra.mxu0 %v475
      %508 = vmatprep.subr.bf16.mxu0 0
      %509 = vmatpush1.bf16.msra.mxu0 %v476
      %510 = vmatprep.subr.bf16.mxu0 0
      %511 = vmatpush1.bf16.msra.mxu0 %v477
      %512 = vmatprep.subr.bf16.mxu0 0
      %513 = vmatpush1.bf16.msra.mxu0 %v478
      %514 = vmatprep.subr.bf16.mxu0 0
      %515 = vmatpush1.bf16.msra.mxu0 %v479
      %516 = vmatprep.subr.bf16.mxu0 0
      %517 = vmatpush1.bf16.msra.mxu0 %v480
      %518 = vmatprep.subr.bf16.mxu0 0
      %519 = vmatpush1.bf16.msra.mxu0 %v481
      %520 = vmatprep.subr.bf16.mxu0 0
      %521 = vmatpush1.bf16.msra.mxu0 %v482
      %522 = vmatprep.subr.bf16.mxu0 0
      %523 = vmatpush1.bf16.msra.mxu0 %v483
      %524 = vmatprep.subr.bf16.mxu0 0
      %525 = vmatpush1.bf16.msra.mxu0 %v498
      %526 = vmatprep.subr.bf16.mxu0 0
      %527 = vmatpush1.bf16.msra.mxu0 0
      %528 = vmatprep.subr.bf16.mxu0 0
      %529 = vmatpush1.bf16.msra.mxu0 0
      %530 = vmatprep.subr.bf16.mxu0 0
      %531 = vmatpush1.bf16.msra.mxu0 0
      %532 = vmatprep.mubr.bf16.mxu0 %v362
      %533 = vmatmul.mubr.bf16.gmra.mrb[0].mxu0 %v283
      %v534 = vpop.f32.mrb[0].mxu0
      %v535 = vadd.f32 %v123, %v534
      %v536 = vpop.f32.mrb[0].mxu0
      %v537 = vpop.f32.mrb[0].mxu0
      %v538 = vpop.f32.mrb[0].mxu0
      %539 = vdwg.mxu0
      %vm540 = vcmp.gt.f32.partialorder %v535, 20.0
      %v541 = vmin.f32 %v535, 20.0
      %v542 = vmul.f32 %v541, 1.442695
      %v543 = vpow.pop %v542
      %v544 = vadd.f32 %v543, 1.0
      %v545 = vlog2.pop %v544
      %v546 = vmul.f32 %v545, 0.6931472
      %v547 = vmul.f32 -0.5, %v543
      %v548 = vadd.f32 %v547, 1.0
      %v549 = vmul.f32 %v548, %v543
      %v550 = vand.u32 2147483647, %v543
      %vm551 = vcmp.lt.f32.partialorder %v550, 0.0004427343
      %v552 = vsel %vm551, %v549, %v546
      %v553 = vsel %vm540, %v535, %v552
      %v554 = vrsqrt.pop %v553
      %v555 = vmul.f32 %v553, %v554
      %vm556 = vcmp.eq.f32.partialorder %v553, inf
      %v557 = vsel %vm556, %v553, %v555
      %vm558 = vcmp.eq.f32.partialorder %v553, 0.0
      %v559 = vand.u32 %v553, 2147483648
      %v560 = vsel %vm558, %v559, %v557
      %v561 = vmul.f32 %v560, %v252
      %v562 = vadd.f32 %v421, %v561
      %vm563 = vcmp.gt.f32.partialorder %v562, 20.0
      %v564 = vmin.f32 %v562, 20.0
      %v565 = vmul.f32 %v564, 1.442695
      %v566 = vpow.pop %v565
      %v567 = vadd.f32 %v566, 1.0
      %v568 = vlog2.pop %v567
      %v569 = vmul.f32 %v568, 0.6931472
      %v570 = vmul.f32 -0.5, %v566
      %v571 = vadd.f32 %v570, 1.0
      %v572 = vmul.f32 %v571, %v566
      %v573 = vand.u32 2147483647, %v566
      %vm574 = vcmp.lt.f32.partialorder %v573, 0.0004427343
      %v575 = vsel %vm574, %v572, %v569
      %v576 = vsel %vm563, %v562, %v575
      %vm577 = vcmask 60416
      %578 = vst.msk [vmem:[#allocation2] sm:$0xf] %vm577, %v576
    $region49: #{tpu_custom_call.1} parent=1 // pred_fallthru
      _
    %v579 = vld [vmem:[#allocation2] sm:$0xf]
    %v580 = vld [vmem:[#allocation3] sm:$0xf]
    %v581 = vld [vmem:[#allocation4] sm:$0xf]
    %v582 = vpack.c.bf16 %v579, %v579
    %vm583 = vcmask 64512
    %v585 = vsel %vm583, %v582, 0
    %vm587 = vcmask 1043456
    %v589 = vsel %vm587, %v40, 0
    %591 = vmatprep.subr.bf16.mxu0 0
    %592 = vmatpush1.bf16.msra.mxu0 %v589
    %593 = vmatprep.subr.bf16.mxu0 0
    %594 = vmatpush1.bf16.msra.mxu0 0
    %595 = vmatprep.subr.bf16.mxu0 0
    %596 = vmatpush1.bf16.msra.mxu0 0
    %597 = vmatprep.subr.bf16.mxu0 0
    %598 = vmatpush1.bf16.msra.mxu0 0
    %599 = vmatprep.subr.bf16.mxu0 0
    %600 = vmatpush1.bf16.msra.mxu0 0
    %601 = vmatprep.subr.bf16.mxu0 0
    %602 = vmatpush1.bf16.msra.mxu0 0
    %603 = vmatprep.subr.bf16.mxu0 0
    %604 = vmatpush1.bf16.msra.mxu0 0
    %605 = vmatprep.subr.bf16.mxu0 0
    %606 = vmatpush1.bf16.msra.mxu0 0
    %607 = vmatprep.subr.bf16.mxu0 0
    %608 = vmatpush1.bf16.msra.mxu0 0
    %609 = vmatprep.subr.bf16.mxu0 0
    %610 = vmatpush1.bf16.msra.mxu0 0
    %611 = vmatprep.subr.bf16.mxu0 0
    %612 = vmatpush1.bf16.msra.mxu0 0
    %613 = vmatprep.subr.bf16.mxu0 0
    %614 = vmatpush1.bf16.msra.mxu0 0
    %615 = vmatprep.subr.bf16.mxu0 0
    %616 = vmatpush1.bf16.msra.mxu0 0
    %617 = vmatprep.subr.bf16.mxu0 0
    %618 = vmatpush1.bf16.msra.mxu0 0
    %619 = vmatprep.subr.bf16.mxu0 0
    %620 = vmatpush1.bf16.msra.mxu0 0
    %621 = vmatprep.subr.bf16.mxu0 0
    %622 = vmatpush1.bf16.msra.mxu0 0
    %623 = vmatprep.mubr.bf16.mxu0 0
    %624 = vmatmul.mubr.bf16.gmra.mrb[0].mxu0 %v585
    %v625 = vpop.f32.mrb[0].mxu0
    %v626 = vadd.f32 %v580, %v625
    %v627 = vpop.f32.mrb[0].mxu0
    %v628 = vpop.f32.mrb[0].mxu0
    %v629 = vpop.f32.mrb[0].mxu0
    %630 = vdwg.mxu0
    %v631 = vxor.u32 %v626, 2147483648
    %v632 = vmul.f32 %v631, 1.442695
    %v633 = vpow.pop %v632
    %v634 = vadd.f32 %v633, 1.0
    %v635 = vrcp.pop %v634
    %v636 = vmul.f32 1.0, %v635
    %v637 = vtanh.pop %v626
    %639 = vrot.lane.b32.xlu0 %v581, 32
    %v640 = vpop.permute.xlu0 %639
    %v642 = vmul.f32 %v636, %v640
    %644 = vrot.lane.b32.xlu0 %v637, 64
    %v645 = vpop.permute.xlu0 %644
    %v647 = vmul.f32 %v636, %v645
    %649 = vrot.lane.b32.xlu0 %v647, 32
    %v650 = vpop.permute.xlu0 %649
    %v652 = vadd.f32 %v642, %v650
    %v653 = vtanh.pop %v652
    %655 = vrot.lane.b32.xlu0 %v653, 64
    %v656 = vpop.permute.xlu0 %655
    %v658 = vmul.f32 %v636, %v656
    %v659 = vpack.c.bf16 %v658, %v658
    %661 = vrot.lane.b32.xlu0 %v659, 32
    %v662 = vpop.permute.xlu0 %661
    %v671 = vunpack.c.l.b16 %v41
    %v672 = vunpack.c.h.b16 %v41
    %v673 = vunpack.c.l.b16 %v42
    %v674 = vunpack.c.l.b16 %v43
    %v675 = vunpack.c.h.b16 %v43
    %v676 = vunpack.c.l.b16 %v44
    %v677 = vunpack.c.l.b16 %v45
    %v678 = vunpack.c.h.b16 %v45
    %v679 = vunpack.c.l.b16 %v46
    %v680 = vunpack.c.l.b16 %v47
    %v681 = vunpack.c.h.b16 %v47
    %v682 = vunpack.c.l.b16 %v48
    %v683 = vpack.c.b16 %v674, %v671
    %v684 = vpack.c.b16 %v675, %v672
    %v685 = vpack.c.b16 %v676, %v673
    %v686 = vpack.c.b16 %v680, %v677
    %v687 = vpack.c.b16 %v681, %v678
    %v688 = vpack.c.b16 %v682, %v679
    %vm695 = vcmask 261120
    %v697 = vsel %vm695, %v662, 0
    %699 = vmatprep.subr.bf16.mxu0 %v684
    %700 = vmatpush1.bf16.msra.mxu0 %v683
    %701 = vmatprep.subr.bf16.mxu0 %v687
    %702 = vmatpush1.bf16.msra.mxu0 %v686
    %703 = vmatprep.subr.bf16.mxu0 0
    %704 = vmatpush1.bf16.msra.mxu0 0
    %705 = vmatprep.subr.bf16.mxu0 0
    %706 = vmatpush1.bf16.msra.mxu0 0
    %707 = vmatprep.subr.bf16.mxu0 0
    %708 = vmatpush1.bf16.msra.mxu0 0
    %709 = vmatprep.subr.bf16.mxu0 0
    %710 = vmatpush1.bf16.msra.mxu0 0
    %711 = vmatprep.subr.bf16.mxu0 0
    %712 = vmatpush1.bf16.msra.mxu0 0
    %713 = vmatprep.subr.bf16.mxu0 0
    %714 = vmatpush1.bf16.msra.mxu0 0
    %715 = vmatprep.subr.bf16.mxu0 0
    %716 = vmatpush1.bf16.msra.mxu0 0
    %717 = vmatprep.subr.bf16.mxu0 0
    %718 = vmatpush1.bf16.msra.mxu0 0
    %719 = vmatprep.subr.bf16.mxu0 0
    %720 = vmatpush1.bf16.msra.mxu0 0
    %721 = vmatprep.subr.bf16.mxu0 0
    %722 = vmatpush1.bf16.msra.mxu0 0
    %723 = vmatprep.subr.bf16.mxu0 0
    %724 = vmatpush1.bf16.msra.mxu0 0
    %725 = vmatprep.subr.bf16.mxu0 0
    %726 = vmatpush1.bf16.msra.mxu0 0
    %727 = vmatprep.subr.bf16.mxu0 0
    %728 = vmatpush1.bf16.msra.mxu0 0
    %729 = vmatprep.subr.bf16.mxu0 0
    %730 = vmatpush1.bf16.msra.mxu0 0
    %731 = vmatprep.mubr.bf16.mxu0 0
    %732 = vmatmul.mubr.bf16.gmra.mrb[0].mxu0 %v697
    %v733 = vpop.f32.mrb[0].mxu0
    %v734 = vadd.f32 0.0, %v733
    %v735 = vpop.f32.mrb[0].mxu0
    %v736 = vadd.f32 0.0, %v735
    %v737 = vpop.f32.mrb[0].mxu0
    %v738 = vpop.f32.mrb[0].mxu0
    %739 = vdwg.mxu0
    %740 = vmatprep.subr.bf16.mxu0 0
    %741 = vmatpush1.bf16.msra.mxu0 %v685
    %742 = vmatprep.subr.bf16.mxu0 0
    %743 = vmatpush1.bf16.msra.mxu0 %v688
    %744 = vmatprep.subr.bf16.mxu0 0
    %745 = vmatpush1.bf16.msra.mxu0 0
    %746 = vmatprep.subr.bf16.mxu0 0
    %747 = vmatpush1.bf16.msra.mxu0 0
    %748 = vmatprep.subr.bf16.mxu0 0
    %749 = vmatpush1.bf16.msra.mxu0 0
    %750 = vmatprep.subr.bf16.mxu0 0
    %751 = vmatpush1.bf16.msra.mxu0 0
    %752 = vmatprep.subr.bf16.mxu0 0
    %753 = vmatpush1.bf16.msra.mxu0 0
    %754 = vmatprep.subr.bf16.mxu0 0
    %755 = vmatpush1.bf16.msra.mxu0 0
    %756 = vmatprep.subr.bf16.mxu0 0
    %757 = vmatpush1.bf16.msra.mxu0 0
    %758 = vmatprep.subr.bf16.mxu0 0
    %759 = vmatpush1.bf16.msra.mxu0 0
    %760 = vmatprep.subr.bf16.mxu0 0
    %761 = vmatpush1.bf16.msra.mxu0 0
    %762 = vmatprep.subr.bf16.mxu0 0
    %763 = vmatpush1.bf16.msra.mxu0 0
    %764 = vmatprep.subr.bf16.mxu0 0
    %765 = vmatpush1.bf16.msra.mxu0 0
    %766 = vmatprep.subr.bf16.mxu0 0
    %767 = vmatpush1.bf16.msra.mxu0 0
    %768 = vmatprep.subr.bf16.mxu0 0
    %769 = vmatpush1.bf16.msra.mxu0 0
    %770 = vmatprep.subr.bf16.mxu0 0
    %771 = vmatpush1.bf16.msra.mxu0 0
    %772 = vmatprep.mubr.bf16.mxu0 0
    %773 = vmatmul.mubr.bf16.gmra.mrb[0].mxu0 %v697
    %v774 = vpop.f32.mrb[0].mxu0
    %v775 = vadd.f32 0.0, %v774
    %v776 = vpop.f32.mrb[0].mxu0
    %v777 = vpop.f32.mrb[0].mxu0
    %v778 = vpop.f32.mrb[0].mxu0
    %779 = vdwg.mxu0
    %v780 = vld [vmem:[%s3] sm:$0xf]
    %v781 = vadd.f32 %v736, %v104
    %v782 = vadd.f32 %v775, %v108
    %vm783 = vcmp.gt.f32.partialorder %v781, 20.0
    %vm784 = vcmp.gt.f32.partialorder %v782, 20.0
    %v785 = vmin.f32 %v781, 20.0
    %v786 = vmin.f32 %v782, 20.0
    %v787 = vmul.f32 %v785, 1.442695
    %v788 = vpow.pop %v787
    %v789 = vmul.f32 %v786, 1.442695
    %v790 = vpow.pop %v789
    %v791 = vadd.f32 %v788, 1.0
    %v792 = vlog2.pop %v791
    %v793 = vmul.f32 %v792, 0.6931472
    %v794 = vmul.f32 -0.5, %v788
    %v795 = vadd.f32 %v794, 1.0
    %v796 = vmul.f32 %v795, %v788
    %v797 = vand.u32 2147483647, %v788
    %vm798 = vcmp.lt.f32.partialorder %v797, 0.0004427343
    %v799 = vsel %vm798, %v796, %v793
    %v800 = vadd.f32 %v790, 1.0
    %v801 = vlog2.pop %v800
    %v802 = vmul.f32 %v801, 0.6931472
    %v803 = vmul.f32 -0.5, %v790
    %v804 = vadd.f32 %v803, 1.0
    %v805 = vmul.f32 %v804, %v790
    %v806 = vand.u32 2147483647, %v790
    %vm807 = vcmp.lt.f32.partialorder %v806, 0.0004427343
    %v808 = vsel %vm807, %v805, %v802
    %v809 = vsel %vm783, %v781, %v799
    %v810 = vsel %vm784, %v782, %v808
    %v811 = vpack.c.bf16 %v809, %v809
    %v812 = vpack.c.bf16 %v810, %v810
    %v838 = vunpack.c.l.b16 %v49
    %v839 = vunpack.c.l.b16 %v50
    %v840 = vunpack.c.l.b16 %v51
    %v841 = vunpack.c.l.b16 %v52
    %v842 = vunpack.c.l.b16 %v53
    %v843 = vunpack.c.l.b16 %v54
    %v844 = vunpack.c.l.b16 %v55
    %v845 = vunpack.c.l.b16 %v56
    %v846 = vunpack.c.l.b16 %v57
    %v847 = vunpack.c.l.b16 %v58
    %v848 = vunpack.c.l.b16 %v59
    %v849 = vunpack.c.l.b16 %v60
    %v850 = vunpack.c.l.b16 %v61
    %v851 = vunpack.c.l.b16 %v62
    %v852 = vunpack.c.l.b16 %v63
    %v853 = vunpack.c.l.b16 %v64
    %v854 = vunpack.c.l.b16 %v65
    %v855 = vunpack.c.l.b16 %v66
    %v856 = vunpack.c.l.b16 %v67
    %v857 = vunpack.c.l.b16 %v68
    %v858 = vunpack.c.l.b16 %v69
    %v859 = vunpack.c.l.b16 %v70
    %v860 = vunpack.c.l.b16 %v71
    %v861 = vunpack.c.l.b16 %v72
    %v862 = vunpack.c.l.b16 %v73
    %v863 = vpack.c.b16 %v839, %v838
    %v864 = vpack.c.b16 %v841, %v840
    %v865 = vpack.c.b16 %v843, %v842
    %v866 = vpack.c.b16 %v845, %v844
    %v867 = vpack.c.b16 %v847, %v846
    %v868 = vpack.c.b16 %v849, %v848
    %v869 = vpack.c.b16 %v851, %v850
    %v870 = vpack.c.b16 %v853, %v852
    %v871 = vpack.c.b16 %v855, %v854
    %v872 = vpack.c.b16 %v857, %v856
    %v873 = vpack.c.b16 %v859, %v858
    %v874 = vpack.c.b16 %v861, %v860
    %v875 = vpack.c.b16 %v862, %v862
    %vm888 = vcmask 588800
    %v890 = vsel %vm888, %v812, 0
    %v893 = vsel %vm587, %v875, 0
    %895 = vmatprep.subr.bf16.mxu0 0
    %896 = vmatpush1.bf16.msra.mxu0 %v863
    %897 = vmatprep.subr.bf16.mxu0 0
    %898 = vmatpush1.bf16.msra.mxu0 %v864
    %899 = vmatprep.subr.bf16.mxu0 0
    %900 = vmatpush1.bf16.msra.mxu0 %v865
    %901 = vmatprep.subr.bf16.mxu0 0
    %902 = vmatpush1.bf16.msra.mxu0 %v866
    %903 = vmatprep.subr.bf16.mxu0 0
    %904 = vmatpush1.bf16.msra.mxu0 %v867
    %905 = vmatprep.subr.bf16.mxu0 0
    %906 = vmatpush1.bf16.msra.mxu0 %v868
    %907 = vmatprep.subr.bf16.mxu0 0
    %908 = vmatpush1.bf16.msra.mxu0 %v869
    %909 = vmatprep.subr.bf16.mxu0 0
    %910 = vmatpush1.bf16.msra.mxu0 %v870
    %911 = vmatprep.subr.bf16.mxu0 0
    %912 = vmatpush1.bf16.msra.mxu0 %v871
    %913 = vmatprep.subr.bf16.mxu0 0
    %914 = vmatpush1.bf16.msra.mxu0 %v872
    %915 = vmatprep.subr.bf16.mxu0 0
    %916 = vmatpush1.bf16.msra.mxu0 %v873
    %917 = vmatprep.subr.bf16.mxu0 0
    %918 = vmatpush1.bf16.msra.mxu0 %v874
    %919 = vmatprep.subr.bf16.mxu0 0
    %920 = vmatpush1.bf16.msra.mxu0 %v893
    %921 = vmatprep.subr.bf16.mxu0 0
    %922 = vmatpush1.bf16.msra.mxu0 0
    %923 = vmatprep.subr.bf16.mxu0 0
    %924 = vmatpush1.bf16.msra.mxu0 0
    %925 = vmatprep.subr.bf16.mxu0 0
    %926 = vmatpush1.bf16.msra.mxu0 0
    %927 = vmatprep.mubr.bf16.mxu0 %v890
    %928 = vmatmul.mubr.bf16.gmra.mrb[0].mxu0 %v811
    %v929 = vpop.f32.mrb[0].mxu0
    %v930 = vadd.f32 %v116, %v929
    %v931 = vpop.f32.mrb[0].mxu0
    %v932 = vpop.f32.mrb[0].mxu0
    %v933 = vpop.f32.mrb[0].mxu0
    %934 = vdwg.mxu0
    %vm935 = vcmp.gt.f32.partialorder %v930, 20.0
    %v936 = vmin.f32 %v930, 20.0
    %v937 = vmul.f32 %v936, 1.442695
    %v938 = vpow.pop %v937
    %v939 = vadd.f32 %v938, 1.0
    %v940 = vlog2.pop %v939
    %v941 = vmul.f32 %v940, 0.6931472
    %v942 = vmul.f32 -0.5, %v938
    %v943 = vadd.f32 %v942, 1.0
    %v944 = vmul.f32 %v943, %v938
    %v945 = vand.u32 2147483647, %v938
    %vm946 = vcmp.lt.f32.partialorder %v945, 0.0004427343
    %v947 = vsel %vm946, %v944, %v941
    %v948 = vsel %vm935, %v930, %v947
    %v974 = vunpack.c.l.b16 %v74
    %v975 = vunpack.c.l.b16 %v75
    %v976 = vunpack.c.l.b16 %v76
    %v977 = vunpack.c.l.b16 %v77
    %v978 = vunpack.c.l.b16 %v78
    %v979 = vunpack.c.l.b16 %v79
    %v980 = vunpack.c.l.b16 %v80
    %v981 = vunpack.c.l.b16 %v81
    %v982 = vunpack.c.l.b16 %v82
    %v983 = vunpack.c.l.b16 %v83
    %v984 = vunpack.c.l.b16 %v84
    %v985 = vunpack.c.l.b16 %v85
    %v986 = vunpack.c.l.b16 %v86
    %v987 = vunpack.c.l.b16 %v87
    %v988 = vunpack.c.l.b16 %v88
    %v989 = vunpack.c.l.b16 %v89
    %v990 = vunpack.c.l.b16 %v90
    %v991 = vunpack.c.l.b16 %v91
    %v992 = vunpack.c.l.b16 %v92
    %v993 = vunpack.c.l.b16 %v93
    %v994 = vunpack.c.l.b16 %v94
    %v995 = vunpack.c.l.b16 %v95
    %v996 = vunpack.c.l.b16 %v96
    %v997 = vunpack.c.l.b16 %v97
    %v998 = vunpack.c.l.b16 %v98
    %v999 = vpack.c.b16 %v975, %v974
    %v1000 = vpack.c.b16 %v977, %v976
    %v1001 = vpack.c.b16 %v979, %v978
    %v1002 = vpack.c.b16 %v981, %v980
    %v1003 = vpack.c.b16 %v983, %v982
    %v1004 = vpack.c.b16 %v985, %v984
    %v1005 = vpack.c.b16 %v987, %v986
    %v1006 = vpack.c.b16 %v989, %v988
    %v1007 = vpack.c.b16 %v991, %v990
    %v1008 = vpack.c.b16 %v993, %v992
    %v1009 = vpack.c.b16 %v995, %v994
    %v1010 = vpack.c.b16 %v997, %v996
    %v1011 = vpack.c.b16 %v998, %v998
    %v1025 = vsel %vm587, %v1011, 0
    %1027 = vmatprep.subr.bf16.mxu0 0
    %1028 = vmatpush1.bf16.msra.mxu0 %v999
    %1029 = vmatprep.subr.bf16.mxu0 0
    %1030 = vmatpush1.bf16.msra.mxu0 %v1000
    %1031 = vmatprep.subr.bf16.mxu0 0
    %1032 = vmatpush1.bf16.msra.mxu0 %v1001
    %1033 = vmatprep.subr.bf16.mxu0 0
    %1034 = vmatpush1.bf16.msra.mxu0 %v1002
    %1035 = vmatprep.subr.bf16.mxu0 0
    %1036 = vmatpush1.bf16.msra.mxu0 %v1003
    %1037 = vmatprep.subr.bf16.mxu0 0
    %1038 = vmatpush1.bf16.msra.mxu0 %v1004
    %1039 = vmatprep.subr.bf16.mxu0 0
    %1040 = vmatpush1.bf16.msra.mxu0 %v1005
    %1041 = vmatprep.subr.bf16.mxu0 0
    %1042 = vmatpush1.bf16.msra.mxu0 %v1006
    %1043 = vmatprep.subr.bf16.mxu0 0
    %1044 = vmatpush1.bf16.msra.mxu0 %v1007
    %1045 = vmatprep.subr.bf16.mxu0 0
    %1046 = vmatpush1.bf16.msra.mxu0 %v1008
    %1047 = vmatprep.subr.bf16.mxu0 0
    %1048 = vmatpush1.bf16.msra.mxu0 %v1009
    %1049 = vmatprep.subr.bf16.mxu0 0
    %1050 = vmatpush1.bf16.msra.mxu0 %v1010
    %1051 = vmatprep.subr.bf16.mxu0 0
    %1052 = vmatpush1.bf16.msra.mxu0 %v1025
    %1053 = vmatprep.subr.bf16.mxu0 0
    %1054 = vmatpush1.bf16.msra.mxu0 0
    %1055 = vmatprep.subr.bf16.mxu0 0
    %1056 = vmatpush1.bf16.msra.mxu0 0
    %1057 = vmatprep.subr.bf16.mxu0 0
    %1058 = vmatpush1.bf16.msra.mxu0 0
    %1059 = vmatprep.mubr.bf16.mxu0 %v890
    %1060 = vmatmul.mubr.bf16.gmra.mrb[0].mxu0 %v811
    %v1061 = vpop.f32.mrb[0].mxu0
    %v1062 = vadd.f32 %v123, %v1061
    %v1063 = vpop.f32.mrb[0].mxu0
    %v1064 = vpop.f32.mrb[0].mxu0
    %v1065 = vpop.f32.mrb[0].mxu0
    %1066 = vdwg.mxu0
    %vm1067 = vcmp.gt.f32.partialorder %v1062, 20.0
    %v1068 = vmin.f32 %v1062, 20.0
    %v1069 = vmul.f32 %v1068, 1.442695
    %v1070 = vpow.pop %v1069
    %v1071 = vadd.f32 %v1070, 1.0
    %v1072 = vlog2.pop %v1071
    %v1073 = vmul.f32 %v1072, 0.6931472
    %v1074 = vmul.f32 -0.5, %v1070
    %v1075 = vadd.f32 %v1074, 1.0
    %v1076 = vmul.f32 %v1075, %v1070
    %v1077 = vand.u32 2147483647, %v1070
    %vm1078 = vcmp.lt.f32.partialorder %v1077, 0.0004427343
    %v1079 = vsel %vm1078, %v1076, %v1073
    %v1080 = vsel %vm1067, %v1062, %v1079
    %v1081 = vrsqrt.pop %v1080
    %v1082 = vmul.f32 %v1080, %v1081
    %vm1083 = vcmp.eq.f32.partialorder %v1080, inf
    %v1084 = vsel %vm1083, %v1080, %v1082
    %vm1085 = vcmp.eq.f32.partialorder %v1080, 0.0
    %v1086 = vand.u32 %v1080, 2147483648
    %v1087 = vsel %vm1085, %v1086, %v1084
    %v1088 = vmul.f32 %v1087, %v780
    %v1089 = vadd.f32 %v948, %v1088
    %vm1090 = vcmp.gt.f32.partialorder %v1089, 20.0
    %v1091 = vmin.f32 %v1089, 20.0
    %v1092 = vmul.f32 %v1091, 1.442695
    %v1093 = vpow.pop %v1092
    %v1094 = vadd.f32 %v1093, 1.0
    %v1095 = vlog2.pop %v1094
    %v1096 = vmul.f32 %v1095, 0.6931472
    %v1097 = vmul.f32 -0.5, %v1093
    %v1098 = vadd.f32 %v1097, 1.0
    %v1099 = vmul.f32 %v1098, %v1093
    %v1100 = vand.u32 2147483647, %v1093
    %vm1101 = vcmp.lt.f32.partialorder %v1100, 0.0004427343
    %v1102 = vsel %vm1101, %v1099, %v1096
    %v1103 = vsel %vm1090, %v1089, %v1102
    %vm1104 = vcmask 60416
    %1105 = vst.msk [vmem:[#allocation5] sm:$0xf] %vm1104, %v1103
    %v1106 = vpack.c.bf16 %v1103, %v1103
    %v1108 = vsel %vm583, %v1106, 0
    %1110 = vmatprep.subr.bf16.mxu0 0
    %1111 = vmatpush1.bf16.msra.mxu0 %v589
    %1112 = vmatprep.subr.bf16.mxu0 0
    %1113 = vmatpush1.bf16.msra.mxu0 0
    %1114 = vmatprep.subr.bf16.mxu0 0
    %1115 = vmatpush1.bf16.msra.mxu0 0
    %1116 = vmatprep.subr.bf16.mxu0 0
    %1117 = vmatpush1.bf16.msra.mxu0 0
    %1118 = vmatprep.subr.bf16.mxu0 0
    %1119 = vmatpush1.bf16.msra.mxu0 0
    %1120 = vmatprep.subr.bf16.mxu0 0
    %1121 = vmatpush1.bf16.msra.mxu0 0
    %1122 = vmatprep.subr.bf16.mxu0 0
    %1123 = vmatpush1.bf16.msra.mxu0 0
    %1124 = vmatprep.subr.bf16.mxu0 0
    %1125 = vmatpush1.bf16.msra.mxu0 0
    %1126 = vmatprep.subr.bf16.mxu0 0
    %1127 = vmatpush1.bf16.msra.mxu0 0
    %1128 = vmatprep.subr.bf16.mxu0 0
    %1129 = vmatpush1.bf16.msra.mxu0 0
    %1130 = vmatprep.subr.bf16.mxu0 0
    %1131 = vmatpush1.bf16.msra.mxu0 0
    %1132 = vmatprep.subr.bf16.mxu0 0
    %1133 = vmatpush1.bf16.msra.mxu0 0
    %1134 = vmatprep.subr.bf16.mxu0 0
    %1135 = vmatpush1.bf16.msra.mxu0 0
    %1136 = vmatprep.subr.bf16.mxu0 0
    %1137 = vmatpush1.bf16.msra.mxu0 0
    %1138 = vmatprep.subr.bf16.mxu0 0
    %1139 = vmatpush1.bf16.msra.mxu0 0
    %1140 = vmatprep.subr.bf16.mxu0 0
    %1141 = vmatpush1.bf16.msra.mxu0 0
    %1142 = vmatprep.mubr.bf16.mxu0 0
    %1143 = vmatmul.mubr.bf16.gmra.mrb[0].mxu0 %v1108
    %v1144 = vpop.f32.mrb[0].mxu0
    %v1145 = vadd.f32 %v734, %v1144
    %v1146 = vpop.f32.mrb[0].mxu0
    %v1147 = vpop.f32.mrb[0].mxu0
    %v1148 = vpop.f32.mrb[0].mxu0
    %1149 = vdwg.mxu0
    %v1150 = vxor.u32 %v1145, 2147483648
    %v1151 = vmul.f32 %v1150, 1.442695
    %v1152 = vpow.pop %v1151
    %v1153 = vadd.f32 %v1152, 1.0
    %v1154 = vrcp.pop %v1153
    %v1155 = vmul.f32 1.0, %v1154
    %v1156 = vtanh.pop %v1145
    %v1157 = vmul.f32 %v1155, %v652
    %1159 = vrot.lane.b32.xlu0 %v1156, 64
    %v1160 = vpop.permute.xlu0 %1159
    %v1162 = vmul.f32 %v1155, %v1160
    %1164 = vrot.lane.b32.xlu0 %v1162, 32
    %v1165 = vpop.permute.xlu0 %1164
    %v1167 = vadd.f32 %v1157, %v1165
    %v1168 = vtanh.pop %v1167
    %1170 = vrot.lane.b32.xlu0 %v1168, 64
    %v1171 = vpop.permute.xlu0 %1170
    %v1173 = vmul.f32 %v1155, %v1171
    %v1174 = vpack.c.bf16 %v1173, %v1173
    %1176 = vrot.lane.b32.xlu0 %v1174, 32
    %v1177 = vpop.permute.xlu0 %1176
    %v1179 = vsel %vm695, %v1177, 0
    %1181 = vmatprep.subr.bf16.mxu0 %v684
    %1182 = vmatpush1.bf16.msra.mxu0 %v683
    %1183 = vmatprep.subr.bf16.mxu0 %v687
    %1184 = vmatpush1.bf16.msra.mxu0 %v686
    %1185 = vmatprep.subr.bf16.mxu0 0
    %1186 = vmatpush1.bf16.msra.mxu0 0
    %1187 = vmatprep.subr.bf16.mxu0 0
    %1188 = vmatpush1.bf16.msra.mxu0 0
    %1189 = vmatprep.subr.bf16.mxu0 0
    %1190 = vmatpush1.bf16.msra.mxu0 0
    %1191 = vmatprep.subr.bf16.mxu0 0
    %1192 = vmatpush1.bf16.msra.mxu0 0
    %1193 = vmatprep.subr.bf16.mxu0 0
    %1194 = vmatpush1.bf16.msra.mxu0 0
    %1195 = vmatprep.subr.bf16.mxu0 0
    %1196 = vmatpush1.bf16.msra.mxu0 0
    %1197 = vmatprep.subr.bf16.mxu0 0
    %1198 = vmatpush1.bf16.msra.mxu0 0
    %1199 = vmatprep.subr.bf16.mxu0 0
    %1200 = vmatpush1.bf16.msra.mxu0 0
    %1201 = vmatprep.subr.bf16.mxu0 0
    %1202 = vmatpush1.bf16.msra.mxu0 0
    %1203 = vmatprep.subr.bf16.mxu0 0
    %1204 = vmatpush1.bf16.msra.mxu0 0
    %1205 = vmatprep.subr.bf16.mxu0 0
    %1206 = vmatpush1.bf16.msra.mxu0 0
    %1207 = vmatprep.subr.bf16.mxu0 0
    %1208 = vmatpush1.bf16.msra.mxu0 0
    %1209 = vmatprep.subr.bf16.mxu0 0
    %1210 = vmatpush1.bf16.msra.mxu0 0
    %1211 = vmatprep.subr.bf16.mxu0 0
    %1212 = vmatpush1.bf16.msra.mxu0 0
    %1213 = vmatprep.mubr.bf16.mxu0 0
    %1214 = vmatmul.mubr.bf16.gmra.mrb[0].mxu0 %v1179
    %v1215 = vpop.f32.mrb[0].mxu0
    %v1216 = vadd.f32 0.0, %v1215
    %v1217 = vpop.f32.mrb[0].mxu0
    %v1218 = vadd.f32 0.0, %v1217
    %v1219 = vpop.f32.mrb[0].mxu0
    %v1220 = vpop.f32.mrb[0].mxu0
    %1221 = vdwg.mxu0
    %1222 = vmatprep.subr.bf16.mxu0 0
    %1223 = vmatpush1.bf16.msra.mxu0 %v685
    %1224 = vmatprep.subr.bf16.mxu0 0
    %1225 = vmatpush1.bf16.msra.mxu0 %v688
    %1226 = vmatprep.subr.bf16.mxu0 0
    %1227 = vmatpush1.bf16.msra.mxu0 0
    %1228 = vmatprep.subr.bf16.mxu0 0
    %1229 = vmatpush1.bf16.msra.mxu0 0
    %1230 = vmatprep.subr.bf16.mxu0 0
    %1231 = vmatpush1.bf16.msra.mxu0 0
    %1232 = vmatprep.subr.bf16.mxu0 0
    %1233 = vmatpush1.bf16.msra.mxu0 0
    %1234 = vmatprep.subr.bf16.mxu0 0
    %1235 = vmatpush1.bf16.msra.mxu0 0
    %1236 = vmatprep.subr.bf16.mxu0 0
    %1237 = vmatpush1.bf16.msra.mxu0 0
    %1238 = vmatprep.subr.bf16.mxu0 0
    %1239 = vmatpush1.bf16.msra.mxu0 0
    %1240 = vmatprep.subr.bf16.mxu0 0
    %1241 = vmatpush1.bf16.msra.mxu0 0
    %1242 = vmatprep.subr.bf16.mxu0 0
    %1243 = vmatpush1.bf16.msra.mxu0 0
    %1244 = vmatprep.subr.bf16.mxu0 0
    %1245 = vmatpush1.bf16.msra.mxu0 0
    %1246 = vmatprep.subr.bf16.mxu0 0
    %1247 = vmatpush1.bf16.msra.mxu0 0
    %1248 = vmatprep.subr.bf16.mxu0 0
    %1249 = vmatpush1.bf16.msra.mxu0 0
    %1250 = vmatprep.subr.bf16.mxu0 0
    %1251 = vmatpush1.bf16.msra.mxu0 0
    %1252 = vmatprep.subr.bf16.mxu0 0
    %1253 = vmatpush1.bf16.msra.mxu0 0
    %1254 = vmatprep.mubr.bf16.mxu0 0
    %1255 = vmatmul.mubr.bf16.gmra.mrb[0].mxu0 %v1179
    %v1256 = vpop.f32.mrb[0].mxu0
    %v1257 = vadd.f32 0.0, %v1256
    %v1258 = vpop.f32.mrb[0].mxu0
    %v1259 = vpop.f32.mrb[0].mxu0
    %v1260 = vpop.f32.mrb[0].mxu0
    %1261 = vdwg.mxu0
    %s1262 = scalar_lea.vmem %s3, 4
    %v1263 = vld [vmem:[%s1262] sm:$0xf]
    %v1264 = vadd.f32 %v1218, %v104
    %v1265 = vadd.f32 %v1257, %v108
    %vm1266 = vcmp.gt.f32.partialorder %v1264, 20.0
    %vm1267 = vcmp.gt.f32.partialorder %v1265, 20.0
    %v1268 = vmin.f32 %v1264, 20.0
    %v1269 = vmin.f32 %v1265, 20.0
    %v1270 = vmul.f32 %v1268, 1.442695
    %v1271 = vpow.pop %v1270
    %v1272 = vmul.f32 %v1269, 1.442695
    %v1273 = vpow.pop %v1272
    %v1274 = vadd.f32 %v1271, 1.0
    %v1275 = vlog2.pop %v1274
    %v1276 = vmul.f32 %v1275, 0.6931472
    %v1277 = vmul.f32 -0.5, %v1271
    %v1278 = vadd.f32 %v1277, 1.0
    %v1279 = vmul.f32 %v1278, %v1271
    %v1280 = vand.u32 2147483647, %v1271
    %vm1281 = vcmp.lt.f32.partialorder %v1280, 0.0004427343
    %v1282 = vsel %vm1281, %v1279, %v1276
    %v1283 = vadd.f32 %v1273, 1.0
    %v1284 = vlog2.pop %v1283
    %v1285 = vmul.f32 %v1284, 0.6931472
    %v1286 = vmul.f32 -0.5, %v1273
    %v1287 = vadd.f32 %v1286, 1.0
    %v1288 = vmul.f32 %v1287, %v1273
    %v1289 = vand.u32 2147483647, %v1273
    %vm1290 = vcmp.lt.f32.partialorder %v1289, 0.0004427343
    %v1291 = vsel %vm1290, %v1288, %v1285
    %v1292 = vsel %vm1266, %v1264, %v1282
    %v1293 = vsel %vm1267, %v1265, %v1291
    %v1294 = vpack.c.bf16 %v1292, %v1292
    %v1295 = vpack.c.bf16 %v1293, %v1293
    %v1297 = vsel %vm888, %v1295, 0
    %1299 = vmatprep.subr.bf16.mxu0 0
    %1300 = vmatpush1.bf16.msra.mxu0 %v863
    %1301 = vmatprep.subr.bf16.mxu0 0
    %1302 = vmatpush1.bf16.msra.mxu0 %v864
    %1303 = vmatprep.subr.bf16.mxu0 0
    %1304 = vmatpush1.bf16.msra.mxu0 %v865
    %1305 = vmatprep.subr.bf16.mxu0 0
    %1306 = vmatpush1.bf16.msra.mxu0 %v866
    %1307 = vmatprep.subr.bf16.mxu0 0
    %1308 = vmatpush1.bf16.msra.mxu0 %v867
    %1309 = vmatprep.subr.bf16.mxu0 0
    %1310 = vmatpush1.bf16.msra.mxu0 %v868
    %1311 = vmatprep.subr.bf16.mxu0 0
    %1312 = vmatpush1.bf16.msra.mxu0 %v869
    %1313 = vmatprep.subr.bf16.mxu0 0
    %1314 = vmatpush1.bf16.msra.mxu0 %v870
    %1315 = vmatprep.subr.bf16.mxu0 0
    %1316 = vmatpush1.bf16.msra.mxu0 %v871
    %1317 = vmatprep.subr.bf16.mxu0 0
    %1318 = vmatpush1.bf16.msra.mxu0 %v872
    %1319 = vmatprep.subr.bf16.mxu0 0
    %1320 = vmatpush1.bf16.msra.mxu0 %v873
    %1321 = vmatprep.subr.bf16.mxu0 0
    %1322 = vmatpush1.bf16.msra.mxu0 %v874
    %1323 = vmatprep.subr.bf16.mxu0 0
    %1324 = vmatpush1.bf16.msra.mxu0 %v893
    %1325 = vmatprep.subr.bf16.mxu0 0
    %1326 = vmatpush1.bf16.msra.mxu0 0
    %1327 = vmatprep.subr.bf16.mxu0 0
    %1328 = vmatpush1.bf16.msra.mxu0 0
    %1329 = vmatprep.subr.bf16.mxu0 0
    %1330 = vmatpush1.bf16.msra.mxu0 0
    %1331 = vmatprep.mubr.bf16.mxu0 %v1297
    %1332 = vmatmul.mubr.bf16.gmra.mrb[0].mxu0 %v1294
    %v1333 = vpop.f32.mrb[0].mxu0
    %v1334 = vadd.f32 %v116, %v1333
    %v1335 = vpop.f32.mrb[0].mxu0
    %v1336 = vpop.f32.mrb[0].mxu0
    %v1337 = vpop.f32.mrb[0].mxu0
    %1338 = vdwg.mxu0
    %vm1339 = vcmp.gt.f32.partialorder %v1334, 20.0
    %v1340 = vmin.f32 %v1334, 20.0
    %v1341 = vmul.f32 %v1340, 1.442695
    %v1342 = vpow.pop %v1341
    %v1343 = vadd.f32 %v1342, 1.0
    %v1344 = vlog2.pop %v1343
    %v1345 = vmul.f32 %v1344, 0.6931472
    %v1346 = vmul.f32 -0.5, %v1342
    %v1347 = vadd.f32 %v1346, 1.0
    %v1348 = vmul.f32 %v1347, %v1342
    %v1349 = vand.u32 2147483647, %v1342
    %vm1350 = vcmp.lt.f32.partialorder %v1349, 0.0004427343
    %v1351 = vsel %vm1350, %v1348, %v1345
    %v1352 = vsel %vm1339, %v1334, %v1351
    %1353 = vmatprep.subr.bf16.mxu0 0
    %1354 = vmatpush1.bf16.msra.mxu0 %v999
    %1355 = vmatprep.subr.bf16.mxu0 0
    %1356 = vmatpush1.bf16.msra.mxu0 %v1000
    %1357 = vmatprep.subr.bf16.mxu0 0
    %1358 = vmatpush1.bf16.msra.mxu0 %v1001
    %1359 = vmatprep.subr.bf16.mxu0 0
    %1360 = vmatpush1.bf16.msra.mxu0 %v1002
    %1361 = vmatprep.subr.bf16.mxu0 0
    %1362 = vmatpush1.bf16.msra.mxu0 %v1003
    %1363 = vmatprep.subr.bf16.mxu0 0
    %1364 = vmatpush1.bf16.msra.mxu0 %v1004
    %1365 = vmatprep.subr.bf16.mxu0 0
    %1366 = vmatpush1.bf16.msra.mxu0 %v1005
    %1367 = vmatprep.subr.bf16.mxu0 0
    %1368 = vmatpush1.bf16.msra.mxu0 %v1006
    %1369 = vmatprep.subr.bf16.mxu0 0
    %1370 = vmatpush1.bf16.msra.mxu0 %v1007
    %1371 = vmatprep.subr.bf16.mxu0 0
    %1372 = vmatpush1.bf16.msra.mxu0 %v1008
    %1373 = vmatprep.subr.bf16.mxu0 0
    %1374 = vmatpush1.bf16.msra.mxu0 %v1009
    %1375 = vmatprep.subr.bf16.mxu0 0
    %1376 = vmatpush1.bf16.msra.mxu0 %v1010
    %1377 = vmatprep.subr.bf16.mxu0 0
    %1378 = vmatpush1.bf16.msra.mxu0 %v1025
    %1379 = vmatprep.subr.bf16.mxu0 0
    %1380 = vmatpush1.bf16.msra.mxu0 0
    %1381 = vmatprep.subr.bf16.mxu0 0
    %1382 = vmatpush1.bf16.msra.mxu0 0
    %1383 = vmatprep.subr.bf16.mxu0 0
    %1384 = vmatpush1.bf16.msra.mxu0 0
    %1385 = vmatprep.mubr.bf16.mxu0 %v1297
    %1386 = vmatmul.mubr.bf16.gmra.mrb[0].mxu0 %v1294
    %v1387 = vpop.f32.mrb[0].mxu0
    %v1388 = vadd.f32 %v123, %v1387
    %v1389 = vpop.f32.mrb[0].mxu0
    %v1390 = vpop.f32.mrb[0].mxu0
    %v1391 = vpop.f32.mrb[0].mxu0
    %1392 = vdwg.mxu0
    %vm1393 = vcmp.gt.f32.partialorder %v1388, 20.0
    %v1394 = vmin.f32 %v1388, 20.0
    %v1395 = vmul.f32 %v1394, 1.442695
    %v1396 = vpow.pop %v1395
    %v1397 = vadd.f32 %v1396, 1.0
    %v1398 = vlog2.pop %v1397
    %v1399 = vmul.f32 %v1398, 0.6931472
    %v1400 = vmul.f32 -0.5, %v1396
    %v1401 = vadd.f32 %v1400, 1.0
    %v1402 = vmul.f32 %v1401, %v1396
    %v1403 = vand.u32 2147483647, %v1396
    %vm1404 = vcmp.lt.f32.partialorder %v1403, 0.0004427343
    %v1405 = vsel %vm1404, %v1402, %v1399
    %v1406 = vsel %vm1393, %v1388, %v1405
    %v1407 = vrsqrt.pop %v1406
    %v1408 = vmul.f32 %v1406, %v1407
    %vm1409 = vcmp.eq.f32.partialorder %v1406, inf
    %v1410 = vsel %vm1409, %v1406, %v1408
    %vm1411 = vcmp.eq.f32.partialorder %v1406, 0.0
    %v1412 = vand.u32 %v1406, 2147483648
    %v1413 = vsel %vm1411, %v1412, %v1410
    %v1414 = vmul.f32 %v1413, %v1263
    %v1415 = vadd.f32 %v1352, %v1414
    %vm1416 = vcmp.gt.f32.partialorder %v1415, 20.0
    %v1417 = vmin.f32 %v1415, 20.0
    %v1418 = vmul.f32 %v1417, 1.442695
    %v1419 = vpow.pop %v1418
    %v1420 = vadd.f32 %v1419, 1.0
    %v1421 = vlog2.pop %v1420
    %v1422 = vmul.f32 %v1421, 0.6931472
    %v1423 = vmul.f32 -0.5, %v1419
    %v1424 = vadd.f32 %v1423, 1.0
    %v1425 = vmul.f32 %v1424, %v1419
    %v1426 = vand.u32 2147483647, %v1419
    %vm1427 = vcmp.lt.f32.partialorder %v1426, 0.0004427343
    %v1428 = vsel %vm1427, %v1425, %v1422
    %v1429 = vsel %vm1416, %v1415, %v1428
    %s1430 = scalar_lea.vmem [#allocation5], 4
    %1431 = vst.msk [vmem:[%s1430] sm:$0xf] %vm1104, %v1429
    %v1432 = vpack.c.bf16 %v1429, %v1429
    %v1434 = vsel %vm583, %v1432, 0
    %1436 = vmatprep.subr.bf16.mxu0 0
    %1437 = vmatpush1.bf16.msra.mxu0 %v589
    %1438 = vmatprep.subr.bf16.mxu0 0
    %1439 = vmatpush1.bf16.msra.mxu0 0
    %1440 = vmatprep.subr.bf16.mxu0 0
    %1441 = vmatpush1.bf16.msra.mxu0 0
    %1442 = vmatprep.subr.bf16.mxu0 0
    %1443 = vmatpush1.bf16.msra.mxu0 0
    %1444 = vmatprep.subr.bf16.mxu0 0
    %1445 = vmatpush1.bf16.msra.mxu0 0
    %1446 = vmatprep.subr.bf16.mxu0 0
    %1447 = vmatpush1.bf16.msra.mxu0 0
    %1448 = vmatprep.subr.bf16.mxu0 0
    %1449 = vmatpush1.bf16.msra.mxu0 0
    %1450 = vmatprep.subr.bf16.mxu0 0
    %1451 = vmatpush1.bf16.msra.mxu0 0
    %1452 = vmatprep.subr.bf16.mxu0 0
    %1453 = vmatpush1.bf16.msra.mxu0 0
    %1454 = vmatprep.subr.bf16.mxu0 0
    %1455 = vmatpush1.bf16.msra.mxu0 0
    %1456 = vmatprep.subr.bf16.mxu0 0
    %1457 = vmatpush1.bf16.msra.mxu0 0
    %1458 = vmatprep.subr.bf16.mxu0 0
    %1459 = vmatpush1.bf16.msra.mxu0 0
    %1460 = vmatprep.subr.bf16.mxu0 0
    %1461 = vmatpush1.bf16.msra.mxu0 0
    %1462 = vmatprep.subr.bf16.mxu0 0
    %1463 = vmatpush1.bf16.msra.mxu0 0
    %1464 = vmatprep.subr.bf16.mxu0 0
    %1465 = vmatpush1.bf16.msra.mxu0 0
    %1466 = vmatprep.subr.bf16.mxu0 0
    %1467 = vmatpush1.bf16.msra.mxu0 0
    %1468 = vmatprep.mubr.bf16.mxu0 0
    %1469 = vmatmul.mubr.bf16.gmra.mrb[0].mxu0 %v1434
    %v1470 = vpop.f32.mrb[0].mxu0
    %v1471 = vadd.f32 %v1216, %v1470
    %v1472 = vpop.f32.mrb[0].mxu0
    %v1473 = vpop.f32.mrb[0].mxu0
    %v1474 = vpop.f32.mrb[0].mxu0
    %1475 = vdwg.mxu0
    %v1476 = vxor.u32 %v1471, 2147483648
    %v1477 = vmul.f32 %v1476, 1.442695
    %v1478 = vpow.pop %v1477
    %v1479 = vadd.f32 %v1478, 1.0
    %v1480 = vrcp.pop %v1479
    %v1481 = vmul.f32 1.0, %v1480
    %v1482 = vtanh.pop %v1471
    %v1483 = vmul.f32 %v1481, %v1167
    %1485 = vrot.lane.b32.xlu0 %v1482, 64
    %v1486 = vpop.permute.xlu0 %1485
    %v1488 = vmul.f32 %v1481, %v1486
    %1490 = vrot.lane.b32.xlu0 %v1488, 32
    %v1491 = vpop.permute.xlu0 %1490
    %v1493 = vadd.f32 %v1483, %v1491
    %v1494 = vtanh.pop %v1493
    %1496 = vrot.lane.b32.xlu0 %v1494, 64
    %v1497 = vpop.permute.xlu0 %1496
    %v1499 = vmul.f32 %v1481, %v1497
    %v1500 = vpack.c.bf16 %v1499, %v1499
    %1502 = vrot.lane.b32.xlu0 %v1500, 32
    %v1503 = vpop.permute.xlu0 %1502
    %v1505 = vsel %vm695, %v1503, 0
    %1507 = vmatprep.subr.bf16.mxu0 %v684
    %1508 = vmatpush1.bf16.msra.mxu0 %v683
    %1509 = vmatprep.subr.bf16.mxu0 %v687
    %1510 = vmatpush1.bf16.msra.mxu0 %v686
    %1511 = vmatprep.subr.bf16.mxu0 0
    %1512 = vmatpush1.bf16.msra.mxu0 0
    %1513 = vmatprep.subr.bf16.mxu0 0
    %1514 = vmatpush1.bf16.msra.mxu0 0
    %1515 = vmatprep.subr.bf16.mxu0 0
    %1516 = vmatpush1.bf16.msra.mxu0 0
    %1517 = vmatprep.subr.bf16.mxu0 0
    %1518 = vmatpush1.bf16.msra.mxu0 0
    %1519 = vmatprep.subr.bf16.mxu0 0
    %1520 = vmatpush1.bf16.msra.mxu0 0
    %1521 = vmatprep.subr.bf16.mxu0 0
    %1522 = vmatpush1.bf16.msra.mxu0 0
    %1523 = vmatprep.subr.bf16.mxu0 0
    %1524 = vmatpush1.bf16.msra.mxu0 0
    %1525 = vmatprep.subr.bf16.mxu0 0
    %1526 = vmatpush1.bf16.msra.mxu0 0
    %1527 = vmatprep.subr.bf16.mxu0 0
    %1528 = vmatpush1.bf16.msra.mxu0 0
    %1529 = vmatprep.subr.bf16.mxu0 0
    %1530 = vmatpush1.bf16.msra.mxu0 0
    %1531 = vmatprep.subr.bf16.mxu0 0
    %1532 = vmatpush1.bf16.msra.mxu0 0
    %1533 = vmatprep.subr.bf16.mxu0 0
    %1534 = vmatpush1.bf16.msra.mxu0 0
    %1535 = vmatprep.subr.bf16.mxu0 0
    %1536 = vmatpush1.bf16.msra.mxu0 0
    %1537 = vmatprep.subr.bf16.mxu0 0
    %1538 = vmatpush1.bf16.msra.mxu0 0
    %1539 = vmatprep.mubr.bf16.mxu0 0
    %1540 = vmatmul.mubr.bf16.gmra.mrb[0].mxu0 %v1505
    %v1541 = vpop.f32.mrb[0].mxu0
    %v1542 = vadd.f32 0.0, %v1541
    %v1543 = vpop.f32.mrb[0].mxu0
    %v1544 = vadd.f32 0.0, %v1543
    %v1545 = vpop.f32.mrb[0].mxu0
    %v1546 = vpop.f32.mrb[0].mxu0
    %1547 = vdwg.mxu0
    %1548 = vmatprep.subr.bf16.mxu0 0
    %1549 = vmatpush1.bf16.msra.mxu0 %v685
    %1550 = vmatprep.subr.bf16.mxu0 0
    %1551 = vmatpush1.bf16.msra.mxu0 %v688
    %1552 = vmatprep.subr.bf16.mxu0 0
    %1553 = vmatpush1.bf16.msra.mxu0 0
    %1554 = vmatprep.subr.bf16.mxu0 0
    %1555 = vmatpush1.bf16.msra.mxu0 0
    %1556 = vmatprep.subr.bf16.mxu0 0
    %1557 = vmatpush1.bf16.msra.mxu0 0
    %1558 = vmatprep.subr.bf16.mxu0 0
    %1559 = vmatpush1.bf16.msra.mxu0 0
    %1560 = vmatprep.subr.bf16.mxu0 0
    %1561 = vmatpush1.bf16.msra.mxu0 0
    %1562 = vmatprep.subr.bf16.mxu0 0
    %1563 = vmatpush1.bf16.msra.mxu0 0
    %1564 = vmatprep.subr.bf16.mxu0 0
    %1565 = vmatpush1.bf16.msra.mxu0 0
    %1566 = vmatprep.subr.bf16.mxu0 0
    %1567 = vmatpush1.bf16.msra.mxu0 0
    %1568 = vmatprep.subr.bf16.mxu0 0
    %1569 = vmatpush1.bf16.msra.mxu0 0
    %1570 = vmatprep.subr.bf16.mxu0 0
    %1571 = vmatpush1.bf16.msra.mxu0 0
    %1572 = vmatprep.subr.bf16.mxu0 0
    %1573 = vmatpush1.bf16.msra.mxu0 0
    %1574 = vmatprep.subr.bf16.mxu0 0
    %1575 = vmatpush1.bf16.msra.mxu0 0
    %1576 = vmatprep.subr.bf16.mxu0 0
    %1577 = vmatpush1.bf16.msra.mxu0 0
    %1578 = vmatprep.subr.bf16.mxu0 0
    %1579 = vmatpush1.bf16.msra.mxu0 0
    %1580 = vmatprep.mubr.bf16.mxu0 0
    %1581 = vmatmul.mubr.bf16.gmra.mrb[0].mxu0 %v1505
    %v1582 = vpop.f32.mrb[0].mxu0
    %v1583 = vadd.f32 0.0, %v1582
    %v1584 = vpop.f32.mrb[0].mxu0
    %v1585 = vpop.f32.mrb[0].mxu0
    %v1586 = vpop.f32.mrb[0].mxu0
    %1587 = vdwg.mxu0
    %s1588 = scalar_lea.vmem %s3, 8
    %v1589 = vld [vmem:[%s1588] sm:$0xf]
    %v1590 = vadd.f32 %v1544, %v104
    %v1591 = vadd.f32 %v1583, %v108
    %vm1592 = vcmp.gt.f32.partialorder %v1590, 20.0
    %vm1593 = vcmp.gt.f32.partialorder %v1591, 20.0
    %v1594 = vmin.f32 %v1590, 20.0
    %v1595 = vmin.f32 %v1591, 20.0
    %v1596 = vmul.f32 %v1594, 1.442695
    %v1597 = vpow.pop %v1596
    %v1598 = vmul.f32 %v1595, 1.442695
    %v1599 = vpow.pop %v1598
    %v1600 = vadd.f32 %v1597, 1.0
    %v1601 = vlog2.pop %v1600
    %v1602 = vmul.f32 %v1601, 0.6931472
    %v1603 = vmul.f32 -0.5, %v1597
    %v1604 = vadd.f32 %v1603, 1.0
    %v1605 = vmul.f32 %v1604, %v1597
    %v1606 = vand.u32 2147483647, %v1597
    %vm1607 = vcmp.lt.f32.partialorder %v1606, 0.0004427343
    %v1608 = vsel %vm1607, %v1605, %v1602
    %v1609 = vadd.f32 %v1599, 1.0
    %v1610 = vlog2.pop %v1609
    %v1611 = vmul.f32 %v1610, 0.6931472
    %v1612 = vmul.f32 -0.5, %v1599
    %v1613 = vadd.f32 %v1612, 1.0
    %v1614 = vmul.f32 %v1613, %v1599
    %v1615 = vand.u32 2147483647, %v1599
    %vm1616 = vcmp.lt.f32.partialorder %v1615, 0.0004427343
    %v1617 = vsel %vm1616, %v1614, %v1611
    %v1618 = vsel %vm1592, %v1590, %v1608
    %v1619 = vsel %vm1593, %v1591, %v1617
    %v1620 = vpack.c.bf16 %v1618, %v1618
    %v1621 = vpack.c.bf16 %v1619, %v1619
    %v1623 = vsel %vm888, %v1621, 0
    %1625 = vmatprep.subr.bf16.mxu0 0
    %1626 = vmatpush1.bf16.msra.mxu0 %v863
    %1627 = vmatprep.subr.bf16.mxu0 0
    %1628 = vmatpush1.bf16.msra.mxu0 %v864
    %1629 = vmatprep.subr.bf16.mxu0 0
    %1630 = vmatpush1.bf16.msra.mxu0 %v865
    %1631 = vmatprep.subr.bf16.mxu0 0
    %1632 = vmatpush1.bf16.msra.mxu0 %v866
    %1633 = vmatprep.subr.bf16.mxu0 0
    %1634 = vmatpush1.bf16.msra.mxu0 %v867
    %1635 = vmatprep.subr.bf16.mxu0 0
    %1636 = vmatpush1.bf16.msra.mxu0 %v868
    %1637 = vmatprep.subr.bf16.mxu0 0
    %1638 = vmatpush1.bf16.msra.mxu0 %v869
    %1639 = vmatprep.subr.bf16.mxu0 0
    %1640 = vmatpush1.bf16.msra.mxu0 %v870
    %1641 = vmatprep.subr.bf16.mxu0 0
    %1642 = vmatpush1.bf16.msra.mxu0 %v871
    %1643 = vmatprep.subr.bf16.mxu0 0
    %1644 = vmatpush1.bf16.msra.mxu0 %v872
    %1645 = vmatprep.subr.bf16.mxu0 0
    %1646 = vmatpush1.bf16.msra.mxu0 %v873
    %1647 = vmatprep.subr.bf16.mxu0 0
    %1648 = vmatpush1.bf16.msra.mxu0 %v874
    %1649 = vmatprep.subr.bf16.mxu0 0
    %1650 = vmatpush1.bf16.msra.mxu0 %v893
    %1651 = vmatprep.subr.bf16.mxu0 0
    %1652 = vmatpush1.bf16.msra.mxu0 0
    %1653 = vmatprep.subr.bf16.mxu0 0
    %1654 = vmatpush1.bf16.msra.mxu0 0
    %1655 = vmatprep.subr.bf16.mxu0 0
    %1656 = vmatpush1.bf16.msra.mxu0 0
    %1657 = vmatprep.mubr.bf16.mxu0 %v1623
    %1658 = vmatmul.mubr.bf16.gmra.mrb[0].mxu0 %v1620
    %v1659 = vpop.f32.mrb[0].mxu0
    %v1660 = vadd.f32 %v116, %v1659
    %v1661 = vpop.f32.mrb[0].mxu0
    %v1662 = vpop.f32.mrb[0].mxu0
    %v1663 = vpop.f32.mrb[0].mxu0
    %1664 = vdwg.mxu0
    %vm1665 = vcmp.gt.f32.partialorder %v1660, 20.0
    %v1666 = vmin.f32 %v1660, 20.0
    %v1667 = vmul.f32 %v1666, 1.442695
    %v1668 = vpow.pop %v1667
    %v1669 = vadd.f32 %v1668, 1.0
    %v1670 = vlog2.pop %v1669
    %v1671 = vmul.f32 %v1670, 0.6931472
    %v1672 = vmul.f32 -0.5, %v1668
    %v1673 = vadd.f32 %v1672, 1.0
    %v1674 = vmul.f32 %v1673, %v1668
    %v1675 = vand.u32 2147483647, %v1668
    %vm1676 = vcmp.lt.f32.partialorder %v1675, 0.0004427343
    %v1677 = vsel %vm1676, %v1674, %v1671
    %v1678 = vsel %vm1665, %v1660, %v1677
    %1679 = vmatprep.subr.bf16.mxu0 0
    %1680 = vmatpush1.bf16.msra.mxu0 %v999
    %1681 = vmatprep.subr.bf16.mxu0 0
    %1682 = vmatpush1.bf16.msra.mxu0 %v1000
    %1683 = vmatprep.subr.bf16.mxu0 0
    %1684 = vmatpush1.bf16.msra.mxu0 %v1001
    %1685 = vmatprep.subr.bf16.mxu0 0
    %1686 = vmatpush1.bf16.msra.mxu0 %v1002
    %1687 = vmatprep.subr.bf16.mxu0 0
    %1688 = vmatpush1.bf16.msra.mxu0 %v1003
    %1689 = vmatprep.subr.bf16.mxu0 0
    %1690 = vmatpush1.bf16.msra.mxu0 %v1004
    %1691 = vmatprep.subr.bf16.mxu0 0
    %1692 = vmatpush1.bf16.msra.mxu0 %v1005
    %1693 = vmatprep.subr.bf16.mxu0 0
    %1694 = vmatpush1.bf16.msra.mxu0 %v1006
    %1695 = vmatprep.subr.bf16.mxu0 0
    %1696 = vmatpush1.bf16.msra.mxu0 %v1007
    %1697 = vmatprep.subr.bf16.mxu0 0
    %1698 = vmatpush1.bf16.msra.mxu0 %v1008
    %1699 = vmatprep.subr.bf16.mxu0 0
    %1700 = vmatpush1.bf16.msra.mxu0 %v1009
    %1701 = vmatprep.subr.bf16.mxu0 0
    %1702 = vmatpush1.bf16.msra.mxu0 %v1010
    %1703 = vmatprep.subr.bf16.mxu0 0
    %1704 = vmatpush1.bf16.msra.mxu0 %v1025
    %1705 = vmatprep.subr.bf16.mxu0 0
    %1706 = vmatpush1.bf16.msra.mxu0 0
    %1707 = vmatprep.subr.bf16.mxu0 0
    %1708 = vmatpush1.bf16.msra.mxu0 0
    %1709 = vmatprep.subr.bf16.mxu0 0
    %1710 = vmatpush1.bf16.msra.mxu0 0
    %1711 = vmatprep.mubr.bf16.mxu0 %v1623
    %1712 = vmatmul.mubr.bf16.gmra.mrb[0].mxu0 %v1620
    %v1713 = vpop.f32.mrb[0].mxu0
    %v1714 = vadd.f32 %v123, %v1713
    %v1715 = vpop.f32.mrb[0].mxu0
    %v1716 = vpop.f32.mrb[0].mxu0
    %v1717 = vpop.f32.mrb[0].mxu0
    %1718 = vdwg.mxu0
    %vm1719 = vcmp.gt.f32.partialorder %v1714, 20.0
    %v1720 = vmin.f32 %v1714, 20.0
    %v1721 = vmul.f32 %v1720, 1.442695
    %v1722 = vpow.pop %v1721
    %v1723 = vadd.f32 %v1722, 1.0
    %v1724 = vlog2.pop %v1723
    %v1725 = vmul.f32 %v1724, 0.6931472
    %v1726 = vmul.f32 -0.5, %v1722
    %v1727 = vadd.f32 %v1726, 1.0
    %v1728 = vmul.f32 %v1727, %v1722
    %v1729 = vand.u32 2147483647, %v1722
    %vm1730 = vcmp.lt.f32.partialorder %v1729, 0.0004427343
    %v1731 = vsel %vm1730, %v1728, %v1725
    %v1732 = vsel %vm1719, %v1714, %v1731
    %v1733 = vrsqrt.pop %v1732
    %v1734 = vmul.f32 %v1732, %v1733
    %vm1735 = vcmp.eq.f32.partialorder %v1732, inf
    %v1736 = vsel %vm1735, %v1732, %v1734
    %vm1737 = vcmp.eq.f32.partialorder %v1732, 0.0
    %v1738 = vand.u32 %v1732, 2147483648
    %v1739 = vsel %vm1737, %v1738, %v1736
    %v1740 = vmul.f32 %v1739, %v1589
    %v1741 = vadd.f32 %v1678, %v1740
    %vm1742 = vcmp.gt.f32.partialorder %v1741, 20.0
    %v1743 = vmin.f32 %v1741, 20.0
    %v1744 = vmul.f32 %v1743, 1.442695
    %v1745 = vpow.pop %v1744
    %v1746 = vadd.f32 %v1745, 1.0
    %v1747 = vlog2.pop %v1746
    %v1748 = vmul.f32 %v1747, 0.6931472
    %v1749 = vmul.f32 -0.5, %v1745
    %v1750 = vadd.f32 %v1749, 1.0
    %v1751 = vmul.f32 %v1750, %v1745
    %v1752 = vand.u32 2147483647, %v1745
    %vm1753 = vcmp.lt.f32.partialorder %v1752, 0.0004427343
    %v1754 = vsel %vm1753, %v1751, %v1748
    %v1755 = vsel %vm1742, %v1741, %v1754
    %s1756 = scalar_lea.vmem [#allocation5], 8
    %1757 = vst.msk [vmem:[%s1756] sm:$0xf] %vm1104, %v1755
    %v1758 = vpack.c.bf16 %v1755, %v1755
    %v1760 = vsel %vm583, %v1758, 0
    %1762 = vmatprep.subr.bf16.mxu0 0
    %1763 = vmatpush1.bf16.msra.mxu0 %v589
    %1764 = vmatprep.subr.bf16.mxu0 0
    %1765 = vmatpush1.bf16.msra.mxu0 0
    %1766 = vmatprep.subr.bf16.mxu0 0
    %1767 = vmatpush1.bf16.msra.mxu0 0
    %1768 = vmatprep.subr.bf16.mxu0 0
    %1769 = vmatpush1.bf16.msra.mxu0 0
    %1770 = vmatprep.subr.bf16.mxu0 0
    %1771 = vmatpush1.bf16.msra.mxu0 0
    %1772 = vmatprep.subr.bf16.mxu0 0
    %1773 = vmatpush1.bf16.msra.mxu0 0
    %1774 = vmatprep.subr.bf16.mxu0 0
    %1775 = vmatpush1.bf16.msra.mxu0 0
    %1776 = vmatprep.subr.bf16.mxu0 0
    %1777 = vmatpush1.bf16.msra.mxu0 0
    %1778 = vmatprep.subr.bf16.mxu0 0
    %1779 = vmatpush1.bf16.msra.mxu0 0
    %1780 = vmatprep.subr.bf16.mxu0 0
    %1781 = vmatpush1.bf16.msra.mxu0 0
    %1782 = vmatprep.subr.bf16.mxu0 0
    %1783 = vmatpush1.bf16.msra.mxu0 0
    %1784 = vmatprep.subr.bf16.mxu0 0
    %1785 = vmatpush1.bf16.msra.mxu0 0
    %1786 = vmatprep.subr.bf16.mxu0 0
    %1787 = vmatpush1.bf16.msra.mxu0 0
    %1788 = vmatprep.subr.bf16.mxu0 0
    %1789 = vmatpush1.bf16.msra.mxu0 0
    %1790 = vmatprep.subr.bf16.mxu0 0
    %1791 = vmatpush1.bf16.msra.mxu0 0
    %1792 = vmatprep.subr.bf16.mxu0 0
    %1793 = vmatpush1.bf16.msra.mxu0 0
    %1794 = vmatprep.mubr.bf16.mxu0 0
    %1795 = vmatmul.mubr.bf16.gmra.mrb[0].mxu0 %v1760
    %v1796 = vpop.f32.mrb[0].mxu0
    %v1797 = vadd.f32 %v1542, %v1796
    %v1798 = vpop.f32.mrb[0].mxu0
    %v1799 = vpop.f32.mrb[0].mxu0
    %v1800 = vpop.f32.mrb[0].mxu0
    %1801 = vdwg.mxu0
    %v1802 = vxor.u32 %v1797, 2147483648
    %v1803 = vmul.f32 %v1802, 1.442695
    %v1804 = vpow.pop %v1803
    %v1805 = vadd.f32 %v1804, 1.0
    %v1806 = vrcp.pop %v1805
    %v1807 = vmul.f32 1.0, %v1806
    %v1808 = vtanh.pop %v1797
    %v1809 = vmul.f32 %v1807, %v1493
    %1811 = vrot.lane.b32.xlu0 %v1808, 64
    %v1812 = vpop.permute.xlu0 %1811
    %v1814 = vmul.f32 %v1807, %v1812
    %1816 = vrot.lane.b32.xlu0 %v1814, 32
    %v1817 = vpop.permute.xlu0 %1816
    %v1819 = vadd.f32 %v1809, %v1817
    %v1820 = vtanh.pop %v1819
    %1822 = vrot.lane.b32.xlu0 %v1820, 64
    %v1823 = vpop.permute.xlu0 %1822
    %v1825 = vmul.f32 %v1807, %v1823
    %v1826 = vpack.c.bf16 %v1825, %v1825
    %1828 = vrot.lane.b32.xlu0 %v1826, 32
    %v1829 = vpop.permute.xlu0 %1828
    %v1831 = vsel %vm695, %v1829, 0
    %1833 = vmatprep.subr.bf16.mxu0 %v684
    %1834 = vmatpush1.bf16.msra.mxu0 %v683
    %1835 = vmatprep.subr.bf16.mxu0 %v687
    %1836 = vmatpush1.bf16.msra.mxu0 %v686
    %1837 = vmatprep.subr.bf16.mxu0 0
    %1838 = vmatpush1.bf16.msra.mxu0 0
    %1839 = vmatprep.subr.bf16.mxu0 0
    %1840 = vmatpush1.bf16.msra.mxu0 0
    %1841 = vmatprep.subr.bf16.mxu0 0
    %1842 = vmatpush1.bf16.msra.mxu0 0
    %1843 = vmatprep.subr.bf16.mxu0 0
    %1844 = vmatpush1.bf16.msra.mxu0 0
    %1845 = vmatprep.subr.bf16.mxu0 0
    %1846 = vmatpush1.bf16.msra.mxu0 0
    %1847 = vmatprep.subr.bf16.mxu0 0
    %1848 = vmatpush1.bf16.msra.mxu0 0
    %1849 = vmatprep.subr.bf16.mxu0 0
    %1850 = vmatpush1.bf16.msra.mxu0 0
    %1851 = vmatprep.subr.bf16.mxu0 0
    %1852 = vmatpush1.bf16.msra.mxu0 0
    %1853 = vmatprep.subr.bf16.mxu0 0
    %1854 = vmatpush1.bf16.msra.mxu0 0
    %1855 = vmatprep.subr.bf16.mxu0 0
    %1856 = vmatpush1.bf16.msra.mxu0 0
    %1857 = vmatprep.subr.bf16.mxu0 0
    %1858 = vmatpush1.bf16.msra.mxu0 0
    %1859 = vmatprep.subr.bf16.mxu0 0
    %1860 = vmatpush1.bf16.msra.mxu0 0
    %1861 = vmatprep.subr.bf16.mxu0 0
    %1862 = vmatpush1.bf16.msra.mxu0 0
    %1863 = vmatprep.subr.bf16.mxu0 0
    %1864 = vmatpush1.bf16.msra.mxu0 0
    %1865 = vmatprep.mubr.bf16.mxu0 0
    %1866 = vmatmul.mubr.bf16.gmra.mrb[0].mxu0 %v1831
    %v1867 = vpop.f32.mrb[0].mxu0
    %v1868 = vadd.f32 0.0, %v1867
    %v1869 = vpop.f32.mrb[0].mxu0
    %v1870 = vadd.f32 0.0, %v1869
    %v1871 = vpop.f32.mrb[0].mxu0
    %v1872 = vpop.f32.mrb[0].mxu0
    %1873 = vdwg.mxu0
    %1874 = vmatprep.subr.bf16.mxu0 0
    %1875 = vmatpush1.bf16.msra.mxu0 %v685
    %1876 = vmatprep.subr.bf16.mxu0 0
    %1877 = vmatpush1.bf16.msra.mxu0 %v688
    %1878 = vmatprep.subr.bf16.mxu0 0
    %1879 = vmatpush1.bf16.msra.mxu0 0
    %1880 = vmatprep.subr.bf16.mxu0 0
    %1881 = vmatpush1.bf16.msra.mxu0 0
    %1882 = vmatprep.subr.bf16.mxu0 0
    %1883 = vmatpush1.bf16.msra.mxu0 0
    %1884 = vmatprep.subr.bf16.mxu0 0
    %1885 = vmatpush1.bf16.msra.mxu0 0
    %1886 = vmatprep.subr.bf16.mxu0 0
    %1887 = vmatpush1.bf16.msra.mxu0 0
    %1888 = vmatprep.subr.bf16.mxu0 0
    %1889 = vmatpush1.bf16.msra.mxu0 0
    %1890 = vmatprep.subr.bf16.mxu0 0
    %1891 = vmatpush1.bf16.msra.mxu0 0
    %1892 = vmatprep.subr.bf16.mxu0 0
    %1893 = vmatpush1.bf16.msra.mxu0 0
    %1894 = vmatprep.subr.bf16.mxu0 0
    %1895 = vmatpush1.bf16.msra.mxu0 0
    %1896 = vmatprep.subr.bf16.mxu0 0
    %1897 = vmatpush1.bf16.msra.mxu0 0
    %1898 = vmatprep.subr.bf16.mxu0 0
    %1899 = vmatpush1.bf16.msra.mxu0 0
    %1900 = vmatprep.subr.bf16.mxu0 0
    %1901 = vmatpush1.bf16.msra.mxu0 0
    %1902 = vmatprep.subr.bf16.mxu0 0
    %1903 = vmatpush1.bf16.msra.mxu0 0
    %1904 = vmatprep.subr.bf16.mxu0 0
    %1905 = vmatpush1.bf16.msra.mxu0 0
    %1906 = vmatprep.mubr.bf16.mxu0 0
    %1907 = vmatmul.mubr.bf16.gmra.mrb[0].mxu0 %v1831
    %v1908 = vpop.f32.mrb[0].mxu0
    %v1909 = vadd.f32 0.0, %v1908
    %v1910 = vpop.f32.mrb[0].mxu0
    %v1911 = vpop.f32.mrb[0].mxu0
    %v1912 = vpop.f32.mrb[0].mxu0
    %1913 = vdwg.mxu0
    %s1914 = scalar_lea.vmem %s3, 12
    %v1915 = vld [vmem:[%s1914] sm:$0xf]
    %v1916 = vadd.f32 %v1870, %v104
    %v1917 = vadd.f32 %v1909, %v108
    %vm1918 = vcmp.gt.f32.partialorder %v1916, 20.0
    %vm1919 = vcmp.gt.f32.partialorder %v1917, 20.0
    %v1920 = vmin.f32 %v1916, 20.0
    %v1921 = vmin.f32 %v1917, 20.0
    %v1922 = vmul.f32 %v1920, 1.442695
    %v1923 = vpow.pop %v1922
    %v1924 = vmul.f32 %v1921, 1.442695
    %v1925 = vpow.pop %v1924
    %v1926 = vadd.f32 %v1923, 1.0
    %v1927 = vlog2.pop %v1926
    %v1928 = vmul.f32 %v1927, 0.6931472
    %v1929 = vmul.f32 -0.5, %v1923
    %v1930 = vadd.f32 %v1929, 1.0
    %v1931 = vmul.f32 %v1930, %v1923
    %v1932 = vand.u32 2147483647, %v1923
    %vm1933 = vcmp.lt.f32.partialorder %v1932, 0.0004427343
    %v1934 = vsel %vm1933, %v1931, %v1928
    %v1935 = vadd.f32 %v1925, 1.0
    %v1936 = vlog2.pop %v1935
    %v1937 = vmul.f32 %v1936, 0.6931472
    %v1938 = vmul.f32 -0.5, %v1925
    %v1939 = vadd.f32 %v1938, 1.0
    %v1940 = vmul.f32 %v1939, %v1925
    %v1941 = vand.u32 2147483647, %v1925
    %vm1942 = vcmp.lt.f32.partialorder %v1941, 0.0004427343
    %v1943 = vsel %vm1942, %v1940, %v1937
    %v1944 = vsel %vm1918, %v1916, %v1934
    %v1945 = vsel %vm1919, %v1917, %v1943
    %v1946 = vpack.c.bf16 %v1944, %v1944
    %v1947 = vpack.c.bf16 %v1945, %v1945
    %v1949 = vsel %vm888, %v1947, 0
    %1951 = vmatprep.subr.bf16.mxu0 0
    %1952 = vmatpush1.bf16.msra.mxu0 %v863
    %1953 = vmatprep.subr.bf16.mxu0 0
    %1954 = vmatpush1.bf16.msra.mxu0 %v864
    %1955 = vmatprep.subr.bf16.mxu0 0
    %1956 = vmatpush1.bf16.msra.mxu0 %v865
    %1957 = vmatprep.subr.bf16.mxu0 0
    %1958 = vmatpush1.bf16.msra.mxu0 %v866
    %1959 = vmatprep.subr.bf16.mxu0 0
    %1960 = vmatpush1.bf16.msra.mxu0 %v867
    %1961 = vmatprep.subr.bf16.mxu0 0
    %1962 = vmatpush1.bf16.msra.mxu0 %v868
    %1963 = vmatprep.subr.bf16.mxu0 0
    %1964 = vmatpush1.bf16.msra.mxu0 %v869
    %1965 = vmatprep.subr.bf16.mxu0 0
    %1966 = vmatpush1.bf16.msra.mxu0 %v870
    %1967 = vmatprep.subr.bf16.mxu0 0
    %1968 = vmatpush1.bf16.msra.mxu0 %v871
    %1969 = vmatprep.subr.bf16.mxu0 0
    %1970 = vmatpush1.bf16.msra.mxu0 %v872
    %1971 = vmatprep.subr.bf16.mxu0 0
    %1972 = vmatpush1.bf16.msra.mxu0 %v873
    %1973 = vmatprep.subr.bf16.mxu0 0
    %1974 = vmatpush1.bf16.msra.mxu0 %v874
    %1975 = vmatprep.subr.bf16.mxu0 0
    %1976 = vmatpush1.bf16.msra.mxu0 %v893
    %1977 = vmatprep.subr.bf16.mxu0 0
    %1978 = vmatpush1.bf16.msra.mxu0 0
    %1979 = vmatprep.subr.bf16.mxu0 0
    %1980 = vmatpush1.bf16.msra.mxu0 0
    %1981 = vmatprep.subr.bf16.mxu0 0
    %1982 = vmatpush1.bf16.msra.mxu0 0
    %1983 = vmatprep.mubr.bf16.mxu0 %v1949
    %1984 = vmatmul.mubr.bf16.gmra.mrb[0].mxu0 %v1946
    %v1985 = vpop.f32.mrb[0].mxu0
    %v1986 = vadd.f32 %v116, %v1985
    %v1987 = vpop.f32.mrb[0].mxu0
    %v1988 = vpop.f32.mrb[0].mxu0
    %v1989 = vpop.f32.mrb[0].mxu0
    %1990 = vdwg.mxu0
    %vm1991 = vcmp.gt.f32.partialorder %v1986, 20.0
    %v1992 = vmin.f32 %v1986, 20.0
    %v1993 = vmul.f32 %v1992, 1.442695
    %v1994 = vpow.pop %v1993
    %v1995 = vadd.f32 %v1994, 1.0
    %v1996 = vlog2.pop %v1995
    %v1997 = vmul.f32 %v1996, 0.6931472
    %v1998 = vmul.f32 -0.5, %v1994
    %v1999 = vadd.f32 %v1998, 1.0
    %v2000 = vmul.f32 %v1999, %v1994
    %v2001 = vand.u32 2147483647, %v1994
    %vm2002 = vcmp.lt.f32.partialorder %v2001, 0.0004427343
    %v2003 = vsel %vm2002, %v2000, %v1997
    %v2004 = vsel %vm1991, %v1986, %v2003
    %2005 = vmatprep.subr.bf16.mxu0 0
    %2006 = vmatpush1.bf16.msra.mxu0 %v999
    %2007 = vmatprep.subr.bf16.mxu0 0
    %2008 = vmatpush1.bf16.msra.mxu0 %v1000
    %2009 = vmatprep.subr.bf16.mxu0 0
    %2010 = vmatpush1.bf16.msra.mxu0 %v1001
    %2011 = vmatprep.subr.bf16.mxu0 0
    %2012 = vmatpush1.bf16.msra.mxu0 %v1002
    %2013 = vmatprep.subr.bf16.mxu0 0
    %2014 = vmatpush1.bf16.msra.mxu0 %v1003
    %2015 = vmatprep.subr.bf16.mxu0 0
    %2016 = vmatpush1.bf16.msra.mxu0 %v1004
    %2017 = vmatprep.subr.bf16.mxu0 0
    %2018 = vmatpush1.bf16.msra.mxu0 %v1005
    %2019 = vmatprep.subr.bf16.mxu0 0
    %2020 = vmatpush1.bf16.msra.mxu0 %v1006
    %2021 = vmatprep.subr.bf16.mxu0 0
    %2022 = vmatpush1.bf16.msra.mxu0 %v1007
    %2023 = vmatprep.subr.bf16.mxu0 0
    %2024 = vmatpush1.bf16.msra.mxu0 %v1008
    %2025 = vmatprep.subr.bf16.mxu0 0
    %2026 = vmatpush1.bf16.msra.mxu0 %v1009
    %2027 = vmatprep.subr.bf16.mxu0 0
    %2028 = vmatpush1.bf16.msra.mxu0 %v1010
    %2029 = vmatprep.subr.bf16.mxu0 0
    %2030 = vmatpush1.bf16.msra.mxu0 %v1025
    %2031 = vmatprep.subr.bf16.mxu0 0
    %2032 = vmatpush1.bf16.msra.mxu0 0
    %2033 = vmatprep.subr.bf16.mxu0 0
    %2034 = vmatpush1.bf16.msra.mxu0 0
    %2035 = vmatprep.subr.bf16.mxu0 0
    %2036 = vmatpush1.bf16.msra.mxu0 0
    %2037 = vmatprep.mubr.bf16.mxu0 %v1949
    %2038 = vmatmul.mubr.bf16.gmra.mrb[0].mxu0 %v1946
    %v2039 = vpop.f32.mrb[0].mxu0
    %v2040 = vadd.f32 %v123, %v2039
    %v2041 = vpop.f32.mrb[0].mxu0
    %v2042 = vpop.f32.mrb[0].mxu0
    %v2043 = vpop.f32.mrb[0].mxu0
    %2044 = vdwg.mxu0
    %vm2045 = vcmp.gt.f32.partialorder %v2040, 20.0
    %v2046 = vmin.f32 %v2040, 20.0
    %v2047 = vmul.f32 %v2046, 1.442695
    %v2048 = vpow.pop %v2047
    %v2049 = vadd.f32 %v2048, 1.0
    %v2050 = vlog2.pop %v2049
    %v2051 = vmul.f32 %v2050, 0.6931472
    %v2052 = vmul.f32 -0.5, %v2048
    %v2053 = vadd.f32 %v2052, 1.0
    %v2054 = vmul.f32 %v2053, %v2048
    %v2055 = vand.u32 2147483647, %v2048
    %vm2056 = vcmp.lt.f32.partialorder %v2055, 0.0004427343
    %v2057 = vsel %vm2056, %v2054, %v2051
    %v2058 = vsel %vm2045, %v2040, %v2057
    %v2059 = vrsqrt.pop %v2058
    %v2060 = vmul.f32 %v2058, %v2059
    %vm2061 = vcmp.eq.f32.partialorder %v2058, inf
    %v2062 = vsel %vm2061, %v2058, %v2060
    %vm2063 = vcmp.eq.f32.partialorder %v2058, 0.0
    %v2064 = vand.u32 %v2058, 2147483648
    %v2065 = vsel %vm2063, %v2064, %v2062
    %v2066 = vmul.f32 %v2065, %v1915
    %v2067 = vadd.f32 %v2004, %v2066
    %vm2068 = vcmp.gt.f32.partialorder %v2067, 20.0
    %v2069 = vmin.f32 %v2067, 20.0
    %v2070 = vmul.f32 %v2069, 1.442695
    %v2071 = vpow.pop %v2070
    %v2072 = vadd.f32 %v2071, 1.0
    %v2073 = vlog2.pop %v2072
    %v2074 = vmul.f32 %v2073, 0.6931472
    %v2075 = vmul.f32 -0.5, %v2071
    %v2076 = vadd.f32 %v2075, 1.0
    %v2077 = vmul.f32 %v2076, %v2071
    %v2078 = vand.u32 2147483647, %v2071
    %vm2079 = vcmp.lt.f32.partialorder %v2078, 0.0004427343
    %v2080 = vsel %vm2079, %v2077, %v2074
    %v2081 = vsel %vm2068, %v2067, %v2080
    %s2082 = scalar_lea.vmem [#allocation5], 12
    %2083 = vst.msk [vmem:[%s2082] sm:$0xf] %vm1104, %v2081
    %v2084 = vpack.c.bf16 %v2081, %v2081
    %v2086 = vsel %vm583, %v2084, 0
    %2088 = vmatprep.subr.bf16.mxu0 0
    %2089 = vmatpush1.bf16.msra.mxu0 %v589
    %2090 = vmatprep.subr.bf16.mxu0 0
    %2091 = vmatpush1.bf16.msra.mxu0 0
    %2092 = vmatprep.subr.bf16.mxu0 0
    %2093 = vmatpush1.bf16.msra.mxu0 0
    %2094 = vmatprep.subr.bf16.mxu0 0
    %2095 = vmatpush1.bf16.msra.mxu0 0
    %2096 = vmatprep.subr.bf16.mxu0 0
    %2097 = vmatpush1.bf16.msra.mxu0 0
    %2098 = vmatprep.subr.bf16.mxu0 0
    %2099 = vmatpush1.bf16.msra.mxu0 0
    %2100 = vmatprep.subr.bf16.mxu0 0
    %2101 = vmatpush1.bf16.msra.mxu0 0
    %2102 = vmatprep.subr.bf16.mxu0 0
    %2103 = vmatpush1.bf16.msra.mxu0 0
    %2104 = vmatprep.subr.bf16.mxu0 0
    %2105 = vmatpush1.bf16.msra.mxu0 0
    %2106 = vmatprep.subr.bf16.mxu0 0
    %2107 = vmatpush1.bf16.msra.mxu0 0
    %2108 = vmatprep.subr.bf16.mxu0 0
    %2109 = vmatpush1.bf16.msra.mxu0 0
    %2110 = vmatprep.subr.bf16.mxu0 0
    %2111 = vmatpush1.bf16.msra.mxu0 0
    %2112 = vmatprep.subr.bf16.mxu0 0
    %2113 = vmatpush1.bf16.msra.mxu0 0
    %2114 = vmatprep.subr.bf16.mxu0 0
    %2115 = vmatpush1.bf16.msra.mxu0 0
    %2116 = vmatprep.subr.bf16.mxu0 0
    %2117 = vmatpush1.bf16.msra.mxu0 0
    %2118 = vmatprep.subr.bf16.mxu0 0
    %2119 = vmatpush1.bf16.msra.mxu0 0
    %2120 = vmatprep.mubr.bf16.mxu0 0
    %2121 = vmatmul.mubr.bf16.gmra.mrb[0].mxu0 %v2086
    %v2122 = vpop.f32.mrb[0].mxu0
    %v2123 = vadd.f32 %v1868, %v2122
    %v2124 = vpop.f32.mrb[0].mxu0
    %v2125 = vpop.f32.mrb[0].mxu0
    %v2126 = vpop.f32.mrb[0].mxu0
    %2127 = vdwg.mxu0
    %v2128 = vxor.u32 %v2123, 2147483648
    %v2129 = vmul.f32 %v2128, 1.442695
    %v2130 = vpow.pop %v2129
    %v2131 = vadd.f32 %v2130, 1.0
    %v2132 = vrcp.pop %v2131
    %v2133 = vmul.f32 1.0, %v2132
    %v2134 = vtanh.pop %v2123
    %v2135 = vmul.f32 %v2133, %v1819
    %2137 = vrot.lane.b32.xlu0 %v2134, 64
    %v2138 = vpop.permute.xlu0 %2137
    %v2140 = vmul.f32 %v2133, %v2138
    %2142 = vrot.lane.b32.xlu0 %v2140, 32
    %v2143 = vpop.permute.xlu0 %2142
    %v2145 = vadd.f32 %v2135, %v2143
    %v2146 = vtanh.pop %v2145
    %2148 = vrot.lane.b32.xlu0 %v2146, 64
    %v2149 = vpop.permute.xlu0 %2148
    %v2151 = vmul.f32 %v2133, %v2149
    %v2152 = vpack.c.bf16 %v2151, %v2151
    %2154 = vrot.lane.b32.xlu0 %v2152, 32
    %v2155 = vpop.permute.xlu0 %2154
    %v2157 = vsel %vm695, %v2155, 0
    %2159 = vmatprep.subr.bf16.mxu0 %v684
    %2160 = vmatpush1.bf16.msra.mxu0 %v683
    %2161 = vmatprep.subr.bf16.mxu0 %v687
    %2162 = vmatpush1.bf16.msra.mxu0 %v686
    %2163 = vmatprep.subr.bf16.mxu0 0
    %2164 = vmatpush1.bf16.msra.mxu0 0
    %2165 = vmatprep.subr.bf16.mxu0 0
    %2166 = vmatpush1.bf16.msra.mxu0 0
    %2167 = vmatprep.subr.bf16.mxu0 0
    %2168 = vmatpush1.bf16.msra.mxu0 0
    %2169 = vmatprep.subr.bf16.mxu0 0
    %2170 = vmatpush1.bf16.msra.mxu0 0
    %2171 = vmatprep.subr.bf16.mxu0 0
    %2172 = vmatpush1.bf16.msra.mxu0 0
    %2173 = vmatprep.subr.bf16.mxu0 0
    %2174 = vmatpush1.bf16.msra.mxu0 0
    %2175 = vmatprep.subr.bf16.mxu0 0
    %2176 = vmatpush1.bf16.msra.mxu0 0
    %2177 = vmatprep.subr.bf16.mxu0 0
    %2178 = vmatpush1.bf16.msra.mxu0 0
    %2179 = vmatprep.subr.bf16.mxu0 0
    %2180 = vmatpush1.bf16.msra.mxu0 0
    %2181 = vmatprep.subr.bf16.mxu0 0
    %2182 = vmatpush1.bf16.msra.mxu0 0
    %2183 = vmatprep.subr.bf16.mxu0 0
    %2184 = vmatpush1.bf16.msra.mxu0 0
    %2185 = vmatprep.subr.bf16.mxu0 0
    %2186 = vmatpush1.bf16.msra.mxu0 0
    %2187 = vmatprep.subr.bf16.mxu0 0
    %2188 = vmatpush1.bf16.msra.mxu0 0
    %2189 = vmatprep.subr.bf16.mxu0 0
    %2190 = vmatpush1.bf16.msra.mxu0 0
    %2191 = vmatprep.mubr.bf16.mxu0 0
    %2192 = vmatmul.mubr.bf16.gmra.mrb[0].mxu0 %v2157
    %v2193 = vpop.f32.mrb[0].mxu0
    %v2194 = vadd.f32 0.0, %v2193
    %v2195 = vpop.f32.mrb[0].mxu0
    %v2196 = vadd.f32 0.0, %v2195
    %v2197 = vpop.f32.mrb[0].mxu0
    %v2198 = vpop.f32.mrb[0].mxu0
    %2199 = vdwg.mxu0
    %2200 = vmatprep.subr.bf16.mxu0 0
    %2201 = vmatpush1.bf16.msra.mxu0 %v685
    %2202 = vmatprep.subr.bf16.mxu0 0
    %2203 = vmatpush1.bf16.msra.mxu0 %v688
    %2204 = vmatprep.subr.bf16.mxu0 0
    %2205 = vmatpush1.bf16.msra.mxu0 0
    %2206 = vmatprep.subr.bf16.mxu0 0
    %2207 = vmatpush1.bf16.msra.mxu0 0
    %2208 = vmatprep.subr.bf16.mxu0 0
    %2209 = vmatpush1.bf16.msra.mxu0 0
    %2210 = vmatprep.subr.bf16.mxu0 0
    %2211 = vmatpush1.bf16.msra.mxu0 0
    %2212 = vmatprep.subr.bf16.mxu0 0
    %2213 = vmatpush1.bf16.msra.mxu0 0
    %2214 = vmatprep.subr.bf16.mxu0 0
    %2215 = vmatpush1.bf16.msra.mxu0 0
    %2216 = vmatprep.subr.bf16.mxu0 0
    %2217 = vmatpush1.bf16.msra.mxu0 0
    %2218 = vmatprep.subr.bf16.mxu0 0
    %2219 = vmatpush1.bf16.msra.mxu0 0
    %2220 = vmatprep.subr.bf16.mxu0 0
    %2221 = vmatpush1.bf16.msra.mxu0 0
    %2222 = vmatprep.subr.bf16.mxu0 0
    %2223 = vmatpush1.bf16.msra.mxu0 0
    %2224 = vmatprep.subr.bf16.mxu0 0
    %2225 = vmatpush1.bf16.msra.mxu0 0
    %2226 = vmatprep.subr.bf16.mxu0 0
    %2227 = vmatpush1.bf16.msra.mxu0 0
    %2228 = vmatprep.subr.bf16.mxu0 0
    %2229 = vmatpush1.bf16.msra.mxu0 0
    %2230 = vmatprep.subr.bf16.mxu0 0
    %2231 = vmatpush1.bf16.msra.mxu0 0
    %2232 = vmatprep.mubr.bf16.mxu0 0
    %2233 = vmatmul.mubr.bf16.gmra.mrb[0].mxu0 %v2157
    %v2234 = vpop.f32.mrb[0].mxu0
    %v2235 = vadd.f32 0.0, %v2234
    %v2236 = vpop.f32.mrb[0].mxu0
    %v2237 = vpop.f32.mrb[0].mxu0
    %v2238 = vpop.f32.mrb[0].mxu0
    %2239 = vdwg.mxu0
    %s2240 = scalar_lea.vmem %s3, 16
    %v2241 = vld [vmem:[%s2240] sm:$0xf]
    %v2242 = vadd.f32 %v2196, %v104
    %v2243 = vadd.f32 %v2235, %v108
    %vm2244 = vcmp.gt.f32.partialorder %v2242, 20.0
    %vm2245 = vcmp.gt.f32.partialorder %v2243, 20.0
    %v2246 = vmin.f32 %v2242, 20.0
    %v2247 = vmin.f32 %v2243, 20.0
    %v2248 = vmul.f32 %v2246, 1.442695
    %v2249 = vpow.pop %v2248
    %v2250 = vmul.f32 %v2247, 1.442695
    %v2251 = vpow.pop %v2250
    %v2252 = vadd.f32 %v2249, 1.0
    %v2253 = vlog2.pop %v2252
    %v2254 = vmul.f32 %v2253, 0.6931472
    %v2255 = vmul.f32 -0.5, %v2249
    %v2256 = vadd.f32 %v2255, 1.0
    %v2257 = vmul.f32 %v2256, %v2249
    %v2258 = vand.u32 2147483647, %v2249
    %vm2259 = vcmp.lt.f32.partialorder %v2258, 0.0004427343
    %v2260 = vsel %vm2259, %v2257, %v2254
    %v2261 = vadd.f32 %v2251, 1.0
    %v2262 = vlog2.pop %v2261
    %v2263 = vmul.f32 %v2262, 0.6931472
    %v2264 = vmul.f32 -0.5, %v2251
    %v2265 = vadd.f32 %v2264, 1.0
    %v2266 = vmul.f32 %v2265, %v2251
    %v2267 = vand.u32 2147483647, %v2251
    %vm2268 = vcmp.lt.f32.partialorder %v2267, 0.0004427343
    %v2269 = vsel %vm2268, %v2266, %v2263
    %v2270 = vsel %vm2244, %v2242, %v2260
    %v2271 = vsel %vm2245, %v2243, %v2269
    %v2272 = vpack.c.bf16 %v2270, %v2270
    %v2273 = vpack.c.bf16 %v2271, %v2271
    %v2275 = vsel %vm888, %v2273, 0
    %2277 = vmatprep.subr.bf16.mxu0 0
    %2278 = vmatpush1.bf16.msra.mxu0 %v863
    %2279 = vmatprep.subr.bf16.mxu0 0
    %2280 = vmatpush1.bf16.msra.mxu0 %v864
    %2281 = vmatprep.subr.bf16.mxu0 0
    %2282 = vmatpush1.bf16.msra.mxu0 %v865
    %2283 = vmatprep.subr.bf16.mxu0 0
    %2284 = vmatpush1.bf16.msra.mxu0 %v866
    %2285 = vmatprep.subr.bf16.mxu0 0
    %2286 = vmatpush1.bf16.msra.mxu0 %v867
    %2287 = vmatprep.subr.bf16.mxu0 0
    %2288 = vmatpush1.bf16.msra.mxu0 %v868
    %2289 = vmatprep.subr.bf16.mxu0 0
    %2290 = vmatpush1.bf16.msra.mxu0 %v869
    %2291 = vmatprep.subr.bf16.mxu0 0
    %2292 = vmatpush1.bf16.msra.mxu0 %v870
    %2293 = vmatprep.subr.bf16.mxu0 0
    %2294 = vmatpush1.bf16.msra.mxu0 %v871
    %2295 = vmatprep.subr.bf16.mxu0 0
    %2296 = vmatpush1.bf16.msra.mxu0 %v872
    %2297 = vmatprep.subr.bf16.mxu0 0
    %2298 = vmatpush1.bf16.msra.mxu0 %v873
    %2299 = vmatprep.subr.bf16.mxu0 0
    %2300 = vmatpush1.bf16.msra.mxu0 %v874
    %2301 = vmatprep.subr.bf16.mxu0 0
    %2302 = vmatpush1.bf16.msra.mxu0 %v893
    %2303 = vmatprep.subr.bf16.mxu0 0
    %2304 = vmatpush1.bf16.msra.mxu0 0
    %2305 = vmatprep.subr.bf16.mxu0 0
    %2306 = vmatpush1.bf16.msra.mxu0 0
    %2307 = vmatprep.subr.bf16.mxu0 0
    %2308 = vmatpush1.bf16.msra.mxu0 0
    %2309 = vmatprep.mubr.bf16.mxu0 %v2275
    %2310 = vmatmul.mubr.bf16.gmra.mrb[0].mxu0 %v2272
    %v2311 = vpop.f32.mrb[0].mxu0
    %v2312 = vadd.f32 %v116, %v2311
    %v2313 = vpop.f32.mrb[0].mxu0
    %v2314 = vpop.f32.mrb[0].mxu0
    %v2315 = vpop.f32.mrb[0].mxu0
    %2316 = vdwg.mxu0
    %vm2317 = vcmp.gt.f32.partialorder %v2312, 20.0
    %v2318 = vmin.f32 %v2312, 20.0
    %v2319 = vmul.f32 %v2318, 1.442695
    %v2320 = vpow.pop %v2319
    %v2321 = vadd.f32 %v2320, 1.0
    %v2322 = vlog2.pop %v2321
    %v2323 = vmul.f32 %v2322, 0.6931472
    %v2324 = vmul.f32 -0.5, %v2320
    %v2325 = vadd.f32 %v2324, 1.0
    %v2326 = vmul.f32 %v2325, %v2320
    %v2327 = vand.u32 2147483647, %v2320
    %vm2328 = vcmp.lt.f32.partialorder %v2327, 0.0004427343
    %v2329 = vsel %vm2328, %v2326, %v2323
    %v2330 = vsel %vm2317, %v2312, %v2329
    %2331 = vmatprep.subr.bf16.mxu0 0
    %2332 = vmatpush1.bf16.msra.mxu0 %v999
    %2333 = vmatprep.subr.bf16.mxu0 0
    %2334 = vmatpush1.bf16.msra.mxu0 %v1000
    %2335 = vmatprep.subr.bf16.mxu0 0
    %2336 = vmatpush1.bf16.msra.mxu0 %v1001
    %2337 = vmatprep.subr.bf16.mxu0 0
    %2338 = vmatpush1.bf16.msra.mxu0 %v1002
    %2339 = vmatprep.subr.bf16.mxu0 0
    %2340 = vmatpush1.bf16.msra.mxu0 %v1003
    %2341 = vmatprep.subr.bf16.mxu0 0
    %2342 = vmatpush1.bf16.msra.mxu0 %v1004
    %2343 = vmatprep.subr.bf16.mxu0 0
    %2344 = vmatpush1.bf16.msra.mxu0 %v1005
    %2345 = vmatprep.subr.bf16.mxu0 0
    %2346 = vmatpush1.bf16.msra.mxu0 %v1006
    %2347 = vmatprep.subr.bf16.mxu0 0
    %2348 = vmatpush1.bf16.msra.mxu0 %v1007
    %2349 = vmatprep.subr.bf16.mxu0 0
    %2350 = vmatpush1.bf16.msra.mxu0 %v1008
    %2351 = vmatprep.subr.bf16.mxu0 0
    %2352 = vmatpush1.bf16.msra.mxu0 %v1009
    %2353 = vmatprep.subr.bf16.mxu0 0
    %2354 = vmatpush1.bf16.msra.mxu0 %v1010
    %2355 = vmatprep.subr.bf16.mxu0 0
    %2356 = vmatpush1.bf16.msra.mxu0 %v1025
    %2357 = vmatprep.subr.bf16.mxu0 0
    %2358 = vmatpush1.bf16.msra.mxu0 0
    %2359 = vmatprep.subr.bf16.mxu0 0
    %2360 = vmatpush1.bf16.msra.mxu0 0
    %2361 = vmatprep.subr.bf16.mxu0 0
    %2362 = vmatpush1.bf16.msra.mxu0 0
    %2363 = vmatprep.mubr.bf16.mxu0 %v2275
    %2364 = vmatmul.mubr.bf16.gmra.mrb[0].mxu0 %v2272
    %v2365 = vpop.f32.mrb[0].mxu0
    %v2366 = vadd.f32 %v123, %v2365
    %v2367 = vpop.f32.mrb[0].mxu0
    %v2368 = vpop.f32.mrb[0].mxu0
    %v2369 = vpop.f32.mrb[0].mxu0
    %2370 = vdwg.mxu0
    %vm2371 = vcmp.gt.f32.partialorder %v2366, 20.0
    %v2372 = vmin.f32 %v2366, 20.0
    %v2373 = vmul.f32 %v2372, 1.442695
    %v2374 = vpow.pop %v2373
    %v2375 = vadd.f32 %v2374, 1.0
    %v2376 = vlog2.pop %v2375
    %v2377 = vmul.f32 %v2376, 0.6931472
    %v2378 = vmul.f32 -0.5, %v2374
    %v2379 = vadd.f32 %v2378, 1.0
    %v2380 = vmul.f32 %v2379, %v2374
    %v2381 = vand.u32 2147483647, %v2374
    %vm2382 = vcmp.lt.f32.partialorder %v2381, 0.0004427343
    %v2383 = vsel %vm2382, %v2380, %v2377
    %v2384 = vsel %vm2371, %v2366, %v2383
    %v2385 = vrsqrt.pop %v2384
    %v2386 = vmul.f32 %v2384, %v2385
    %vm2387 = vcmp.eq.f32.partialorder %v2384, inf
    %v2388 = vsel %vm2387, %v2384, %v2386
    %vm2389 = vcmp.eq.f32.partialorder %v2384, 0.0
    %v2390 = vand.u32 %v2384, 2147483648
    %v2391 = vsel %vm2389, %v2390, %v2388
    %v2392 = vmul.f32 %v2391, %v2241
    %v2393 = vadd.f32 %v2330, %v2392
    %vm2394 = vcmp.gt.f32.partialorder %v2393, 20.0
    %v2395 = vmin.f32 %v2393, 20.0
    %v2396 = vmul.f32 %v2395, 1.442695
    %v2397 = vpow.pop %v2396
    %v2398 = vadd.f32 %v2397, 1.0
    %v2399 = vlog2.pop %v2398
    %v2400 = vmul.f32 %v2399, 0.6931472
    %v2401 = vmul.f32 -0.5, %v2397
    %v2402 = vadd.f32 %v2401, 1.0
    %v2403 = vmul.f32 %v2402, %v2397
    %v2404 = vand.u32 2147483647, %v2397
    %vm2405 = vcmp.lt.f32.partialorder %v2404, 0.0004427343
    %v2406 = vsel %vm2405, %v2403, %v2400
    %v2407 = vsel %vm2394, %v2393, %v2406
    %s2408 = scalar_lea.vmem [#allocation5], 16
    %2409 = vst.msk [vmem:[%s2408] sm:$0xf] %vm1104, %v2407
    %v2410 = vpack.c.bf16 %v2407, %v2407
    %v2412 = vsel %vm583, %v2410, 0
    %2414 = vmatprep.subr.bf16.mxu0 0
    %2415 = vmatpush1.bf16.msra.mxu0 %v589
    %2416 = vmatprep.subr.bf16.mxu0 0
    %2417 = vmatpush1.bf16.msra.mxu0 0
    %2418 = vmatprep.subr.bf16.mxu0 0
    %2419 = vmatpush1.bf16.msra.mxu0 0
    %2420 = vmatprep.subr.bf16.mxu0 0
    %2421 = vmatpush1.bf16.msra.mxu0 0
    %2422 = vmatprep.subr.bf16.mxu0 0
    %2423 = vmatpush1.bf16.msra.mxu0 0
    %2424 = vmatprep.subr.bf16.mxu0 0
    %2425 = vmatpush1.bf16.msra.mxu0 0
    %2426 = vmatprep.subr.bf16.mxu0 0
    %2427 = vmatpush1.bf16.msra.mxu0 0
    %2428 = vmatprep.subr.bf16.mxu0 0
    %2429 = vmatpush1.bf16.msra.mxu0 0
    %2430 = vmatprep.subr.bf16.mxu0 0
    %2431 = vmatpush1.bf16.msra.mxu0 0
    %2432 = vmatprep.subr.bf16.mxu0 0
    %2433 = vmatpush1.bf16.msra.mxu0 0
    %2434 = vmatprep.subr.bf16.mxu0 0
    %2435 = vmatpush1.bf16.msra.mxu0 0
    %2436 = vmatprep.subr.bf16.mxu0 0
    %2437 = vmatpush1.bf16.msra.mxu0 0
    %2438 = vmatprep.subr.bf16.mxu0 0
    %2439 = vmatpush1.bf16.msra.mxu0 0
    %2440 = vmatprep.subr.bf16.mxu0 0
    %2441 = vmatpush1.bf16.msra.mxu0 0
    %2442 = vmatprep.subr.bf16.mxu0 0
    %2443 = vmatpush1.bf16.msra.mxu0 0
    %2444 = vmatprep.subr.bf16.mxu0 0
    %2445 = vmatpush1.bf16.msra.mxu0 0
    %2446 = vmatprep.mubr.bf16.mxu0 0
    %2447 = vmatmul.mubr.bf16.gmra.mrb[0].mxu0 %v2412
    %v2448 = vpop.f32.mrb[0].mxu0
    %v2449 = vadd.f32 %v2194, %v2448
    %v2450 = vpop.f32.mrb[0].mxu0
    %v2451 = vpop.f32.mrb[0].mxu0
    %v2452 = vpop.f32.mrb[0].mxu0
    %2453 = vdwg.mxu0
    %v2454 = vxor.u32 %v2449, 2147483648
    %v2455 = vmul.f32 %v2454, 1.442695
    %v2456 = vpow.pop %v2455
    %v2457 = vadd.f32 %v2456, 1.0
    %v2458 = vrcp.pop %v2457
    %v2459 = vmul.f32 1.0, %v2458
    %v2460 = vtanh.pop %v2449
    %v2461 = vmul.f32 %v2459, %v2145
    %2463 = vrot.lane.b32.xlu0 %v2460, 64
    %v2464 = vpop.permute.xlu0 %2463
    %v2466 = vmul.f32 %v2459, %v2464
    %2468 = vrot.lane.b32.xlu0 %v2466, 32
    %v2469 = vpop.permute.xlu0 %2468
    %v2471 = vadd.f32 %v2461, %v2469
    %v2472 = vtanh.pop %v2471
    %2474 = vrot.lane.b32.xlu0 %v2472, 64
    %v2475 = vpop.permute.xlu0 %2474
    %v2477 = vmul.f32 %v2459, %v2475
    %v2478 = vpack.c.bf16 %v2477, %v2477
    %2480 = vrot.lane.b32.xlu0 %v2478, 32
    %v2481 = vpop.permute.xlu0 %2480
    %v2483 = vsel %vm695, %v2481, 0
    %2485 = vmatprep.subr.bf16.mxu0 %v684
    %2486 = vmatpush1.bf16.msra.mxu0 %v683
    %2487 = vmatprep.subr.bf16.mxu0 %v687
    %2488 = vmatpush1.bf16.msra.mxu0 %v686
    %2489 = vmatprep.subr.bf16.mxu0 0
    %2490 = vmatpush1.bf16.msra.mxu0 0
    %2491 = vmatprep.subr.bf16.mxu0 0
    %2492 = vmatpush1.bf16.msra.mxu0 0
    %2493 = vmatprep.subr.bf16.mxu0 0
    %2494 = vmatpush1.bf16.msra.mxu0 0
    %2495 = vmatprep.subr.bf16.mxu0 0
    %2496 = vmatpush1.bf16.msra.mxu0 0
    %2497 = vmatprep.subr.bf16.mxu0 0
    %2498 = vmatpush1.bf16.msra.mxu0 0
    %2499 = vmatprep.subr.bf16.mxu0 0
    %2500 = vmatpush1.bf16.msra.mxu0 0
    %2501 = vmatprep.subr.bf16.mxu0 0
    %2502 = vmatpush1.bf16.msra.mxu0 0
    %2503 = vmatprep.subr.bf16.mxu0 0
    %2504 = vmatpush1.bf16.msra.mxu0 0
    %2505 = vmatprep.subr.bf16.mxu0 0
    %2506 = vmatpush1.bf16.msra.mxu0 0
    %2507 = vmatprep.subr.bf16.mxu0 0
    %2508 = vmatpush1.bf16.msra.mxu0 0
    %2509 = vmatprep.subr.bf16.mxu0 0
    %2510 = vmatpush1.bf16.msra.mxu0 0
    %2511 = vmatprep.subr.bf16.mxu0 0
    %2512 = vmatpush1.bf16.msra.mxu0 0
    %2513 = vmatprep.subr.bf16.mxu0 0
    %2514 = vmatpush1.bf16.msra.mxu0 0
    %2515 = vmatprep.subr.bf16.mxu0 0
    %2516 = vmatpush1.bf16.msra.mxu0 0
    %2517 = vmatprep.mubr.bf16.mxu0 0
    %2518 = vmatmul.mubr.bf16.gmra.mrb[0].mxu0 %v2483
    %v2519 = vpop.f32.mrb[0].mxu0
    %v2520 = vadd.f32 0.0, %v2519
    %v2521 = vpop.f32.mrb[0].mxu0
    %v2522 = vadd.f32 0.0, %v2521
    %v2523 = vpop.f32.mrb[0].mxu0
    %v2524 = vpop.f32.mrb[0].mxu0
    %2525 = vdwg.mxu0
    %2526 = vmatprep.subr.bf16.mxu0 0
    %2527 = vmatpush1.bf16.msra.mxu0 %v685
    %2528 = vmatprep.subr.bf16.mxu0 0
    %2529 = vmatpush1.bf16.msra.mxu0 %v688
    %2530 = vmatprep.subr.bf16.mxu0 0
    %2531 = vmatpush1.bf16.msra.mxu0 0
    %2532 = vmatprep.subr.bf16.mxu0 0
    %2533 = vmatpush1.bf16.msra.mxu0 0
    %2534 = vmatprep.subr.bf16.mxu0 0
    %2535 = vmatpush1.bf16.msra.mxu0 0
    %2536 = vmatprep.subr.bf16.mxu0 0
    %2537 = vmatpush1.bf16.msra.mxu0 0
    %2538 = vmatprep.subr.bf16.mxu0 0
    %2539 = vmatpush1.bf16.msra.mxu0 0
    %2540 = vmatprep.subr.bf16.mxu0 0
    %2541 = vmatpush1.bf16.msra.mxu0 0
    %2542 = vmatprep.subr.bf16.mxu0 0
    %2543 = vmatpush1.bf16.msra.mxu0 0
    %2544 = vmatprep.subr.bf16.mxu0 0
    %2545 = vmatpush1.bf16.msra.mxu0 0
    %2546 = vmatprep.subr.bf16.mxu0 0
    %2547 = vmatpush1.bf16.msra.mxu0 0
    %2548 = vmatprep.subr.bf16.mxu0 0
    %2549 = vmatpush1.bf16.msra.mxu0 0
    %2550 = vmatprep.subr.bf16.mxu0 0
    %2551 = vmatpush1.bf16.msra.mxu0 0
    %2552 = vmatprep.subr.bf16.mxu0 0
    %2553 = vmatpush1.bf16.msra.mxu0 0
    %2554 = vmatprep.subr.bf16.mxu0 0
    %2555 = vmatpush1.bf16.msra.mxu0 0
    %2556 = vmatprep.subr.bf16.mxu0 0
    %2557 = vmatpush1.bf16.msra.mxu0 0
    %2558 = vmatprep.mubr.bf16.mxu0 0
    %2559 = vmatmul.mubr.bf16.gmra.mrb[0].mxu0 %v2483
    %v2560 = vpop.f32.mrb[0].mxu0
    %v2561 = vadd.f32 0.0, %v2560
    %v2562 = vpop.f32.mrb[0].mxu0
    %v2563 = vpop.f32.mrb[0].mxu0
    %v2564 = vpop.f32.mrb[0].mxu0
    %2565 = vdwg.mxu0
    %s2566 = scalar_lea.vmem %s3, 20
    %v2567 = vld [vmem:[%s2566] sm:$0xf]
    %v2568 = vadd.f32 %v2522, %v104
    %v2569 = vadd.f32 %v2561, %v108
    %vm2570 = vcmp.gt.f32.partialorder %v2568, 20.0
    %vm2571 = vcmp.gt.f32.partialorder %v2569, 20.0
    %v2572 = vmin.f32 %v2568, 20.0
    %v2573 = vmin.f32 %v2569, 20.0
    %v2574 = vmul.f32 %v2572, 1.442695
    %v2575 = vpow.pop %v2574
    %v2576 = vmul.f32 %v2573, 1.442695
    %v2577 = vpow.pop %v2576
    %v2578 = vadd.f32 %v2575, 1.0
    %v2579 = vlog2.pop %v2578
    %v2580 = vmul.f32 %v2579, 0.6931472
    %v2581 = vmul.f32 -0.5, %v2575
    %v2582 = vadd.f32 %v2581, 1.0
    %v2583 = vmul.f32 %v2582, %v2575
    %v2584 = vand.u32 2147483647, %v2575
    %vm2585 = vcmp.lt.f32.partialorder %v2584, 0.0004427343
    %v2586 = vsel %vm2585, %v2583, %v2580
    %v2587 = vadd.f32 %v2577, 1.0
    %v2588 = vlog2.pop %v2587
    %v2589 = vmul.f32 %v2588, 0.6931472
    %v2590 = vmul.f32 -0.5, %v2577
    %v2591 = vadd.f32 %v2590, 1.0
    %v2592 = vmul.f32 %v2591, %v2577
    %v2593 = vand.u32 2147483647, %v2577
    %vm2594 = vcmp.lt.f32.partialorder %v2593, 0.0004427343
    %v2595 = vsel %vm2594, %v2592, %v2589
    %v2596 = vsel %vm2570, %v2568, %v2586
    %v2597 = vsel %vm2571, %v2569, %v2595
    %v2598 = vpack.c.bf16 %v2596, %v2596
    %v2599 = vpack.c.bf16 %v2597, %v2597
    %v2601 = vsel %vm888, %v2599, 0
    %2603 = vmatprep.subr.bf16.mxu0 0
    %2604 = vmatpush1.bf16.msra.mxu0 %v863
    %2605 = vmatprep.subr.bf16.mxu0 0
    %2606 = vmatpush1.bf16.msra.mxu0 %v864
    %2607 = vmatprep.subr.bf16.mxu0 0
    %2608 = vmatpush1.bf16.msra.mxu0 %v865
    %2609 = vmatprep.subr.bf16.mxu0 0
    %2610 = vmatpush1.bf16.msra.mxu0 %v866
    %2611 = vmatprep.subr.bf16.mxu0 0
    %2612 = vmatpush1.bf16.msra.mxu0 %v867
    %2613 = vmatprep.subr.bf16.mxu0 0
    %2614 = vmatpush1.bf16.msra.mxu0 %v868
    %2615 = vmatprep.subr.bf16.mxu0 0
    %2616 = vmatpush1.bf16.msra.mxu0 %v869
    %2617 = vmatprep.subr.bf16.mxu0 0
    %2618 = vmatpush1.bf16.msra.mxu0 %v870
    %2619 = vmatprep.subr.bf16.mxu0 0
    %2620 = vmatpush1.bf16.msra.mxu0 %v871
    %2621 = vmatprep.subr.bf16.mxu0 0
    %2622 = vmatpush1.bf16.msra.mxu0 %v872
    %2623 = vmatprep.subr.bf16.mxu0 0
    %2624 = vmatpush1.bf16.msra.mxu0 %v873
    %2625 = vmatprep.subr.bf16.mxu0 0
    %2626 = vmatpush1.bf16.msra.mxu0 %v874
    %2627 = vmatprep.subr.bf16.mxu0 0
    %2628 = vmatpush1.bf16.msra.mxu0 %v893
    %2629 = vmatprep.subr.bf16.mxu0 0
    %2630 = vmatpush1.bf16.msra.mxu0 0
    %2631 = vmatprep.subr.bf16.mxu0 0
    %2632 = vmatpush1.bf16.msra.mxu0 0
    %2633 = vmatprep.subr.bf16.mxu0 0
    %2634 = vmatpush1.bf16.msra.mxu0 0
    %2635 = vmatprep.mubr.bf16.mxu0 %v2601
    %2636 = vmatmul.mubr.bf16.gmra.mrb[0].mxu0 %v2598
    %v2637 = vpop.f32.mrb[0].mxu0
    %v2638 = vadd.f32 %v116, %v2637
    %v2639 = vpop.f32.mrb[0].mxu0
    %v2640 = vpop.f32.mrb[0].mxu0
    %v2641 = vpop.f32.mrb[0].mxu0
    %2642 = vdwg.mxu0
    %vm2643 = vcmp.gt.f32.partialorder %v2638, 20.0
    %v2644 = vmin.f32 %v2638, 20.0
    %v2645 = vmul.f32 %v2644, 1.442695
    %v2646 = vpow.pop %v2645
    %v2647 = vadd.f32 %v2646, 1.0
    %v2648 = vlog2.pop %v2647
    %v2649 = vmul.f32 %v2648, 0.6931472
    %v2650 = vmul.f32 -0.5, %v2646
    %v2651 = vadd.f32 %v2650, 1.0
    %v2652 = vmul.f32 %v2651, %v2646
    %v2653 = vand.u32 2147483647, %v2646
    %vm2654 = vcmp.lt.f32.partialorder %v2653, 0.0004427343
    %v2655 = vsel %vm2654, %v2652, %v2649
    %v2656 = vsel %vm2643, %v2638, %v2655
    %2657 = vmatprep.subr.bf16.mxu0 0
    %2658 = vmatpush1.bf16.msra.mxu0 %v999
    %2659 = vmatprep.subr.bf16.mxu0 0
    %2660 = vmatpush1.bf16.msra.mxu0 %v1000
    %2661 = vmatprep.subr.bf16.mxu0 0
    %2662 = vmatpush1.bf16.msra.mxu0 %v1001
    %2663 = vmatprep.subr.bf16.mxu0 0
    %2664 = vmatpush1.bf16.msra.mxu0 %v1002
    %2665 = vmatprep.subr.bf16.mxu0 0
    %2666 = vmatpush1.bf16.msra.mxu0 %v1003
    %2667 = vmatprep.subr.bf16.mxu0 0
    %2668 = vmatpush1.bf16.msra.mxu0 %v1004
    %2669 = vmatprep.subr.bf16.mxu0 0
    %2670 = vmatpush1.bf16.msra.mxu0 %v1005
    %2671 = vmatprep.subr.bf16.mxu0 0
    %2672 = vmatpush1.bf16.msra.mxu0 %v1006
    %2673 = vmatprep.subr.bf16.mxu0 0
    %2674 = vmatpush1.bf16.msra.mxu0 %v1007
    %2675 = vmatprep.subr.bf16.mxu0 0
    %2676 = vmatpush1.bf16.msra.mxu0 %v1008
    %2677 = vmatprep.subr.bf16.mxu0 0
    %2678 = vmatpush1.bf16.msra.mxu0 %v1009
    %2679 = vmatprep.subr.bf16.mxu0 0
    %2680 = vmatpush1.bf16.msra.mxu0 %v1010
    %2681 = vmatprep.subr.bf16.mxu0 0
    %2682 = vmatpush1.bf16.msra.mxu0 %v1025
    %2683 = vmatprep.subr.bf16.mxu0 0
    %2684 = vmatpush1.bf16.msra.mxu0 0
    %2685 = vmatprep.subr.bf16.mxu0 0
    %2686 = vmatpush1.bf16.msra.mxu0 0
    %2687 = vmatprep.subr.bf16.mxu0 0
    %2688 = vmatpush1.bf16.msra.mxu0 0
    %2689 = vmatprep.mubr.bf16.mxu0 %v2601
    %2690 = vmatmul.mubr.bf16.gmra.mrb[0].mxu0 %v2598
    %v2691 = vpop.f32.mrb[0].mxu0
    %v2692 = vadd.f32 %v123, %v2691
    %v2693 = vpop.f32.mrb[0].mxu0
    %v2694 = vpop.f32.mrb[0].mxu0
    %v2695 = vpop.f32.mrb[0].mxu0
    %2696 = vdwg.mxu0
    %vm2697 = vcmp.gt.f32.partialorder %v2692, 20.0
    %v2698 = vmin.f32 %v2692, 20.0
    %v2699 = vmul.f32 %v2698, 1.442695
    %v2700 = vpow.pop %v2699
    %v2701 = vadd.f32 %v2700, 1.0
    %v2702 = vlog2.pop %v2701
    %v2703 = vmul.f32 %v2702, 0.6931472
    %v2704 = vmul.f32 -0.5, %v2700
    %v2705 = vadd.f32 %v2704, 1.0
    %v2706 = vmul.f32 %v2705, %v2700
    %v2707 = vand.u32 2147483647, %v2700
    %vm2708 = vcmp.lt.f32.partialorder %v2707, 0.0004427343
    %v2709 = vsel %vm2708, %v2706, %v2703
    %v2710 = vsel %vm2697, %v2692, %v2709
    %v2711 = vrsqrt.pop %v2710
    %v2712 = vmul.f32 %v2710, %v2711
    %vm2713 = vcmp.eq.f32.partialorder %v2710, inf
    %v2714 = vsel %vm2713, %v2710, %v2712
    %vm2715 = vcmp.eq.f32.partialorder %v2710, 0.0
    %v2716 = vand.u32 %v2710, 2147483648
    %v2717 = vsel %vm2715, %v2716, %v2714
    %v2718 = vmul.f32 %v2717, %v2567
    %v2719 = vadd.f32 %v2656, %v2718
    %vm2720 = vcmp.gt.f32.partialorder %v2719, 20.0
    %v2721 = vmin.f32 %v2719, 20.0
    %v2722 = vmul.f32 %v2721, 1.442695
    %v2723 = vpow.pop %v2722
    %v2724 = vadd.f32 %v2723, 1.0
    %v2725 = vlog2.pop %v2724
    %v2726 = vmul.f32 %v2725, 0.6931472
    %v2727 = vmul.f32 -0.5, %v2723
    %v2728 = vadd.f32 %v2727, 1.0
    %v2729 = vmul.f32 %v2728, %v2723
    %v2730 = vand.u32 2147483647, %v2723
    %vm2731 = vcmp.lt.f32.partialorder %v2730, 0.0004427343
    %v2732 = vsel %vm2731, %v2729, %v2726
    %v2733 = vsel %vm2720, %v2719, %v2732
    %s2734 = scalar_lea.vmem [#allocation5], 20
    %2735 = vst.msk [vmem:[%s2734] sm:$0xf] %vm1104, %v2733
    %v2736 = vpack.c.bf16 %v2733, %v2733
    %v2738 = vsel %vm583, %v2736, 0
    %2740 = vmatprep.subr.bf16.mxu0 0
    %2741 = vmatpush1.bf16.msra.mxu0 %v589
    %2742 = vmatprep.subr.bf16.mxu0 0
    %2743 = vmatpush1.bf16.msra.mxu0 0
    %2744 = vmatprep.subr.bf16.mxu0 0
    %2745 = vmatpush1.bf16.msra.mxu0 0
    %2746 = vmatprep.subr.bf16.mxu0 0
    %2747 = vmatpush1.bf16.msra.mxu0 0
    %2748 = vmatprep.subr.bf16.mxu0 0
    %2749 = vmatpush1.bf16.msra.mxu0 0
    %2750 = vmatprep.subr.bf16.mxu0 0
    %2751 = vmatpush1.bf16.msra.mxu0 0
    %2752 = vmatprep.subr.bf16.mxu0 0
    %2753 = vmatpush1.bf16.msra.mxu0 0
    %2754 = vmatprep.subr.bf16.mxu0 0
    %2755 = vmatpush1.bf16.msra.mxu0 0
    %2756 = vmatprep.subr.bf16.mxu0 0
    %2757 = vmatpush1.bf16.msra.mxu0 0
    %2758 = vmatprep.subr.bf16.mxu0 0
    %2759 = vmatpush1.bf16.msra.mxu0 0
    %2760 = vmatprep.subr.bf16.mxu0 0
    %2761 = vmatpush1.bf16.msra.mxu0 0
    %2762 = vmatprep.subr.bf16.mxu0 0
    %2763 = vmatpush1.bf16.msra.mxu0 0
    %2764 = vmatprep.subr.bf16.mxu0 0
    %2765 = vmatpush1.bf16.msra.mxu0 0
    %2766 = vmatprep.subr.bf16.mxu0 0
    %2767 = vmatpush1.bf16.msra.mxu0 0
    %2768 = vmatprep.subr.bf16.mxu0 0
    %2769 = vmatpush1.bf16.msra.mxu0 0
    %2770 = vmatprep.subr.bf16.mxu0 0
    %2771 = vmatpush1.bf16.msra.mxu0 0
    %2772 = vmatprep.mubr.bf16.mxu0 0
    %2773 = vmatmul.mubr.bf16.gmra.mrb[0].mxu0 %v2738
    %v2774 = vpop.f32.mrb[0].mxu0
    %v2775 = vadd.f32 %v2520, %v2774
    %v2776 = vpop.f32.mrb[0].mxu0
    %v2777 = vpop.f32.mrb[0].mxu0
    %v2778 = vpop.f32.mrb[0].mxu0
    %2779 = vdwg.mxu0
    %v2780 = vxor.u32 %v2775, 2147483648
    %v2781 = vmul.f32 %v2780, 1.442695
    %v2782 = vpow.pop %v2781
    %v2783 = vadd.f32 %v2782, 1.0
    %v2784 = vrcp.pop %v2783
    %v2785 = vmul.f32 1.0, %v2784
    %v2786 = vtanh.pop %v2775
    %v2787 = vmul.f32 %v2785, %v2471
    %2789 = vrot.lane.b32.xlu0 %v2786, 64
    %v2790 = vpop.permute.xlu0 %2789
    %v2792 = vmul.f32 %v2785, %v2790
    %2794 = vrot.lane.b32.xlu0 %v2792, 32
    %v2795 = vpop.permute.xlu0 %2794
    %v2797 = vadd.f32 %v2787, %v2795
    %v2798 = vtanh.pop %v2797
    %2800 = vrot.lane.b32.xlu0 %v2798, 64
    %v2801 = vpop.permute.xlu0 %2800
    %v2803 = vmul.f32 %v2785, %v2801
    %v2804 = vpack.c.bf16 %v2803, %v2803
    %2806 = vrot.lane.b32.xlu0 %v2804, 32
    %v2807 = vpop.permute.xlu0 %2806
    %v2809 = vsel %vm695, %v2807, 0
    %2811 = vmatprep.subr.bf16.mxu0 %v684
    %2812 = vmatpush1.bf16.msra.mxu0 %v683
    %2813 = vmatprep.subr.bf16.mxu0 %v687
    %2814 = vmatpush1.bf16.msra.mxu0 %v686
    %2815 = vmatprep.subr.bf16.mxu0 0
    %2816 = vmatpush1.bf16.msra.mxu0 0
    %2817 = vmatprep.subr.bf16.mxu0 0
    %2818 = vmatpush1.bf16.msra.mxu0 0
    %2819 = vmatprep.subr.bf16.mxu0 0
    %2820 = vmatpush1.bf16.msra.mxu0 0
    %2821 = vmatprep.subr.bf16.mxu0 0
    %2822 = vmatpush1.bf16.msra.mxu0 0
    %2823 = vmatprep.subr.bf16.mxu0 0
    %2824 = vmatpush1.bf16.msra.mxu0 0
    %2825 = vmatprep.subr.bf16.mxu0 0
    %2826 = vmatpush1.bf16.msra.mxu0 0
    %2827 = vmatprep.subr.bf16.mxu0 0
    %2828 = vmatpush1.bf16.msra.mxu0 0
    %2829 = vmatprep.subr.bf16.mxu0 0
    %2830 = vmatpush1.bf16.msra.mxu0 0
    %2831 = vmatprep.subr.bf16.mxu0 0
    %2832 = vmatpush1.bf16.msra.mxu0 0
    %2833 = vmatprep.subr.bf16.mxu0 0
    %2834 = vmatpush1.bf16.msra.mxu0 0
    %2835 = vmatprep.subr.bf16.mxu0 0
    %2836 = vmatpush1.bf16.msra.mxu0 0
    %2837 = vmatprep.subr.bf16.mxu0 0
    %2838 = vmatpush1.bf16.msra.mxu0 0
    %2839 = vmatprep.subr.bf16.mxu0 0
    %2840 = vmatpush1.bf16.msra.mxu0 0
    %2841 = vmatprep.subr.bf16.mxu0 0
    %2842 = vmatpush1.bf16.msra.mxu0 0
    %2843 = vmatprep.mubr.bf16.mxu0 0
    %2844 = vmatmul.mubr.bf16.gmra.mrb[0].mxu0 %v2809
    %v2845 = vpop.f32.mrb[0].mxu0
    %v2846 = vadd.f32 0.0, %v2845
    %v2847 = vpop.f32.mrb[0].mxu0
    %v2848 = vadd.f32 0.0, %v2847
    %v2849 = vpop.f32.mrb[0].mxu0
    %v2850 = vpop.f32.mrb[0].mxu0
    %2851 = vdwg.mxu0
    %2852 = vmatprep.subr.bf16.mxu0 0
    %2853 = vmatpush1.bf16.msra.mxu0 %v685
    %2854 = vmatprep.subr.bf16.mxu0 0
    %2855 = vmatpush1.bf16.msra.mxu0 %v688
    %2856 = vmatprep.subr.bf16.mxu0 0
    %2857 = vmatpush1.bf16.msra.mxu0 0
    %2858 = vmatprep.subr.bf16.mxu0 0
    %2859 = vmatpush1.bf16.msra.mxu0 0
    %2860 = vmatprep.subr.bf16.mxu0 0
    %2861 = vmatpush1.bf16.msra.mxu0 0
    %2862 = vmatprep.subr.bf16.mxu0 0
    %2863 = vmatpush1.bf16.msra.mxu0 0
    %2864 = vmatprep.subr.bf16.mxu0 0
    %2865 = vmatpush1.bf16.msra.mxu0 0
    %2866 = vmatprep.subr.bf16.mxu0 0
    %2867 = vmatpush1.bf16.msra.mxu0 0
    %2868 = vmatprep.subr.bf16.mxu0 0
    %2869 = vmatpush1.bf16.msra.mxu0 0
    %2870 = vmatprep.subr.bf16.mxu0 0
    %2871 = vmatpush1.bf16.msra.mxu0 0
    %2872 = vmatprep.subr.bf16.mxu0 0
    %2873 = vmatpush1.bf16.msra.mxu0 0
    %2874 = vmatprep.subr.bf16.mxu0 0
    %2875 = vmatpush1.bf16.msra.mxu0 0
    %2876 = vmatprep.subr.bf16.mxu0 0
    %2877 = vmatpush1.bf16.msra.mxu0 0
    %2878 = vmatprep.subr.bf16.mxu0 0
    %2879 = vmatpush1.bf16.msra.mxu0 0
    %2880 = vmatprep.subr.bf16.mxu0 0
    %2881 = vmatpush1.bf16.msra.mxu0 0
    %2882 = vmatprep.subr.bf16.mxu0 0
    %2883 = vmatpush1.bf16.msra.mxu0 0
    %2884 = vmatprep.mubr.bf16.mxu0 0
    %2885 = vmatmul.mubr.bf16.gmra.mrb[0].mxu0 %v2809
    %v2886 = vpop.f32.mrb[0].mxu0
    %v2887 = vadd.f32 0.0, %v2886
    %v2888 = vpop.f32.mrb[0].mxu0
    %v2889 = vpop.f32.mrb[0].mxu0
    %v2890 = vpop.f32.mrb[0].mxu0
    %2891 = vdwg.mxu0
    %s2892 = scalar_lea.vmem %s3, 24
    %v2893 = vld [vmem:[%s2892] sm:$0xf]
    %v2894 = vadd.f32 %v2848, %v104
    %v2895 = vadd.f32 %v2887, %v108
    %vm2896 = vcmp.gt.f32.partialorder %v2894, 20.0
    %vm2897 = vcmp.gt.f32.partialorder %v2895, 20.0
    %v2898 = vmin.f32 %v2894, 20.0
    %v2899 = vmin.f32 %v2895, 20.0
    %v2900 = vmul.f32 %v2898, 1.442695
    %v2901 = vpow.pop %v2900
    %v2902 = vmul.f32 %v2899, 1.442695
    %v2903 = vpow.pop %v2902
    %v2904 = vadd.f32 %v2901, 1.0
    %v2905 = vlog2.pop %v2904
    %v2906 = vmul.f32 %v2905, 0.6931472
    %v2907 = vmul.f32 -0.5, %v2901
    %v2908 = vadd.f32 %v2907, 1.0
    %v2909 = vmul.f32 %v2908, %v2901
    %v2910 = vand.u32 2147483647, %v2901
    %vm2911 = vcmp.lt.f32.partialorder %v2910, 0.0004427343
    %v2912 = vsel %vm2911, %v2909, %v2906
    %v2913 = vadd.f32 %v2903, 1.0
    %v2914 = vlog2.pop %v2913
    %v2915 = vmul.f32 %v2914, 0.6931472
    %v2916 = vmul.f32 -0.5, %v2903
    %v2917 = vadd.f32 %v2916, 1.0
    %v2918 = vmul.f32 %v2917, %v2903
    %v2919 = vand.u32 2147483647, %v2903
    %vm2920 = vcmp.lt.f32.partialorder %v2919, 0.0004427343
    %v2921 = vsel %vm2920, %v2918, %v2915
    %v2922 = vsel %vm2896, %v2894, %v2912
    %v2923 = vsel %vm2897, %v2895, %v2921
    %v2924 = vpack.c.bf16 %v2922, %v2922
    %v2925 = vpack.c.bf16 %v2923, %v2923
    %v2927 = vsel %vm888, %v2925, 0
    %2929 = vmatprep.subr.bf16.mxu0 0
    %2930 = vmatpush1.bf16.msra.mxu0 %v863
    %2931 = vmatprep.subr.bf16.mxu0 0
    %2932 = vmatpush1.bf16.msra.mxu0 %v864
    %2933 = vmatprep.subr.bf16.mxu0 0
    %2934 = vmatpush1.bf16.msra.mxu0 %v865
    %2935 = vmatprep.subr.bf16.mxu0 0
    %2936 = vmatpush1.bf16.msra.mxu0 %v866
    %2937 = vmatprep.subr.bf16.mxu0 0
    %2938 = vmatpush1.bf16.msra.mxu0 %v867
    %2939 = vmatprep.subr.bf16.mxu0 0
    %2940 = vmatpush1.bf16.msra.mxu0 %v868
    %2941 = vmatprep.subr.bf16.mxu0 0
    %2942 = vmatpush1.bf16.msra.mxu0 %v869
    %2943 = vmatprep.subr.bf16.mxu0 0
    %2944 = vmatpush1.bf16.msra.mxu0 %v870
    %2945 = vmatprep.subr.bf16.mxu0 0
    %2946 = vmatpush1.bf16.msra.mxu0 %v871
    %2947 = vmatprep.subr.bf16.mxu0 0
    %2948 = vmatpush1.bf16.msra.mxu0 %v872
    %2949 = vmatprep.subr.bf16.mxu0 0
    %2950 = vmatpush1.bf16.msra.mxu0 %v873
    %2951 = vmatprep.subr.bf16.mxu0 0
    %2952 = vmatpush1.bf16.msra.mxu0 %v874
    %2953 = vmatprep.subr.bf16.mxu0 0
    %2954 = vmatpush1.bf16.msra.mxu0 %v893
    %2955 = vmatprep.subr.bf16.mxu0 0
    %2956 = vmatpush1.bf16.msra.mxu0 0
    %2957 = vmatprep.subr.bf16.mxu0 0
    %2958 = vmatpush1.bf16.msra.mxu0 0
    %2959 = vmatprep.subr.bf16.mxu0 0
    %2960 = vmatpush1.bf16.msra.mxu0 0
    %2961 = vmatprep.mubr.bf16.mxu0 %v2927
    %2962 = vmatmul.mubr.bf16.gmra.mrb[0].mxu0 %v2924
    %v2963 = vpop.f32.mrb[0].mxu0
    %v2964 = vadd.f32 %v116, %v2963
    %v2965 = vpop.f32.mrb[0].mxu0
    %v2966 = vpop.f32.mrb[0].mxu0
    %v2967 = vpop.f32.mrb[0].mxu0
    %2968 = vdwg.mxu0
    %vm2969 = vcmp.gt.f32.partialorder %v2964, 20.0
    %v2970 = vmin.f32 %v2964, 20.0
    %v2971 = vmul.f32 %v2970, 1.442695
    %v2972 = vpow.pop %v2971
    %v2973 = vadd.f32 %v2972, 1.0
    %v2974 = vlog2.pop %v2973
    %v2975 = vmul.f32 %v2974, 0.6931472
    %v2976 = vmul.f32 -0.5, %v2972
    %v2977 = vadd.f32 %v2976, 1.0
    %v2978 = vmul.f32 %v2977, %v2972
    %v2979 = vand.u32 2147483647, %v2972
    %vm2980 = vcmp.lt.f32.partialorder %v2979, 0.0004427343
    %v2981 = vsel %vm2980, %v2978, %v2975
    %v2982 = vsel %vm2969, %v2964, %v2981
    %2983 = vmatprep.subr.bf16.mxu0 0
    %2984 = vmatpush1.bf16.msra.mxu0 %v999
    %2985 = vmatprep.subr.bf16.mxu0 0
    %2986 = vmatpush1.bf16.msra.mxu0 %v1000
    %2987 = vmatprep.subr.bf16.mxu0 0
    %2988 = vmatpush1.bf16.msra.mxu0 %v1001
    %2989 = vmatprep.subr.bf16.mxu0 0
    %2990 = vmatpush1.bf16.msra.mxu0 %v1002
    %2991 = vmatprep.subr.bf16.mxu0 0
    %2992 = vmatpush1.bf16.msra.mxu0 %v1003
    %2993 = vmatprep.subr.bf16.mxu0 0
    %2994 = vmatpush1.bf16.msra.mxu0 %v1004
    %2995 = vmatprep.subr.bf16.mxu0 0
    %2996 = vmatpush1.bf16.msra.mxu0 %v1005
    %2997 = vmatprep.subr.bf16.mxu0 0
    %2998 = vmatpush1.bf16.msra.mxu0 %v1006
    %2999 = vmatprep.subr.bf16.mxu0 0
    %3000 = vmatpush1.bf16.msra.mxu0 %v1007
    %3001 = vmatprep.subr.bf16.mxu0 0
    %3002 = vmatpush1.bf16.msra.mxu0 %v1008
    %3003 = vmatprep.subr.bf16.mxu0 0
    %3004 = vmatpush1.bf16.msra.mxu0 %v1009
    %3005 = vmatprep.subr.bf16.mxu0 0
    %3006 = vmatpush1.bf16.msra.mxu0 %v1010
    %3007 = vmatprep.subr.bf16.mxu0 0
    %3008 = vmatpush1.bf16.msra.mxu0 %v1025
    %3009 = vmatprep.subr.bf16.mxu0 0
    %3010 = vmatpush1.bf16.msra.mxu0 0
    %3011 = vmatprep.subr.bf16.mxu0 0
    %3012 = vmatpush1.bf16.msra.mxu0 0
    %3013 = vmatprep.subr.bf16.mxu0 0
    %3014 = vmatpush1.bf16.msra.mxu0 0
    %3015 = vmatprep.mubr.bf16.mxu0 %v2927
    %3016 = vmatmul.mubr.bf16.gmra.mrb[0].mxu0 %v2924
    %v3017 = vpop.f32.mrb[0].mxu0
    %v3018 = vadd.f32 %v123, %v3017
    %v3019 = vpop.f32.mrb[0].mxu0
    %v3020 = vpop.f32.mrb[0].mxu0
    %v3021 = vpop.f32.mrb[0].mxu0
    %3022 = vdwg.mxu0
    %vm3023 = vcmp.gt.f32.partialorder %v3018, 20.0
    %v3024 = vmin.f32 %v3018, 20.0
    %v3025 = vmul.f32 %v3024, 1.442695
    %v3026 = vpow.pop %v3025
    %v3027 = vadd.f32 %v3026, 1.0
    %v3028 = vlog2.pop %v3027
    %v3029 = vmul.f32 %v3028, 0.6931472
    %v3030 = vmul.f32 -0.5, %v3026
    %v3031 = vadd.f32 %v3030, 1.0
    %v3032 = vmul.f32 %v3031, %v3026
    %v3033 = vand.u32 2147483647, %v3026
    %vm3034 = vcmp.lt.f32.partialorder %v3033, 0.0004427343
    %v3035 = vsel %vm3034, %v3032, %v3029
    %v3036 = vsel %vm3023, %v3018, %v3035
    %v3037 = vrsqrt.pop %v3036
    %v3038 = vmul.f32 %v3036, %v3037
    %vm3039 = vcmp.eq.f32.partialorder %v3036, inf
    %v3040 = vsel %vm3039, %v3036, %v3038
    %vm3041 = vcmp.eq.f32.partialorder %v3036, 0.0
    %v3042 = vand.u32 %v3036, 2147483648
    %v3043 = vsel %vm3041, %v3042, %v3040
    %v3044 = vmul.f32 %v3043, %v2893
    %v3045 = vadd.f32 %v2982, %v3044
    %vm3046 = vcmp.gt.f32.partialorder %v3045, 20.0
    %v3047 = vmin.f32 %v3045, 20.0
    %v3048 = vmul.f32 %v3047, 1.442695
    %v3049 = vpow.pop %v3048
    %v3050 = vadd.f32 %v3049, 1.0
    %v3051 = vlog2.pop %v3050
    %v3052 = vmul.f32 %v3051, 0.6931472
    %v3053 = vmul.f32 -0.5, %v3049
    %v3054 = vadd.f32 %v3053, 1.0
    %v3055 = vmul.f32 %v3054, %v3049
    %v3056 = vand.u32 2147483647, %v3049
    %vm3057 = vcmp.lt.f32.partialorder %v3056, 0.0004427343
    %v3058 = vsel %vm3057, %v3055, %v3052
    %v3059 = vsel %vm3046, %v3045, %v3058
    %s3060 = scalar_lea.vmem [#allocation5], 24
    %3061 = vst.msk [vmem:[%s3060] sm:$0xf] %vm1104, %v3059
    %v3062 = vpack.c.bf16 %v3059, %v3059
    %v3064 = vsel %vm583, %v3062, 0
    %3066 = vmatprep.subr.bf16.mxu0 0
    %3067 = vmatpush1.bf16.msra.mxu0 %v589
    %3068 = vmatprep.subr.bf16.mxu0 0
    %3069 = vmatpush1.bf16.msra.mxu0 0
    %3070 = vmatprep.subr.bf16.mxu0 0
    %3071 = vmatpush1.bf16.msra.mxu0 0
    %3072 = vmatprep.subr.bf16.mxu0 0
    %3073 = vmatpush1.bf16.msra.mxu0 0
    %3074 = vmatprep.subr.bf16.mxu0 0
    %3075 = vmatpush1.bf16.msra.mxu0 0
    %3076 = vmatprep.subr.bf16.mxu0 0
    %3077 = vmatpush1.bf16.msra.mxu0 0
    %3078 = vmatprep.subr.bf16.mxu0 0
    %3079 = vmatpush1.bf16.msra.mxu0 0
    %3080 = vmatprep.subr.bf16.mxu0 0
    %3081 = vmatpush1.bf16.msra.mxu0 0
    %3082 = vmatprep.subr.bf16.mxu0 0
    %3083 = vmatpush1.bf16.msra.mxu0 0
    %3084 = vmatprep.subr.bf16.mxu0 0
    %3085 = vmatpush1.bf16.msra.mxu0 0
    %3086 = vmatprep.subr.bf16.mxu0 0
    %3087 = vmatpush1.bf16.msra.mxu0 0
    %3088 = vmatprep.subr.bf16.mxu0 0
    %3089 = vmatpush1.bf16.msra.mxu0 0
    %3090 = vmatprep.subr.bf16.mxu0 0
    %3091 = vmatpush1.bf16.msra.mxu0 0
    %3092 = vmatprep.subr.bf16.mxu0 0
    %3093 = vmatpush1.bf16.msra.mxu0 0
    %3094 = vmatprep.subr.bf16.mxu0 0
    %3095 = vmatpush1.bf16.msra.mxu0 0
    %3096 = vmatprep.subr.bf16.mxu0 0
    %3097 = vmatpush1.bf16.msra.mxu0 0
    %3098 = vmatprep.mubr.bf16.mxu0 0
    %3099 = vmatmul.mubr.bf16.gmra.mrb[0].mxu0 %v3064
    %v3100 = vpop.f32.mrb[0].mxu0
    %v3101 = vadd.f32 %v2846, %v3100
    %v3102 = vpop.f32.mrb[0].mxu0
    %v3103 = vpop.f32.mrb[0].mxu0
    %v3104 = vpop.f32.mrb[0].mxu0
    %3105 = vdwg.mxu0
    %v3106 = vxor.u32 %v3101, 2147483648
    %v3107 = vmul.f32 %v3106, 1.442695
    %v3108 = vpow.pop %v3107
    %v3109 = vadd.f32 %v3108, 1.0
    %v3110 = vrcp.pop %v3109
    %v3111 = vmul.f32 1.0, %v3110
    %v3112 = vtanh.pop %v3101
    %v3113 = vmul.f32 %v3111, %v2797
    %3115 = vrot.lane.b32.xlu0 %v3112, 64
    %v3116 = vpop.permute.xlu0 %3115
    %v3118 = vmul.f32 %v3111, %v3116
    %3120 = vrot.lane.b32.xlu0 %v3118, 32
    %v3121 = vpop.permute.xlu0 %3120
    %v3123 = vadd.f32 %v3113, %v3121
    %v3124 = vtanh.pop %v3123
    %3126 = vrot.lane.b32.xlu0 %v3124, 64
    %v3127 = vpop.permute.xlu0 %3126
    %v3129 = vmul.f32 %v3111, %v3127
    %v3130 = vpack.c.bf16 %v3129, %v3129
    %3132 = vrot.lane.b32.xlu0 %v3130, 32
    %v3133 = vpop.permute.xlu0 %3132
    %v3135 = vsel %vm695, %v3133, 0
    %3137 = vmatprep.subr.bf16.mxu0 %v684
    %3138 = vmatpush1.bf16.msra.mxu0 %v683
    %3139 = vmatprep.subr.bf16.mxu0 %v687
    %3140 = vmatpush1.bf16.msra.mxu0 %v686
    %3141 = vmatprep.subr.bf16.mxu0 0
    %3142 = vmatpush1.bf16.msra.mxu0 0
    %3143 = vmatprep.subr.bf16.mxu0 0
    %3144 = vmatpush1.bf16.msra.mxu0 0
    %3145 = vmatprep.subr.bf16.mxu0 0
    %3146 = vmatpush1.bf16.msra.mxu0 0
    %3147 = vmatprep.subr.bf16.mxu0 0
    %3148 = vmatpush1.bf16.msra.mxu0 0
    %3149 = vmatprep.subr.bf16.mxu0 0
    %3150 = vmatpush1.bf16.msra.mxu0 0
    %3151 = vmatprep.subr.bf16.mxu0 0
    %3152 = vmatpush1.bf16.msra.mxu0 0
    %3153 = vmatprep.subr.bf16.mxu0 0
    %3154 = vmatpush1.bf16.msra.mxu0 0
    %3155 = vmatprep.subr.bf16.mxu0 0
    %3156 = vmatpush1.bf16.msra.mxu0 0
    %3157 = vmatprep.subr.bf16.mxu0 0
    %3158 = vmatpush1.bf16.msra.mxu0 0
    %3159 = vmatprep.subr.bf16.mxu0 0
    %3160 = vmatpush1.bf16.msra.mxu0 0
    %3161 = vmatprep.subr.bf16.mxu0 0
    %3162 = vmatpush1.bf16.msra.mxu0 0
    %3163 = vmatprep.subr.bf16.mxu0 0
    %3164 = vmatpush1.bf16.msra.mxu0 0
    %3165 = vmatprep.subr.bf16.mxu0 0
    %3166 = vmatpush1.bf16.msra.mxu0 0
    %3167 = vmatprep.subr.bf16.mxu0 0
    %3168 = vmatpush1.bf16.msra.mxu0 0
    %3169 = vmatprep.mubr.bf16.mxu0 0
    %3170 = vmatmul.mubr.bf16.gmra.mrb[0].mxu0 %v3135
    %v3171 = vpop.f32.mrb[0].mxu0
    %v3172 = vadd.f32 0.0, %v3171
    %v3173 = vpop.f32.mrb[0].mxu0
    %v3174 = vadd.f32 0.0, %v3173
    %v3175 = vpop.f32.mrb[0].mxu0
    %v3176 = vpop.f32.mrb[0].mxu0
    %3177 = vdwg.mxu0
    %3178 = vmatprep.subr.bf16.mxu0 0
    %3179 = vmatpush1.bf16.msra.mxu0 %v685
    %3180 = vmatprep.subr.bf16.mxu0 0
    %3181 = vmatpush1.bf16.msra.mxu0 %v688
    %3182 = vmatprep.subr.bf16.mxu0 0
    %3183 = vmatpush1.bf16.msra.mxu0 0
    %3184 = vmatprep.subr.bf16.mxu0 0
    %3185 = vmatpush1.bf16.msra.mxu0 0
    %3186 = vmatprep.subr.bf16.mxu0 0
    %3187 = vmatpush1.bf16.msra.mxu0 0
    %3188 = vmatprep.subr.bf16.mxu0 0
    %3189 = vmatpush1.bf16.msra.mxu0 0
    %3190 = vmatprep.subr.bf16.mxu0 0
    %3191 = vmatpush1.bf16.msra.mxu0 0
    %3192 = vmatprep.subr.bf16.mxu0 0
    %3193 = vmatpush1.bf16.msra.mxu0 0
    %3194 = vmatprep.subr.bf16.mxu0 0
    %3195 = vmatpush1.bf16.msra.mxu0 0
    %3196 = vmatprep.subr.bf16.mxu0 0
    %3197 = vmatpush1.bf16.msra.mxu0 0
    %3198 = vmatprep.subr.bf16.mxu0 0
    %3199 = vmatpush1.bf16.msra.mxu0 0
    %3200 = vmatprep.subr.bf16.mxu0 0
    %3201 = vmatpush1.bf16.msra.mxu0 0
    %3202 = vmatprep.subr.bf16.mxu0 0
    %3203 = vmatpush1.bf16.msra.mxu0 0
    %3204 = vmatprep.subr.bf16.mxu0 0
    %3205 = vmatpush1.bf16.msra.mxu0 0
    %3206 = vmatprep.subr.bf16.mxu0 0
    %3207 = vmatpush1.bf16.msra.mxu0 0
    %3208 = vmatprep.subr.bf16.mxu0 0
    %3209 = vmatpush1.bf16.msra.mxu0 0
    %3210 = vmatprep.mubr.bf16.mxu0 0
    %3211 = vmatmul.mubr.bf16.gmra.mrb[0].mxu0 %v3135
    %v3212 = vpop.f32.mrb[0].mxu0
    %v3213 = vadd.f32 0.0, %v3212
    %v3214 = vpop.f32.mrb[0].mxu0
    %v3215 = vpop.f32.mrb[0].mxu0
    %v3216 = vpop.f32.mrb[0].mxu0
    %3217 = vdwg.mxu0
    %s3218 = scalar_lea.vmem %s3, 28
    %v3219 = vld [vmem:[%s3218] sm:$0xf]
    %v3220 = vadd.f32 %v3174, %v104
    %v3221 = vadd.f32 %v3213, %v108
    %vm3222 = vcmp.gt.f32.partialorder %v3220, 20.0
    %vm3223 = vcmp.gt.f32.partialorder %v3221, 20.0
    %v3224 = vmin.f32 %v3220, 20.0
    %v3225 = vmin.f32 %v3221, 20.0
    %v3226 = vmul.f32 %v3224, 1.442695
    %v3227 = vpow.pop %v3226
    %v3228 = vmul.f32 %v3225, 1.442695
    %v3229 = vpow.pop %v3228
    %v3230 = vadd.f32 %v3227, 1.0
    %v3231 = vlog2.pop %v3230
    %v3232 = vmul.f32 %v3231, 0.6931472
    %v3233 = vmul.f32 -0.5, %v3227
    %v3234 = vadd.f32 %v3233, 1.0
    %v3235 = vmul.f32 %v3234, %v3227
    %v3236 = vand.u32 2147483647, %v3227
    %vm3237 = vcmp.lt.f32.partialorder %v3236, 0.0004427343
    %v3238 = vsel %vm3237, %v3235, %v3232
    %v3239 = vadd.f32 %v3229, 1.0
    %v3240 = vlog2.pop %v3239
    %v3241 = vmul.f32 %v3240, 0.6931472
    %v3242 = vmul.f32 -0.5, %v3229
    %v3243 = vadd.f32 %v3242, 1.0
    %v3244 = vmul.f32 %v3243, %v3229
    %v3245 = vand.u32 2147483647, %v3229
    %vm3246 = vcmp.lt.f32.partialorder %v3245, 0.0004427343
    %v3247 = vsel %vm3246, %v3244, %v3241
    %v3248 = vsel %vm3222, %v3220, %v3238
    %v3249 = vsel %vm3223, %v3221, %v3247
    %v3250 = vpack.c.bf16 %v3248, %v3248
    %v3251 = vpack.c.bf16 %v3249, %v3249
    %v3253 = vsel %vm888, %v3251, 0
    %3255 = vmatprep.subr.bf16.mxu0 0
    %3256 = vmatpush1.bf16.msra.mxu0 %v863
    %3257 = vmatprep.subr.bf16.mxu0 0
    %3258 = vmatpush1.bf16.msra.mxu0 %v864
    %3259 = vmatprep.subr.bf16.mxu0 0
    %3260 = vmatpush1.bf16.msra.mxu0 %v865
    %3261 = vmatprep.subr.bf16.mxu0 0
    %3262 = vmatpush1.bf16.msra.mxu0 %v866
    %3263 = vmatprep.subr.bf16.mxu0 0
    %3264 = vmatpush1.bf16.msra.mxu0 %v867
    %3265 = vmatprep.subr.bf16.mxu0 0
    %3266 = vmatpush1.bf16.msra.mxu0 %v868
    %3267 = vmatprep.subr.bf16.mxu0 0
    %3268 = vmatpush1.bf16.msra.mxu0 %v869
    %3269 = vmatprep.subr.bf16.mxu0 0
    %3270 = vmatpush1.bf16.msra.mxu0 %v870
    %3271 = vmatprep.subr.bf16.mxu0 0
    %3272 = vmatpush1.bf16.msra.mxu0 %v871
    %3273 = vmatprep.subr.bf16.mxu0 0
    %3274 = vmatpush1.bf16.msra.mxu0 %v872
    %3275 = vmatprep.subr.bf16.mxu0 0
    %3276 = vmatpush1.bf16.msra.mxu0 %v873
    %3277 = vmatprep.subr.bf16.mxu0 0
    %3278 = vmatpush1.bf16.msra.mxu0 %v874
    %3279 = vmatprep.subr.bf16.mxu0 0
    %3280 = vmatpush1.bf16.msra.mxu0 %v893
    %3281 = vmatprep.subr.bf16.mxu0 0
    %3282 = vmatpush1.bf16.msra.mxu0 0
    %3283 = vmatprep.subr.bf16.mxu0 0
    %3284 = vmatpush1.bf16.msra.mxu0 0
    %3285 = vmatprep.subr.bf16.mxu0 0
    %3286 = vmatpush1.bf16.msra.mxu0 0
    %3287 = vmatprep.mubr.bf16.mxu0 %v3253
    %3288 = vmatmul.mubr.bf16.gmra.mrb[0].mxu0 %v3250
    %v3289 = vpop.f32.mrb[0].mxu0
    %v3290 = vadd.f32 %v116, %v3289
    %v3291 = vpop.f32.mrb[0].mxu0
    %v3292 = vpop.f32.mrb[0].mxu0
    %v3293 = vpop.f32.mrb[0].mxu0
    %3294 = vdwg.mxu0
    %vm3295 = vcmp.gt.f32.partialorder %v3290, 20.0
    %v3296 = vmin.f32 %v3290, 20.0
    %v3297 = vmul.f32 %v3296, 1.442695
    %v3298 = vpow.pop %v3297
    %v3299 = vadd.f32 %v3298, 1.0
    %v3300 = vlog2.pop %v3299
    %v3301 = vmul.f32 %v3300, 0.6931472
    %v3302 = vmul.f32 -0.5, %v3298
    %v3303 = vadd.f32 %v3302, 1.0
    %v3304 = vmul.f32 %v3303, %v3298
    %v3305 = vand.u32 2147483647, %v3298
    %vm3306 = vcmp.lt.f32.partialorder %v3305, 0.0004427343
    %v3307 = vsel %vm3306, %v3304, %v3301
    %v3308 = vsel %vm3295, %v3290, %v3307
    %3309 = vmatprep.subr.bf16.mxu0 0
    %3310 = vmatpush1.bf16.msra.mxu0 %v999
    %3311 = vmatprep.subr.bf16.mxu0 0
    %3312 = vmatpush1.bf16.msra.mxu0 %v1000
    %3313 = vmatprep.subr.bf16.mxu0 0
    %3314 = vmatpush1.bf16.msra.mxu0 %v1001
    %3315 = vmatprep.subr.bf16.mxu0 0
    %3316 = vmatpush1.bf16.msra.mxu0 %v1002
    %3317 = vmatprep.subr.bf16.mxu0 0
    %3318 = vmatpush1.bf16.msra.mxu0 %v1003
    %3319 = vmatprep.subr.bf16.mxu0 0
    %3320 = vmatpush1.bf16.msra.mxu0 %v1004
    %3321 = vmatprep.subr.bf16.mxu0 0
    %3322 = vmatpush1.bf16.msra.mxu0 %v1005
    %3323 = vmatprep.subr.bf16.mxu0 0
    %3324 = vmatpush1.bf16.msra.mxu0 %v1006
    %3325 = vmatprep.subr.bf16.mxu0 0
    %3326 = vmatpush1.bf16.msra.mxu0 %v1007
    %3327 = vmatprep.subr.bf16.mxu0 0
    %3328 = vmatpush1.bf16.msra.mxu0 %v1008
    %3329 = vmatprep.subr.bf16.mxu0 0
    %3330 = vmatpush1.bf16.msra.mxu0 %v1009
    %3331 = vmatprep.subr.bf16.mxu0 0
    %3332 = vmatpush1.bf16.msra.mxu0 %v1010
    %3333 = vmatprep.subr.bf16.mxu0 0
    %3334 = vmatpush1.bf16.msra.mxu0 %v1025
    %3335 = vmatprep.subr.bf16.mxu0 0
    %3336 = vmatpush1.bf16.msra.mxu0 0
    %3337 = vmatprep.subr.bf16.mxu0 0
    %3338 = vmatpush1.bf16.msra.mxu0 0
    %3339 = vmatprep.subr.bf16.mxu0 0
    %3340 = vmatpush1.bf16.msra.mxu0 0
    %3341 = vmatprep.mubr.bf16.mxu0 %v3253
    %3342 = vmatmul.mubr.bf16.gmra.mrb[0].mxu0 %v3250
    %v3343 = vpop.f32.mrb[0].mxu0
    %v3344 = vadd.f32 %v123, %v3343
    %v3345 = vpop.f32.mrb[0].mxu0
    %v3346 = vpop.f32.mrb[0].mxu0
    %v3347 = vpop.f32.mrb[0].mxu0
    %3348 = vdwg.mxu0
    %vm3349 = vcmp.gt.f32.partialorder %v3344, 20.0
    %v3350 = vmin.f32 %v3344, 20.0
    %v3351 = vmul.f32 %v3350, 1.442695
    %v3352 = vpow.pop %v3351
    %v3353 = vadd.f32 %v3352, 1.0
    %v3354 = vlog2.pop %v3353
    %v3355 = vmul.f32 %v3354, 0.6931472
    %v3356 = vmul.f32 -0.5, %v3352
    %v3357 = vadd.f32 %v3356, 1.0
    %v3358 = vmul.f32 %v3357, %v3352
    %v3359 = vand.u32 2147483647, %v3352
    %vm3360 = vcmp.lt.f32.partialorder %v3359, 0.0004427343
    %v3361 = vsel %vm3360, %v3358, %v3355
    %v3362 = vsel %vm3349, %v3344, %v3361
    %v3363 = vrsqrt.pop %v3362
    %v3364 = vmul.f32 %v3362, %v3363
    %vm3365 = vcmp.eq.f32.partialorder %v3362, inf
    %v3366 = vsel %vm3365, %v3362, %v3364
    %vm3367 = vcmp.eq.f32.partialorder %v3362, 0.0
    %v3368 = vand.u32 %v3362, 2147483648
    %v3369 = vsel %vm3367, %v3368, %v3366
    %v3370 = vmul.f32 %v3369, %v3219
    %v3371 = vadd.f32 %v3308, %v3370
    %vm3372 = vcmp.gt.f32.partialorder %v3371, 20.0
    %v3373 = vmin.f32 %v3371, 20.0
    %v3374 = vmul.f32 %v3373, 1.442695
    %v3375 = vpow.pop %v3374
    %v3376 = vadd.f32 %v3375, 1.0
    %v3377 = vlog2.pop %v3376
    %v3378 = vmul.f32 %v3377, 0.6931472
    %v3379 = vmul.f32 -0.5, %v3375
    %v3380 = vadd.f32 %v3379, 1.0
    %v3381 = vmul.f32 %v3380, %v3375
    %v3382 = vand.u32 2147483647, %v3375
    %vm3383 = vcmp.lt.f32.partialorder %v3382, 0.0004427343
    %v3384 = vsel %vm3383, %v3381, %v3378
    %v3385 = vsel %vm3372, %v3371, %v3384
    %s3386 = scalar_lea.vmem [#allocation5], 28
    %3387 = vst.msk [vmem:[%s3386] sm:$0xf] %vm1104, %v3385
    %3388 = vst.msk [vmem:[#allocation2] sm:$0xf] %vm1104, %v3385
    %3389 = vst [vmem:[#allocation3] sm:$0xf] %v3172
    %3391 = vrot.lane.b32.xlu0 %v3123, 96
    %v3392 = vpop.permute.xlu0 %3391
    %vm3394 = vcmask 257024
    %3395 = vst.msk [vmem:[#allocation4] sm:$0xf] %vm3394, %v3392
    // Predicated region
    $region50: #{tpu_custom_call.1} parent=1 // pred_check
      _
    $region51: #{tpu_custom_call.1} parent=1 // pred_check_branch
      %3397 = sbr.rel (0) target = $region53
    $region52: #{tpu_custom_call.1} parent=1 // pred_region
      %s3399 = ssub.s32 512, 512
      %3400 = vsyncadd [#allocation6], %s3399
      %s3401 = sshll.u32 [#allocation5], 4
      %s3402 = int_to_ptr.vmem [resolvable:$true] %s3401
      %3407 = dma.vmem_to_hbm [thread:$0]  %s3402, 512, %s11, [#allocation6], 64, 64, 4
    $region53: #{tpu_custom_call.1} parent=1 // pred_fallthru
      _
    // Predicated region
    $region54: #{tpu_custom_call.1} parent=1 // pred_check
      _
    $region55: #{tpu_custom_call.1} parent=1 // pred_check_branch
      %3409 = sbr.rel (0) target = $region57
    $region56: #{tpu_custom_call.1} parent=1 // pred_region
      %3410 = dma.done [#allocation6], 512
    $region57: #{tpu_custom_call.1} parent=1 // pred_fallthru
      _
    %3411 = vsyncpa [#allocation6], 1

</llo_original>
